<compile_context>
chip_gen: v5e
topology: v5e:2x2
jax: 0.10.0
libtpu: 0.0.40
codegen_flags: <defaults>
</compile_context>

<pallas_src>
import math
from functools import partial

import numpy as np
import jax
import jax.numpy as jnp
from jax.experimental import pallas as pl
from jax.experimental.pallas import tpu as pltpu

# ---- sizes implied by the reference model -----------------------------------
SEQ_LEN = 112        # = 7 * 2**4, forced by graph_parameter = [7,7,7,7,7]
SEQ2_LEN = 8         # length of the second (LSTM) segment
SEB_NUM = 5          # = len(graph_parameter); h_out packs 5 hidden states
INPUT_DIM = 8
HIDDEN_DIM = 16
H2 = HIDDEN_DIM * SEB_NUM      # 80 : Moduel2 hidden size (hidden_dim * SEB_NUM)
GATE_PAD = 128                 # each LSTM gate block zero-padded to a full 128-lane vreg
OUT_PAD = 128                  # lane-dense output width (>= SEQ_LEN + SEQ2_LEN = 120)
XPAD = 16                      # input feature dim padded 8 -> 16 (bf16 sublane tile)
WSLAB_ROWS = XPAD + 2 * HIDDEN_DIM + GATE_PAD   # 176: [Wx|Wzx] + [Wh;Whl] + fc


# ---------------------------------------------------------------------------
# Static schedule (mirrors GraphZoomNeuralNetwork.get_graph + forward control)
# ---------------------------------------------------------------------------
def _get_graph(graph_parameter):
    gl = len(graph_parameter)
    L = graph_parameter[-1] * 2 ** (gl - 1)
    layer_indexes = np.zeros(L, dtype=int)
    for i in range(gl):
        a = graph_parameter[i]
        temp = []
        if i != gl - 1:
            for j in range(a):
                temp.append(2 ** i + j * 2 ** (i + 1))
        else:
            for j in range(a):
                temp.append(2 ** i + j * 2 ** i)
        for n in temp:
            layer_indexes[n - 1] = i + 1
    return np.flipud(layer_indexes).copy()


def _build_schedule():
    """Statically unrolls module1's data-dependent control flow.

    Each entry: t (timestep into X1), lid (=id-1, layer updated),
    lidu (=id_u-1 or None when id==layer_num), do_zoom (bool),
    ln (layer_zoom_input_n, length layer_num, 0 == "use h_layers[i]" path).
    All entries are plain Python ints (no numpy arrays leak into the kernel trace).
    """
    graph_parameter = [7, 7, 7, 7, 7]
    layer_num = len(graph_parameter)
    layer_indexes = _get_graph(graph_parameter)
    seq_len = len(layer_indexes)

    sched = []
    min_id = None  # persists across iterations, exactly like the torch code
    for t in range(seq_len):
        lid = int(layer_indexes[t])
        if lid == 0:
            continue
        if lid == layer_num:
            lidu = None
        else:
            lidu = None
            for j in range(t, -1, -1):
                if layer_indexes[j] > lid:
                    lidu = int(layer_indexes[j])
                    break
        for i in range(t + 1, seq_len):
            if layer_indexes[i] != 0:
                min_id = int(layer_indexes[i])
                break
        if min_id > lid:
            sched.append(dict(t=t, lid=lid - 1,
                              lidu=None if lidu is None else lidu - 1,
                              do_zoom=False, ln=[0] * layer_num))
            continue
        ln = [0] * layer_num
        for i in range(min_id, lid + 1):
            for j in range(t + 1, seq_len):
                if layer_indexes[j] == i:
                    ln[i - 1] = j
                    break
        sched.append(dict(t=t, lid=lid - 1,
                          lidu=None if lidu is None else lidu - 1,
                          do_zoom=True, ln=ln))
    return sched, layer_num


# ---------------------------------------------------------------------------
# Pallas kernel: whole Encoder1 forward pass
# ---------------------------------------------------------------------------
def _sigmoid(x):
    # exact identity sigmoid(x) = 0.5*(tanh(x/2)+1): one EUP tanh, no divide.
    return 0.5 * jnp.tanh(0.5 * x) + 0.5


def _encoder1_kernel(schedule, layer_num,
                     x_ref, wslab_ref, w2u2_ref, misc_ref,
                     out_ref, xproj_ref):
    f32 = jnp.float32
    bf16 = jnp.bfloat16
    B = out_ref.shape[0]
    hd = HIDDEN_DIM

    # ---- unpack the packed parameter slabs (static slices, loaded once) -----
    misc = misc_ref[...]                         # (8, 512) f32
    bias_w = misc[0:1, 0:2 * hd]                 # (1,32): module1 bias | zeros (xz col)
    b2 = misc[1:2, :]                            # (1,512) gate-padded LSTM bias
    fcb = misc[2:3, 0:OUT_PAD]                   # (1,128) fc bias (zero-padded)
    fc2w = misc[3:4, 0:GATE_PAD]                 # (1,128) fc2 weight (zero-padded)
    wzh = misc[4:5, 0:hd]                        # (1,16)
    bz = misc[4:5, hd:hd + 1]                    # (1,1)
    fc2b = misc[4:5, hd + 1:hd + 2]              # (1,1)

    wx_wide = wslab_ref[0:XPAD, 0:2 * hd]              # (16,32) bf16: [Wx | Wzx | 0]
    whwhl = wslab_ref[XPAD:XPAD + 2 * hd, 0:hd]        # (32,16) bf16: [Wh ; Whl]
    wh = whwhl[0:hd, :]                                # (16,16) bf16

    # ---- hoisted input projection: one wide MXU pass, module1 bias folded ---
    x1 = x_ref[0:SEQ_LEN * B, :]                       # (224,16) bf16
    xproj_ref[...] = (jnp.dot(x1, wx_wide, preferred_element_type=f32) + bias_w)
    # cols 0:16 = x@Wx + bias ; col 16 = x@Wzx (no bias)

    # ---- module1: GraphZoomNeuralNetwork (schedule statically unrolled) -----
    h_layers = [jnp.zeros((B, hd), f32) for _ in range(layer_num)]
    zoom = jnp.full((B, layer_num), 1.0 / layer_num, f32)

    for step in schedule:
        t, lid, lidu = step["t"], step["lid"], step["lidu"]
        xw_t = xproj_ref[t * B:(t + 1) * B, 0:hd]      # (B,16): x@Wx + bias

        if lidu is None:
            # top layer: zeros @ Whl in torch -> drop the Whl term
            pre = xw_t + jnp.dot(h_layers[lid].astype(bf16), wh,
                                 preferred_element_type=f32)
        else:
            # fused [Wh;Whl] recurrence: single (B,32)x(32,16) MXU pass
            h_z = zoom[:, lid:lid + 1] * h_layers[lidu]
            h_cat = jnp.concatenate([h_layers[lid], h_z], axis=-1).astype(bf16)
            pre = xw_t + jnp.dot(h_cat, whwhl, preferred_element_type=f32)
        h_new = jnp.tanh(pre)
        h_layers[lid] = h_new

        if not step["do_zoom"]:
            zoom = jnp.full((B, layer_num), 1.0 / layer_num, f32)
            continue

        # zoom logits packed into one (B,5) lane tensor -> batched transcendentals
        hzh_lid = jnp.sum(h_new * wzh, axis=-1, keepdims=True) + bz      # (B,1)
        pre_logits = []
        for i in range(layer_num):
            tt = step["ln"][i]
            if tt == 0:
                if i == lid:
                    pre_logits.append(hzh_lid)
                else:
                    pre_logits.append(
                        jnp.sum(h_layers[i] * wzh, axis=-1, keepdims=True) + bz)
            else:
                xz_tt = xproj_ref[tt * B:(tt + 1) * B, hd:hd + 1]        # x_tt @ Wzx
                pre_logits.append(xz_tt + hzh_lid)
        logits = jnp.tanh(jnp.concatenate(pre_logits, axis=-1))          # one tanh (B,5)
        m = jnp.max(logits, axis=-1, keepdims=True)
        e = jnp.exp(logits - m)                                          # one exp
        zoom = e / jnp.sum(e, axis=-1, keepdims=True)                    # exact softmax

    # ---- fc over the packed hidden states, lane-dense (B,128) block ---------
    h_t = jnp.concatenate(
        h_layers + [jnp.zeros((B, GATE_PAD - layer_num * hd), f32)], axis=-1)  # (B,128)
    fcw = wslab_ref[XPAD + 2 * hd:XPAD + 2 * hd + GATE_PAD, :]                 # (128,128)
    y1 = jnp.dot(h_t.astype(bf16), fcw, preferred_element_type=f32) + fcb      # (B,128)

    # ---- module2: LSTM; 4 gate matmuls fused into one (B,512) dot, b2 folded -
    x2 = x_ref[SEQ_LEN * B:(SEQ_LEN + SEQ2_LEN) * B, :]                  # (16,16) bf16
    w2 = w2u2_ref[0:XPAD, :]                                             # (16,512) bf16
    xw2 = jnp.dot(x2, w2, preferred_element_type=f32) + b2               # (16,512)

    c_t = jnp.zeros((B, GATE_PAD), f32)
    cols = []
    for t in range(SEQ2_LEN):
        u2 = w2u2_ref[XPAD:XPAD + GATE_PAD, :]                           # (128,512) bf16
        gates = (xw2[t * B:(t + 1) * B, :]
                 + jnp.dot(h_t.astype(bf16), u2, preferred_element_type=f32))
        i_t = _sigmoid(gates[:, 0 * GATE_PAD:1 * GATE_PAD])
        f_t = _sigmoid(gates[:, 1 * GATE_PAD:2 * GATE_PAD])
        g_t = jnp.tanh(gates[:, 2 * GATE_PAD:3 * GATE_PAD])
        o_t = _sigmoid(gates[:, 3 * GATE_PAD:4 * GATE_PAD])
        c_t = f_t * c_t + i_t * g_t
        h_t = o_t * jnp.tanh(c_t)
        cols.append(jnp.sum(h_t * fc2w, axis=-1, keepdims=True))   # off the c/h chain
    y2 = jnp.concatenate(cols, axis=-1) + fc2b                      # (B,8)

    # single unmasked 128-lane-wide store (y1 cols 112..127 are structurally zero)
    out_ref[...] = jnp.concatenate(
        [y1[:, :SEQ_LEN], y2, y1[:, SEQ_LEN + SEQ2_LEN:]], axis=-1)


# ---------------------------------------------------------------------------
# Parameters (deterministic synthetic init, mirrors torch uniform(-stdv, stdv))
# ---------------------------------------------------------------------------
def init_params(key, input_dim=INPUT_DIM, hidden_dim=HIDDEN_DIM):
    stdv = 1.0 / math.sqrt(hidden_dim)
    h2 = hidden_dim * SEB_NUM
    shapes = dict(
        Wx=(input_dim, hidden_dim), Wh=(hidden_dim, hidden_dim),
        Whl=(hidden_dim, hidden_dim), bias=(hidden_dim,),
        Wzx=(input_dim, 1), Wzh=(hidden_dim, 1), bz=(1,),
        fc_w=(SEQ_LEN, hidden_dim * SEB_NUM), fc_b=(SEQ_LEN,),
        W2=(input_dim, 4 * h2), U2=(h2, 4 * h2), bias2=(4 * h2,),
        fc2_w=(1, h2), fc2_b=(1,),
    )
    keys = jax.random.split(key, len(shapes))
    return {name: jax.random.uniform(k, shape, jnp.float32, -stdv, stdv)
            for (name, shape), k in zip(shapes.items(), keys)}


# ---------------------------------------------------------------------------
# Wrapper: layout plumbing (padding / slab packing) + pallas_call
# ---------------------------------------------------------------------------
@jax.jit
def encoder1_forward(x, params):
    B = x.shape[0]
    hd = HIDDEN_DIM
    f32 = jnp.float32
    bf16 = jnp.bfloat16

    # time-major, batch-flattened segments (row = t*B + b), features padded 8 -> 16,
    # both segments stacked into one input slab (one DMA).
    x1 = jnp.transpose(x[:, :SEQ_LEN, :], (1, 0, 2)).reshape(SEQ_LEN * B, INPUT_DIM)
    x2 = jnp.transpose(x[:, SEQ_LEN:, :], (1, 0, 2)).reshape(SEQ2_LEN * B, INPUT_DIM)
    x_all = jnp.pad(jnp.concatenate([x1, x2], axis=0),
                    ((0, 0), (0, XPAD - INPUT_DIM))).astype(bf16)      # (240,16)

    # bf16 weight slab: rows 0:16 = [Wx | Wzx], rows 16:48 = [Wh ; Whl],
    # rows 48:176 = fc weight (80x112 zero-padded to 128x128).
    wslab = jnp.zeros((WSLAB_ROWS, OUT_PAD), f32)
    wslab = wslab.at[:INPUT_DIM, :hd].set(params["Wx"])
    wslab = wslab.at[:INPUT_DIM, hd:hd + 1].set(params["Wzx"])
    wslab = wslab.at[XPAD:XPAD + hd, :hd].set(params["Wh"])
    wslab = wslab.at[XPAD + hd:XPAD + 2 * hd, :hd].set(params["Whl"])
    wslab = wslab.at[XPAD + 2 * hd:XPAD + 2 * hd + H2, :SEQ_LEN].set(params["fc_w"].T)
    wslab = wslab.astype(bf16)

    # bf16 LSTM slab: rows 0:16 = gate-padded W2, rows 16:144 = gate-padded U2.
    W2, U2 = params["W2"], params["U2"]
    w2u2 = jnp.zeros((XPAD + GATE_PAD, 4 * GATE_PAD), f32)
    for k in range(4):
        w2u2 = w2u2.at[:INPUT_DIM, k * GATE_PAD:k * GATE_PAD + H2].set(
            W2[:, k * H2:(k + 1) * H2])
        w2u2 = w2u2.at[XPAD:XPAD + H2, k * GATE_PAD:k * GATE_PAD + H2].set(
            U2[:, k * H2:(k + 1) * H2])
    w2u2 = w2u2.astype(bf16)

    # f32 misc slab (biases / 1-D vectors kept at full precision).
    misc = jnp.zeros((8, 4 * GATE_PAD), f32)
    misc = misc.at[0, :hd].set(params["bias"])
    for k in range(4):
        misc = misc.at[1, k * GATE_PAD:k * GATE_PAD + H2].set(
            params["bias2"][k * H2:(k + 1) * H2])
    misc = misc.at[2, :SEQ_LEN].set(params["fc_b"])
    misc = misc.at[3, :H2].set(params["fc2_w"][0])
    misc = misc.at[4, :hd].set(params["Wzh"][:, 0])
    misc = misc.at[4, hd].set(params["bz"][0])
    misc = misc.at[4, hd + 1].set(params["fc2_b"][0])

    schedule, layer_num = _build_schedule()
    kernel = partial(_encoder1_kernel, schedule, layer_num)

    vmem = pl.BlockSpec(memory_space=pltpu.MemorySpace.VMEM)
    # Grid-less by design (B=2, serial recurrence): a batch-parallel grid / second TC
    # would not shorten the dependency chain and only adds per-step overhead.
    out = pl.pallas_call(
        kernel,
        out_shape=jax.ShapeDtypeStruct((B, OUT_PAD), jnp.float32),
        in_specs=[vmem] * 4,
        out_specs=vmem,
        scratch_shapes=[
            pltpu.VMEM((SEQ_LEN * B, 2 * hd), jnp.float32),   # hoisted x1@[Wx|Wzx]+bias
        ],
    )(x_all, wslab, w2u2, misc)
    return out[:, :SEQ_LEN + SEQ2_LEN]


# ---------------------------------------------------------------------------
# Pure-JAX reference (torch-shaped loops; same precision choices as the kernel:
# bf16 MXU matmuls with f32 accumulation, f32 elementwise, exact softmax)
# ---------------------------------------------------------------------------
def _dot_bf16(a, b):
    return jnp.dot(a.astype(jnp.bfloat16), b.astype(jnp.bfloat16),
                   preferred_element_type=jnp.float32)


def encoder1_reference(x, params):
    B = x.shape[0]
    hd = HIDDEN_DIM
    schedule, layer_num = _build_schedule()
    X1 = x[:, :SEQ_LEN, :]
    X2 = x[:, SEQ_LEN:, :]
    Wx, Wh, Whl = params["Wx"], params["Wh"], params["Whl"]
    bias = params["bias"]
    Wzx = params["Wzx"]
    wzh = params["Wzh"].reshape(1, -1)
    bz = params["bz"].reshape(1, 1)

    h_layers = [jnp.zeros((B, hd), jnp.float32) for _ in range(layer_num)]
    zoom = [jnp.full((B, 1), 1.0 / layer_num, jnp.float32) for _ in range(layer_num)]
    for step in schedule:
        t, lid, lidu = step["t"], step["lid"], step["lidu"]
        x_t = X1[:, t, :]
        acc = _dot_bf16(x_t, Wx) + _dot_bf16(h_layers[lid], Wh) + bias
        if lidu is not None:
            acc = acc + _dot_bf16(zoom[lid] * h_layers[lidu], Whl)
        h_layers[lid] = jnp.tanh(acc)
        if not step["do_zoom"]:
            zoom = [jnp.full((B, 1), 1.0 / layer_num, jnp.float32)
                    for _ in range(layer_num)]
            continue
        vals = []
        for i in range(layer_num):
            tt = step["ln"][i]
            if tt == 0:
                vals.append(jnp.tanh(
                    jnp.sum(h_layers[i] * wzh, axis=-1, keepdims=True) + bz))
            else:
                vals.append(jnp.tanh(
                    _dot_bf16(X1[:, tt, :], Wzx)
                    + jnp.sum(h_layers[lid] * wzh, axis=-1, keepdims=True) + bz))
        sm = jax.nn.softmax(jnp.stack(vals), axis=0)
        zoom = [sm[i] for i in range(layer_num)]

    h_out = jnp.concatenate(h_layers, axis=-1)
    y1 = _dot_bf16(h_out, params["fc_w"].T) + params["fc_b"]

    W2, U2, b2 = params["W2"], params["U2"], params["bias2"]
    fc2w = params["fc2_w"]
    fc2b = params["fc2_b"].reshape(1, 1)
    h_t = h_out
    c_t = jnp.zeros((B, H2), jnp.float32)
    cols = []
    for t in range(SEQ2_LEN):
        x_t = X2[:, t, :]
        gates = _dot_bf16(x_t, W2) + _dot_bf16(h_t, U2) + b2
        i_t = jax.nn.sigmoid(gates[:, :H2])
        f_t = jax.nn.sigmoid(gates[:, H2:2 * H2])
        g_t = jnp.tanh(gates[:, 2 * H2:3 * H2])
        o_t = jax.nn.sigmoid(gates[:, 3 * H2:])
        c_t = f_t * c_t + i_t * g_t
        h_t = o_t * jnp.tanh(c_t)
        cols.append(jnp.sum(h_t * fc2w, axis=-1, keepdims=True) + fc2b)
    y2 = jnp.concatenate(cols, axis=-1)
    return jnp.concatenate([y1, y2], axis=1)


if __name__ == "__main__":
    key = jax.random.PRNGKey(0)
    pkey, xkey = jax.random.split(key)
    params = init_params(pkey)

    B = 2
    x = jax.random.normal(xkey, (B, SEQ_LEN + SEQ2_LEN, INPUT_DIM), jnp.float32)

    y = jax.block_until_ready(encoder1_forward(x, params))

    assert y.shape == (B, SEQ_LEN + SEQ2_LEN)
    assert bool(jnp.all(jnp.isfinite(y)))

    # Tolerance covers bf16 MXU passes and op-order differences between the fused
    # kernel and the torch-shaped reference (both use exact softmax / sigmoid).
    y_ref = encoder1_reference(x, params)
    np.testing.assert_allclose(np.asarray(y), np.asarray(y_ref),
                               rtol=1e-2, atol=1e-2)
    print("KERNEL_OK")
</pallas_src>

<mosaic_0001>
module attributes {stable_mosaic.version = 11 : i64} {
  func.func @_encoder1_kernel(%arg0: memref<240x16xbf16, #tpu.memory_space<vmem>>, %arg1: memref<176x128xbf16, #tpu.memory_space<vmem>>, %arg2: memref<144x512xbf16, #tpu.memory_space<vmem>>, %arg3: memref<8x512xf32, #tpu.memory_space<vmem>>, %arg4: memref<2x128xf32, #tpu.memory_space<vmem>>, %arg5: memref<224x32xf32, #tpu.memory_space<vmem>>) attributes {dimension_semantics = [], scalar_prefetch = 0 : i64, scratch_operands = 1 : i64, tpu.core_type = #tpu.core_type<tc>} {
    %c0 = arith.constant 0 : index
    %c0_0 = arith.constant 0 : index
    %0 = vector.load %arg3[%c0, %c0_0] : memref<8x512xf32, #tpu.memory_space<vmem>>, vector<8x512xf32>
    %1 = vector.extract_strided_slice %0 {offsets = [0, 0], sizes = [1, 32], strides = [1, 1]} : vector<8x512xf32> to vector<1x32xf32>
    %2 = vector.extract_strided_slice %0 {offsets = [1, 0], sizes = [1, 512], strides = [1, 1]} : vector<8x512xf32> to vector<1x512xf32>
    %3 = vector.extract_strided_slice %0 {offsets = [2, 0], sizes = [1, 128], strides = [1, 1]} : vector<8x512xf32> to vector<1x128xf32>
    %4 = vector.extract_strided_slice %0 {offsets = [3, 0], sizes = [1, 128], strides = [1, 1]} : vector<8x512xf32> to vector<1x128xf32>
    %5 = vector.extract_strided_slice %0 {offsets = [4, 0], sizes = [1, 16], strides = [1, 1]} : vector<8x512xf32> to vector<1x16xf32>
    %6 = vector.extract_strided_slice %0 {offsets = [4, 16], sizes = [1, 1], strides = [1, 1]} : vector<8x512xf32> to vector<1x1xf32>
    %7 = vector.extract_strided_slice %0 {offsets = [4, 17], sizes = [1, 1], strides = [1, 1]} : vector<8x512xf32> to vector<1x1xf32>
    %c0_1 = arith.constant 0 : index
    %c0_2 = arith.constant 0 : index
    %8 = vector.load %arg1[%c0_1, %c0_2] : memref<176x128xbf16, #tpu.memory_space<vmem>>, vector<16x32xbf16>
    %c16 = arith.constant 16 : index
    %c0_3 = arith.constant 0 : index
    %9 = vector.load %arg1[%c16, %c0_3] : memref<176x128xbf16, #tpu.memory_space<vmem>>, vector<32x16xbf16>
    %10 = vector.extract_strided_slice %9 {offsets = [0, 0], sizes = [16, 16], strides = [1, 1]} : vector<32x16xbf16> to vector<16x16xbf16>
    %c0_4 = arith.constant 0 : index
    %c0_5 = arith.constant 0 : index
    %11 = vector.load %arg0[%c0_4, %c0_5] : memref<240x16xbf16, #tpu.memory_space<vmem>>, vector<224x16xbf16>
    %cst = arith.constant dense<0.000000e+00> : vector<224x32xf32>
    %12 = tpu.matmul %11, %8, %cst {dimension_numbers = #tpu.dot_dimension_numbers<[1], [0], [0], [1], [0, 0, 1, 1], [], []>} : vector<224x16xbf16>, vector<16x32xbf16>, vector<224x32xf32> -> vector<224x32xf32>
    %13 = vector.broadcast %1 : vector<1x32xf32> to vector<224x32xf32>
    %14 = arith.addf %12, %13 : vector<224x32xf32>
    %c0_6 = arith.constant 0 : index
    %c0_7 = arith.constant 0 : index
    %15 = vector.load %arg5[%c0_6, %c0_7] : memref<224x32xf32, #tpu.memory_space<vmem>>, vector<224x32xf32>
    tpu.vector_store %arg5[%c0_6, %c0_7], %14 {strides = array<i32>} : memref<224x32xf32, #tpu.memory_space<vmem>>, vector<224x32xf32>,
    %cst_8 = arith.constant 0.000000e+00 : f32
    %16 = vector.broadcast %cst_8 : f32 to vector<2x16xf32>
    %cst_9 = arith.constant 0.000000e+00 : f32
    %17 = vector.broadcast %cst_9 : f32 to vector<2x16xf32>
    %cst_10 = arith.constant 0.000000e+00 : f32
    %18 = vector.broadcast %cst_10 : f32 to vector<2x16xf32>
    %cst_11 = arith.constant 0.000000e+00 : f32
    %19 = vector.broadcast %cst_11 : f32 to vector<2x16xf32>
    %cst_12 = arith.constant 0.000000e+00 : f32
    %20 = vector.broadcast %cst_12 : f32 to vector<2x16xf32>
    %c0_13 = arith.constant 0 : index
    %c0_14 = arith.constant 0 : index
    %21 = vector.load %arg5[%c0_13, %c0_14] : memref<224x32xf32, #tpu.memory_space<vmem>>, vector<2x16xf32>
    %22 = arith.truncf %20 : vector<2x16xf32> to vector<2x16xbf16>
    %cst_15 = arith.constant dense<0.000000e+00> : vector<2x16xf32>
    %23 = tpu.matmul %22, %10, %cst_15 {dimension_numbers = #tpu.dot_dimension_numbers<[1], [0], [0], [1], [0, 0, 1, 1], [], []>} : vector<2x16xbf16>, vector<16x16xbf16>, vector<2x16xf32> -> vector<2x16xf32>
    %24 = arith.addf %21, %23 : vector<2x16xf32>
    %25 = math.tanh %24 : vector<2x16xf32>
    %26 = vector.broadcast %5 : vector<1x16xf32> to vector<2x16xf32>
    %27 = arith.mulf %25, %26 : vector<2x16xf32>
    %cst_16 = arith.constant dense<0.000000e+00> : vector<2xf32>
    %28 = vector.multi_reduction <add>, %27, %cst_16 [1] : vector<2x16xf32> to vector<2xf32>
    %29 = vector.shape_cast %28 : vector<2xf32> to vector<2x1xf32>
    %30 = vector.broadcast %6 : vector<1x1xf32> to vector<2x1xf32>
    %31 = arith.addf %29, %30 : vector<2x1xf32>
    %32 = vector.broadcast %5 : vector<1x16xf32> to vector<2x16xf32>
    %33 = arith.mulf %16, %32 : vector<2x16xf32>
    %cst_17 = arith.constant dense<0.000000e+00> : vector<2xf32>
    %34 = vector.multi_reduction <add>, %33, %cst_17 [1] : vector<2x16xf32> to vector<2xf32>
    %35 = vector.shape_cast %34 : vector<2xf32> to vector<2x1xf32>
    %36 = vector.broadcast %6 : vector<1x1xf32> to vector<2x1xf32>
    %37 = arith.addf %35, %36 : vector<2x1xf32>
    %38 = vector.broadcast %5 : vector<1x16xf32> to vector<2x16xf32>
    %39 = arith.mulf %17, %38 : vector<2x16xf32>
    %cst_18 = arith.constant dense<0.000000e+00> : vector<2xf32>
    %40 = vector.multi_reduction <add>, %39, %cst_18 [1] : vector<2x16xf32> to vector<2xf32>
    %41 = vector.shape_cast %40 : vector<2xf32> to vector<2x1xf32>
    %42 = vector.broadcast %6 : vector<1x1xf32> to vector<2x1xf32>
    %43 = arith.addf %41, %42 : vector<2x1xf32>
    %44 = vector.broadcast %5 : vector<1x16xf32> to vector<2x16xf32>
    %45 = arith.mulf %18, %44 : vector<2x16xf32>
    %cst_19 = arith.constant dense<0.000000e+00> : vector<2xf32>
    %46 = vector.multi_reduction <add>, %45, %cst_19 [1] : vector<2x16xf32> to vector<2xf32>
    %47 = vector.shape_cast %46 : vector<2xf32> to vector<2x1xf32>
    %48 = vector.broadcast %6 : vector<1x1xf32> to vector<2x1xf32>
    %49 = arith.addf %47, %48 : vector<2x1xf32>
    %c16_20 = arith.constant 16 : index
    %c16_21 = arith.constant 16 : index
    %50 = vector.load %arg5[%c16_20, %c16_21] : memref<224x32xf32, #tpu.memory_space<vmem>>, vector<2x1xf32>
    %51 = arith.addf %50, %31 : vector<2x1xf32>
    %c32 = arith.constant 32 : index
    %c16_22 = arith.constant 16 : index
    %52 = vector.load %arg5[%c32, %c16_22] : memref<224x32xf32, #tpu.memory_space<vmem>>, vector<2x1xf32>
    %53 = arith.addf %52, %31 : vector<2x1xf32>
    %54 = tpu.concatenate %37, %43, %49, %51, %53 in 1 : vector<2x1xf32>, vector<2x1xf32>, vector<2x1xf32>, vector<2x1xf32>, vector<2x1xf32> -> vector<2x5xf32>
    %55 = math.tanh %54 : vector<2x5xf32>
    %cst_23 = arith.constant dense<0xFF800000> : vector<2xf32>
    %56 = vector.multi_reduction <maximumf>, %55, %cst_23 [1] : vector<2x5xf32> to vector<2xf32>
    %57 = vector.shape_cast %56 : vector<2xf32> to vector<2x1xf32>
    %58 = vector.broadcast %57 : vector<2x1xf32> to vector<2x5xf32>
    %59 = arith.subf %55, %58 : vector<2x5xf32>
    %60 = math.exp %59 : vector<2x5xf32>
    %cst_24 = arith.constant dense<0.000000e+00> : vector<2xf32>
    %61 = vector.multi_reduction <add>, %60, %cst_24 [1] : vector<2x5xf32> to vector<2xf32>
    %62 = vector.shape_cast %61 : vector<2xf32> to vector<2x1xf32>
    %63 = vector.broadcast %62 : vector<2x1xf32> to vector<2x5xf32>
    %64 = arith.divf %60, %63 : vector<2x5xf32>
    %c16_25 = arith.constant 16 : index
    %c0_26 = arith.constant 0 : index
    %65 = vector.load %arg5[%c16_25, %c0_26] : memref<224x32xf32, #tpu.memory_space<vmem>>, vector<2x16xf32>
    %66 = vector.extract_strided_slice %64 {offsets = [0, 3], sizes = [2, 1], strides = [1, 1]} : vector<2x5xf32> to vector<2x1xf32>
    %67 = vector.broadcast %66 : vector<2x1xf32> to vector<2x16xf32>
    %68 = arith.mulf %67, %25 : vector<2x16xf32>
    %69 = tpu.concatenate %19, %68 in 1 : vector<2x16xf32>, vector<2x16xf32> -> vector<2x32xf32>
    %70 = arith.truncf %69 : vector<2x32xf32> to vector<2x32xbf16>
    %cst_27 = arith.constant dense<0.000000e+00> : vector<2x16xf32>
    %71 = tpu.matmul %70, %9, %cst_27 {dimension_numbers = #tpu.dot_dimension_numbers<[1], [0], [0], [1], [0, 0, 1, 1], [], []>} : vector<2x32xbf16>, vector<32x16xbf16>, vector<2x16xf32> -> vector<2x16xf32>
    %72 = arith.addf %65, %71 : vector<2x16xf32>
    %73 = math.tanh %72 : vector<2x16xf32>
    %c32_28 = arith.constant 32 : index
    %c0_29 = arith.constant 0 : index
    %74 = vector.load %arg5[%c32_28, %c0_29] : memref<224x32xf32, #tpu.memory_space<vmem>>, vector<2x16xf32>
    %75 = arith.truncf %25 : vector<2x16xf32> to vector<2x16xbf16>
    %cst_30 = arith.constant dense<0.000000e+00> : vector<2x16xf32>
    %76 = tpu.matmul %75, %10, %cst_30 {dimension_numbers = #tpu.dot_dimension_numbers<[1], [0], [0], [1], [0, 0, 1, 1], [], []>} : vector<2x16xbf16>, vector<16x16xbf16>, vector<2x16xf32> -> vector<2x16xf32>
    %77 = arith.addf %74, %76 : vector<2x16xf32>
    %78 = math.tanh %77 : vector<2x16xf32>
    %79 = vector.broadcast %5 : vector<1x16xf32> to vector<2x16xf32>
    %80 = arith.mulf %78, %79 : vector<2x16xf32>
    %cst_31 = arith.constant dense<0.000000e+00> : vector<2xf32>
    %81 = vector.multi_reduction <add>, %80, %cst_31 [1] : vector<2x16xf32> to vector<2xf32>
    %82 = vector.shape_cast %81 : vector<2xf32> to vector<2x1xf32>
    %83 = vector.broadcast %6 : vector<1x1xf32> to vector<2x1xf32>
    %84 = arith.addf %82, %83 : vector<2x1xf32>
    %85 = vector.broadcast %5 : vector<1x16xf32> to vector<2x16xf32>
    %86 = arith.mulf %16, %85 : vector<2x16xf32>
    %cst_32 = arith.constant dense<0.000000e+00> : vector<2xf32>
    %87 = vector.multi_reduction <add>, %86, %cst_32 [1] : vector<2x16xf32> to vector<2xf32>
    %88 = vector.shape_cast %87 : vector<2xf32> to vector<2x1xf32>
    %89 = vector.broadcast %6 : vector<1x1xf32> to vector<2x1xf32>
    %90 = arith.addf %88, %89 : vector<2x1xf32>
    %91 = vector.broadcast %5 : vector<1x16xf32> to vector<2x16xf32>
    %92 = arith.mulf %17, %91 : vector<2x16xf32>
    %cst_33 = arith.constant dense<0.000000e+00> : vector<2xf32>
    %93 = vector.multi_reduction <add>, %92, %cst_33 [1] : vector<2x16xf32> to vector<2xf32>
    %94 = vector.shape_cast %93 : vector<2xf32> to vector<2x1xf32>
    %95 = vector.broadcast %6 : vector<1x1xf32> to vector<2x1xf32>
    %96 = arith.addf %94, %95 : vector<2x1xf32>
    %97 = vector.broadcast %5 : vector<1x16xf32> to vector<2x16xf32>
    %98 = arith.mulf %18, %97 : vector<2x16xf32>
    %cst_34 = arith.constant dense<0.000000e+00> : vector<2xf32>
    %99 = vector.multi_reduction <add>, %98, %cst_34 [1] : vector<2x16xf32> to vector<2xf32>
    %100 = vector.shape_cast %99 : vector<2xf32> to vector<2x1xf32>
    %101 = vector.broadcast %6 : vector<1x1xf32> to vector<2x1xf32>
    %102 = arith.addf %100, %101 : vector<2x1xf32>
    %c48 = arith.constant 48 : index
    %c16_35 = arith.constant 16 : index
    %103 = vector.load %arg5[%c48, %c16_35] : memref<224x32xf32, #tpu.memory_space<vmem>>, vector<2x1xf32>
    %104 = arith.addf %103, %84 : vector<2x1xf32>
    %c64 = arith.constant 64 : index
    %c16_36 = arith.constant 16 : index
    %105 = vector.load %arg5[%c64, %c16_36] : memref<224x32xf32, #tpu.memory_space<vmem>>, vector<2x1xf32>
    %106 = arith.addf %105, %84 : vector<2x1xf32>
    %107 = tpu.concatenate %90, %96, %102, %104, %106 in 1 : vector<2x1xf32>, vector<2x1xf32>, vector<2x1xf32>, vector<2x1xf32>, vector<2x1xf32> -> vector<2x5xf32>
    %108 = math.tanh %107 : vector<2x5xf32>
    %cst_37 = arith.constant dense<0xFF800000> : vector<2xf32>
    %109 = vector.multi_reduction <maximumf>, %108, %cst_37 [1] : vector<2x5xf32> to vector<2xf32>
    %110 = vector.shape_cast %109 : vector<2xf32> to vector<2x1xf32>
    %111 = vector.broadcast %110 : vector<2x1xf32> to vector<2x5xf32>
    %112 = arith.subf %108, %111 : vector<2x5xf32>
    %113 = math.exp %112 : vector<2x5xf32>
    %cst_38 = arith.constant dense<0.000000e+00> : vector<2xf32>
    %114 = vector.multi_reduction <add>, %113, %cst_38 [1] : vector<2x5xf32> to vector<2xf32>
    %115 = vector.shape_cast %114 : vector<2xf32> to vector<2x1xf32>
    %116 = vector.broadcast %115 : vector<2x1xf32> to vector<2x5xf32>
    %117 = arith.divf %113, %116 : vector<2x5xf32>
    %c48_39 = arith.constant 48 : index
    %c0_40 = arith.constant 0 : index
    %118 = vector.load %arg5[%c48_39, %c0_40] : memref<224x32xf32, #tpu.memory_space<vmem>>, vector<2x16xf32>
    %119 = vector.extract_strided_slice %117 {offsets = [0, 3], sizes = [2, 1], strides = [1, 1]} : vector<2x5xf32> to vector<2x1xf32>
    %120 = vector.broadcast %119 : vector<2x1xf32> to vector<2x16xf32>
    %121 = arith.mulf %120, %78 : vector<2x16xf32>
    %122 = tpu.concatenate %73, %121 in 1 : vector<2x16xf32>, vector<2x16xf32> -> vector<2x32xf32>
    %123 = arith.truncf %122 : vector<2x32xf32> to vector<2x32xbf16>
    %cst_41 = arith.constant dense<0.000000e+00> : vector<2x16xf32>
    %124 = tpu.matmul %123, %9, %cst_41 {dimension_numbers = #tpu.dot_dimension_numbers<[1], [0], [0], [1], [0, 0, 1, 1], [], []>} : vector<2x32xbf16>, vector<32x16xbf16>, vector<2x16xf32> -> vector<2x16xf32>
    %125 = arith.addf %118, %124 : vector<2x16xf32>
    %126 = math.tanh %125 : vector<2x16xf32>
    %c64_42 = arith.constant 64 : index
    %c0_43 = arith.constant 0 : index
    %127 = vector.load %arg5[%c64_42, %c0_43] : memref<224x32xf32, #tpu.memory_space<vmem>>, vector<2x16xf32>
    %128 = arith.truncf %78 : vector<2x16xf32> to vector<2x16xbf16>
    %cst_44 = arith.constant dense<0.000000e+00> : vector<2x16xf32>
    %129 = tpu.matmul %128, %10, %cst_44 {dimension_numbers = #tpu.dot_dimension_numbers<[1], [0], [0], [1], [0, 0, 1, 1], [], []>} : vector<2x16xbf16>, vector<16x16xbf16>, vector<2x16xf32> -> vector<2x16xf32>
    %130 = arith.addf %127, %129 : vector<2x16xf32>
    %131 = math.tanh %130 : vector<2x16xf32>
    %132 = vector.broadcast %5 : vector<1x16xf32> to vector<2x16xf32>
    %133 = arith.mulf %131, %132 : vector<2x16xf32>
    %cst_45 = arith.constant dense<0.000000e+00> : vector<2xf32>
    %134 = vector.multi_reduction <add>, %133, %cst_45 [1] : vector<2x16xf32> to vector<2xf32>
    %135 = vector.shape_cast %134 : vector<2xf32> to vector<2x1xf32>
    %136 = vector.broadcast %6 : vector<1x1xf32> to vector<2x1xf32>
    %137 = arith.addf %135, %136 : vector<2x1xf32>
    %138 = vector.broadcast %5 : vector<1x16xf32> to vector<2x16xf32>
    %139 = arith.mulf %16, %138 : vector<2x16xf32>
    %cst_46 = arith.constant dense<0.000000e+00> : vector<2xf32>
    %140 = vector.multi_reduction <add>, %139, %cst_46 [1] : vector<2x16xf32> to vector<2xf32>
    %141 = vector.shape_cast %140 : vector<2xf32> to vector<2x1xf32>
    %142 = vector.broadcast %6 : vector<1x1xf32> to vector<2x1xf32>
    %143 = arith.addf %141, %142 : vector<2x1xf32>
    %144 = vector.broadcast %5 : vector<1x16xf32> to vector<2x16xf32>
    %145 = arith.mulf %17, %144 : vector<2x16xf32>
    %cst_47 = arith.constant dense<0.000000e+00> : vector<2xf32>
    %146 = vector.multi_reduction <add>, %145, %cst_47 [1] : vector<2x16xf32> to vector<2xf32>
    %147 = vector.shape_cast %146 : vector<2xf32> to vector<2x1xf32>
    %148 = vector.broadcast %6 : vector<1x1xf32> to vector<2x1xf32>
    %149 = arith.addf %147, %148 : vector<2x1xf32>
    %150 = vector.broadcast %5 : vector<1x16xf32> to vector<2x16xf32>
    %151 = arith.mulf %18, %150 : vector<2x16xf32>
    %cst_48 = arith.constant dense<0.000000e+00> : vector<2xf32>
    %152 = vector.multi_reduction <add>, %151, %cst_48 [1] : vector<2x16xf32> to vector<2xf32>
    %153 = vector.shape_cast %152 : vector<2xf32> to vector<2x1xf32>
    %154 = vector.broadcast %6 : vector<1x1xf32> to vector<2x1xf32>
    %155 = arith.addf %153, %154 : vector<2x1xf32>
    %c80 = arith.constant 80 : index
    %c16_49 = arith.constant 16 : index
    %156 = vector.load %arg5[%c80, %c16_49] : memref<224x32xf32, #tpu.memory_space<vmem>>, vector<2x1xf32>
    %157 = arith.addf %156, %137 : vector<2x1xf32>
    %c96 = arith.constant 96 : index
    %c16_50 = arith.constant 16 : index
    %158 = vector.load %arg5[%c96, %c16_50] : memref<224x32xf32, #tpu.memory_space<vmem>>, vector<2x1xf32>
    %159 = arith.addf %158, %137 : vector<2x1xf32>
    %160 = tpu.concatenate %143, %149, %155, %157, %159 in 1 : vector<2x1xf32>, vector<2x1xf32>, vector<2x1xf32>, vector<2x1xf32>, vector<2x1xf32> -> vector<2x5xf32>
    %161 = math.tanh %160 : vector<2x5xf32>
    %cst_51 = arith.constant dense<0xFF800000> : vector<2xf32>
    %162 = vector.multi_reduction <maximumf>, %161, %cst_51 [1] : vector<2x5xf32> to vector<2xf32>
    %163 = vector.shape_cast %162 : vector<2xf32> to vector<2x1xf32>
    %164 = vector.broadcast %163 : vector<2x1xf32> to vector<2x5xf32>
    %165 = arith.subf %161, %164 : vector<2x5xf32>
    %166 = math.exp %165 : vector<2x5xf32>
    %cst_52 = arith.constant dense<0.000000e+00> : vector<2xf32>
    %167 = vector.multi_reduction <add>, %166, %cst_52 [1] : vector<2x5xf32> to vector<2xf32>
    %168 = vector.shape_cast %167 : vector<2xf32> to vector<2x1xf32>
    %169 = vector.broadcast %168 : vector<2x1xf32> to vector<2x5xf32>
    %170 = arith.divf %166, %169 : vector<2x5xf32>
    %c80_53 = arith.constant 80 : index
    %c0_54 = arith.constant 0 : index
    %171 = vector.load %arg5[%c80_53, %c0_54] : memref<224x32xf32, #tpu.memory_space<vmem>>, vector<2x16xf32>
    %172 = vector.extract_strided_slice %170 {offsets = [0, 3], sizes = [2, 1], strides = [1, 1]} : vector<2x5xf32> to vector<2x1xf32>
    %173 = vector.broadcast %172 : vector<2x1xf32> to vector<2x16xf32>
    %174 = arith.mulf %173, %131 : vector<2x16xf32>
    %175 = tpu.concatenate %126, %174 in 1 : vector<2x16xf32>, vector<2x16xf32> -> vector<2x32xf32>
    %176 = arith.truncf %175 : vector<2x32xf32> to vector<2x32xbf16>
    %cst_55 = arith.constant dense<0.000000e+00> : vector<2x16xf32>
    %177 = tpu.matmul %176, %9, %cst_55 {dimension_numbers = #tpu.dot_dimension_numbers<[1], [0], [0], [1], [0, 0, 1, 1], [], []>} : vector<2x32xbf16>, vector<32x16xbf16>, vector<2x16xf32> -> vector<2x16xf32>
    %178 = arith.addf %171, %177 : vector<2x16xf32>
    %179 = math.tanh %178 : vector<2x16xf32>
    %c96_56 = arith.constant 96 : index
    %c0_57 = arith.constant 0 : index
    %180 = vector.load %arg5[%c96_56, %c0_57] : memref<224x32xf32, #tpu.memory_space<vmem>>, vector<2x16xf32>
    %181 = arith.truncf %131 : vector<2x16xf32> to vector<2x16xbf16>
    %cst_58 = arith.constant dense<0.000000e+00> : vector<2x16xf32>
    %182 = tpu.matmul %181, %10, %cst_58 {dimension_numbers = #tpu.dot_dimension_numbers<[1], [0], [0], [1], [0, 0, 1, 1], [], []>} : vector<2x16xbf16>, vector<16x16xbf16>, vector<2x16xf32> -> vector<2x16xf32>
    %183 = arith.addf %180, %182 : vector<2x16xf32>
    %184 = math.tanh %183 : vector<2x16xf32>
    %185 = vector.broadcast %5 : vector<1x16xf32> to vector<2x16xf32>
    %186 = arith.mulf %184, %185 : vector<2x16xf32>
    %cst_59 = arith.constant dense<0.000000e+00> : vector<2xf32>
    %187 = vector.multi_reduction <add>, %186, %cst_59 [1] : vector<2x16xf32> to vector<2xf32>
    %188 = vector.shape_cast %187 : vector<2xf32> to vector<2x1xf32>
    %189 = vector.broadcast %6 : vector<1x1xf32> to vector<2x1xf32>
    %190 = arith.addf %188, %189 : vector<2x1xf32>
    %191 = vector.broadcast %5 : vector<1x16xf32> to vector<2x16xf32>
    %192 = arith.mulf %16, %191 : vector<2x16xf32>
    %cst_60 = arith.constant dense<0.000000e+00> : vector<2xf32>
    %193 = vector.multi_reduction <add>, %192, %cst_60 [1] : vector<2x16xf32> to vector<2xf32>
    %194 = vector.shape_cast %193 : vector<2xf32> to vector<2x1xf32>
    %195 = vector.broadcast %6 : vector<1x1xf32> to vector<2x1xf32>
    %196 = arith.addf %194, %195 : vector<2x1xf32>
    %197 = vector.broadcast %5 : vector<1x16xf32> to vector<2x16xf32>
    %198 = arith.mulf %17, %197 : vector<2x16xf32>
    %cst_61 = arith.constant dense<0.000000e+00> : vector<2xf32>
    %199 = vector.multi_reduction <add>, %198, %cst_61 [1] : vector<2x16xf32> to vector<2xf32>
    %200 = vector.shape_cast %199 : vector<2xf32> to vector<2x1xf32>
    %201 = vector.broadcast %6 : vector<1x1xf32> to vector<2x1xf32>
    %202 = arith.addf %200, %201 : vector<2x1xf32>
    %203 = vector.broadcast %5 : vector<1x16xf32> to vector<2x16xf32>
    %204 = arith.mulf %18, %203 : vector<2x16xf32>
    %cst_62 = arith.constant dense<0.000000e+00> : vector<2xf32>
    %205 = vector.multi_reduction <add>, %204, %cst_62 [1] : vector<2x16xf32> to vector<2xf32>
    %206 = vector.shape_cast %205 : vector<2xf32> to vector<2x1xf32>
    %207 = vector.broadcast %6 : vector<1x1xf32> to vector<2x1xf32>
    %208 = arith.addf %206, %207 : vector<2x1xf32>
    %c112 = arith.constant 112 : index
    %c16_63 = arith.constant 16 : index
    %209 = vector.load %arg5[%c112, %c16_63] : memref<224x32xf32, #tpu.memory_space<vmem>>, vector<2x1xf32>
    %210 = arith.addf %209, %190 : vector<2x1xf32>
    %c128 = arith.constant 128 : index
    %c16_64 = arith.constant 16 : index
    %211 = vector.load %arg5[%c128, %c16_64] : memref<224x32xf32, #tpu.memory_space<vmem>>, vector<2x1xf32>
    %212 = arith.addf %211, %190 : vector<2x1xf32>
    %213 = tpu.concatenate %196, %202, %208, %210, %212 in 1 : vector<2x1xf32>, vector<2x1xf32>, vector<2x1xf32>, vector<2x1xf32>, vector<2x1xf32> -> vector<2x5xf32>
    %214 = math.tanh %213 : vector<2x5xf32>
    %cst_65 = arith.constant dense<0xFF800000> : vector<2xf32>
    %215 = vector.multi_reduction <maximumf>, %214, %cst_65 [1] : vector<2x5xf32> to vector<2xf32>
    %216 = vector.shape_cast %215 : vector<2xf32> to vector<2x1xf32>
    %217 = vector.broadcast %216 : vector<2x1xf32> to vector<2x5xf32>
    %218 = arith.subf %214, %217 : vector<2x5xf32>
    %219 = math.exp %218 : vector<2x5xf32>
    %cst_66 = arith.constant dense<0.000000e+00> : vector<2xf32>
    %220 = vector.multi_reduction <add>, %219, %cst_66 [1] : vector<2x5xf32> to vector<2xf32>
    %221 = vector.shape_cast %220 : vector<2xf32> to vector<2x1xf32>
    %222 = vector.broadcast %221 : vector<2x1xf32> to vector<2x5xf32>
    %223 = arith.divf %219, %222 : vector<2x5xf32>
    %c112_67 = arith.constant 112 : index
    %c0_68 = arith.constant 0 : index
    %224 = vector.load %arg5[%c112_67, %c0_68] : memref<224x32xf32, #tpu.memory_space<vmem>>, vector<2x16xf32>
    %225 = vector.extract_strided_slice %223 {offsets = [0, 3], sizes = [2, 1], strides = [1, 1]} : vector<2x5xf32> to vector<2x1xf32>
    %226 = vector.broadcast %225 : vector<2x1xf32> to vector<2x16xf32>
    %227 = arith.mulf %226, %184 : vector<2x16xf32>
    %228 = tpu.concatenate %179, %227 in 1 : vector<2x16xf32>, vector<2x16xf32> -> vector<2x32xf32>
    %229 = arith.truncf %228 : vector<2x32xf32> to vector<2x32xbf16>
    %cst_69 = arith.constant dense<0.000000e+00> : vector<2x16xf32>
    %230 = tpu.matmul %229, %9, %cst_69 {dimension_numbers = #tpu.dot_dimension_numbers<[1], [0], [0], [1], [0, 0, 1, 1], [], []>} : vector<2x32xbf16>, vector<32x16xbf16>, vector<2x16xf32> -> vector<2x16xf32>
    %231 = arith.addf %224, %230 : vector<2x16xf32>
    %232 = math.tanh %231 : vector<2x16xf32>
    %233 = vector.broadcast %5 : vector<1x16xf32> to vector<2x16xf32>
    %234 = arith.mulf %232, %233 : vector<2x16xf32>
    %cst_70 = arith.constant dense<0.000000e+00> : vector<2xf32>
    %235 = vector.multi_reduction <add>, %234, %cst_70 [1] : vector<2x16xf32> to vector<2xf32>
    %236 = vector.shape_cast %235 : vector<2xf32> to vector<2x1xf32>
    %237 = vector.broadcast %6 : vector<1x1xf32> to vector<2x1xf32>
    %238 = arith.addf %236, %237 : vector<2x1xf32>
    %239 = vector.broadcast %5 : vector<1x16xf32> to vector<2x16xf32>
    %240 = arith.mulf %16, %239 : vector<2x16xf32>
    %cst_71 = arith.constant dense<0.000000e+00> : vector<2xf32>
    %241 = vector.multi_reduction <add>, %240, %cst_71 [1] : vector<2x16xf32> to vector<2xf32>
    %242 = vector.shape_cast %241 : vector<2xf32> to vector<2x1xf32>
    %243 = vector.broadcast %6 : vector<1x1xf32> to vector<2x1xf32>
    %244 = arith.addf %242, %243 : vector<2x1xf32>
    %245 = vector.broadcast %5 : vector<1x16xf32> to vector<2x16xf32>
    %246 = arith.mulf %17, %245 : vector<2x16xf32>
    %cst_72 = arith.constant dense<0.000000e+00> : vector<2xf32>
    %247 = vector.multi_reduction <add>, %246, %cst_72 [1] : vector<2x16xf32> to vector<2xf32>
    %248 = vector.shape_cast %247 : vector<2xf32> to vector<2x1xf32>
    %249 = vector.broadcast %6 : vector<1x1xf32> to vector<2x1xf32>
    %250 = arith.addf %248, %249 : vector<2x1xf32>
    %c120 = arith.constant 120 : index
    %c16_73 = arith.constant 16 : index
    %251 = vector.load %arg5[%c120, %c16_73] : memref<224x32xf32, #tpu.memory_space<vmem>>, vector<2x1xf32>
    %252 = arith.addf %251, %238 : vector<2x1xf32>
    %c144 = arith.constant 144 : index
    %c16_74 = arith.constant 16 : index
    %253 = vector.load %arg5[%c144, %c16_74] : memref<224x32xf32, #tpu.memory_space<vmem>>, vector<2x1xf32>
    %254 = arith.addf %253, %238 : vector<2x1xf32>
    %255 = vector.broadcast %5 : vector<1x16xf32> to vector<2x16xf32>
    %256 = arith.mulf %184, %255 : vector<2x16xf32>
    %cst_75 = arith.constant dense<0.000000e+00> : vector<2xf32>
    %257 = vector.multi_reduction <add>, %256, %cst_75 [1] : vector<2x16xf32> to vector<2xf32>
    %258 = vector.shape_cast %257 : vector<2xf32> to vector<2x1xf32>
    %259 = vector.broadcast %6 : vector<1x1xf32> to vector<2x1xf32>
    %260 = arith.addf %258, %259 : vector<2x1xf32>
    %261 = tpu.concatenate %244, %250, %252, %254, %260 in 1 : vector<2x1xf32>, vector<2x1xf32>, vector<2x1xf32>, vector<2x1xf32>, vector<2x1xf32> -> vector<2x5xf32>
    %262 = math.tanh %261 : vector<2x5xf32>
    %cst_76 = arith.constant dense<0xFF800000> : vector<2xf32>
    %263 = vector.multi_reduction <maximumf>, %262, %cst_76 [1] : vector<2x5xf32> to vector<2xf32>
    %264 = vector.shape_cast %263 : vector<2xf32> to vector<2x1xf32>
    %265 = vector.broadcast %264 : vector<2x1xf32> to vector<2x5xf32>
    %266 = arith.subf %262, %265 : vector<2x5xf32>
    %267 = math.exp %266 : vector<2x5xf32>
    %cst_77 = arith.constant dense<0.000000e+00> : vector<2xf32>
    %268 = vector.multi_reduction <add>, %267, %cst_77 [1] : vector<2x5xf32> to vector<2xf32>
    %269 = vector.shape_cast %268 : vector<2xf32> to vector<2x1xf32>
    %270 = vector.broadcast %269 : vector<2x1xf32> to vector<2x5xf32>
    %271 = arith.divf %267, %270 : vector<2x5xf32>
    %c120_78 = arith.constant 120 : index
    %c0_79 = arith.constant 0 : index
    %272 = vector.load %arg5[%c120_78, %c0_79] : memref<224x32xf32, #tpu.memory_space<vmem>>, vector<2x16xf32>
    %273 = vector.extract_strided_slice %271 {offsets = [0, 2], sizes = [2, 1], strides = [1, 1]} : vector<2x5xf32> to vector<2x1xf32>
    %274 = vector.broadcast %273 : vector<2x1xf32> to vector<2x16xf32>
    %275 = arith.mulf %274, %232 : vector<2x16xf32>
    %276 = tpu.concatenate %18, %275 in 1 : vector<2x16xf32>, vector<2x16xf32> -> vector<2x32xf32>
    %277 = arith.truncf %276 : vector<2x32xf32> to vector<2x32xbf16>
    %cst_80 = arith.constant dense<0.000000e+00> : vector<2x16xf32>
    %278 = tpu.matmul %277, %9, %cst_80 {dimension_numbers = #tpu.dot_dimension_numbers<[1], [0], [0], [1], [0, 0, 1, 1], [], []>} : vector<2x32xbf16>, vector<32x16xbf16>, vector<2x16xf32> -> vector<2x16xf32>
    %279 = arith.addf %272, %278 : vector<2x16xf32>
    %280 = math.tanh %279 : vector<2x16xf32>
    %c128_81 = arith.constant 128 : index
    %c0_82 = arith.constant 0 : index
    %281 = vector.load %arg5[%c128_81, %c0_82] : memref<224x32xf32, #tpu.memory_space<vmem>>, vector<2x16xf32>
    %282 = arith.truncf %184 : vector<2x16xf32> to vector<2x16xbf16>
    %cst_83 = arith.constant dense<0.000000e+00> : vector<2x16xf32>
    %283 = tpu.matmul %282, %10, %cst_83 {dimension_numbers = #tpu.dot_dimension_numbers<[1], [0], [0], [1], [0, 0, 1, 1], [], []>} : vector<2x16xbf16>, vector<16x16xbf16>, vector<2x16xf32> -> vector<2x16xf32>
    %284 = arith.addf %281, %283 : vector<2x16xf32>
    %285 = math.tanh %284 : vector<2x16xf32>
    %286 = vector.broadcast %5 : vector<1x16xf32> to vector<2x16xf32>
    %287 = arith.mulf %285, %286 : vector<2x16xf32>
    %cst_84 = arith.constant dense<0.000000e+00> : vector<2xf32>
    %288 = vector.multi_reduction <add>, %287, %cst_84 [1] : vector<2x16xf32> to vector<2xf32>
    %289 = vector.shape_cast %288 : vector<2xf32> to vector<2x1xf32>
    %290 = vector.broadcast %6 : vector<1x1xf32> to vector<2x1xf32>
    %291 = arith.addf %289, %290 : vector<2x1xf32>
    %292 = vector.broadcast %5 : vector<1x16xf32> to vector<2x16xf32>
    %293 = arith.mulf %16, %292 : vector<2x16xf32>
    %cst_85 = arith.constant dense<0.000000e+00> : vector<2xf32>
    %294 = vector.multi_reduction <add>, %293, %cst_85 [1] : vector<2x16xf32> to vector<2xf32>
    %295 = vector.shape_cast %294 : vector<2xf32> to vector<2x1xf32>
    %296 = vector.broadcast %6 : vector<1x1xf32> to vector<2x1xf32>
    %297 = arith.addf %295, %296 : vector<2x1xf32>
    %298 = vector.broadcast %5 : vector<1x16xf32> to vector<2x16xf32>
    %299 = arith.mulf %17, %298 : vector<2x16xf32>
    %cst_86 = arith.constant dense<0.000000e+00> : vector<2xf32>
    %300 = vector.multi_reduction <add>, %299, %cst_86 [1] : vector<2x16xf32> to vector<2xf32>
    %301 = vector.shape_cast %300 : vector<2xf32> to vector<2x1xf32>
    %302 = vector.broadcast %6 : vector<1x1xf32> to vector<2x1xf32>
    %303 = arith.addf %301, %302 : vector<2x1xf32>
    %c136 = arith.constant 136 : index
    %c16_87 = arith.constant 16 : index
    %304 = vector.load %arg5[%c136, %c16_87] : memref<224x32xf32, #tpu.memory_space<vmem>>, vector<2x1xf32>
    %305 = arith.addf %304, %291 : vector<2x1xf32>
    %c144_88 = arith.constant 144 : index
    %c16_89 = arith.constant 16 : index
    %306 = vector.load %arg5[%c144_88, %c16_89] : memref<224x32xf32, #tpu.memory_space<vmem>>, vector<2x1xf32>
    %307 = arith.addf %306, %291 : vector<2x1xf32>
    %c160 = arith.constant 160 : index
    %c16_90 = arith.constant 16 : index
    %308 = vector.load %arg5[%c160, %c16_90] : memref<224x32xf32, #tpu.memory_space<vmem>>, vector<2x1xf32>
    %309 = arith.addf %308, %291 : vector<2x1xf32>
    %310 = tpu.concatenate %297, %303, %305, %307, %309 in 1 : vector<2x1xf32>, vector<2x1xf32>, vector<2x1xf32>, vector<2x1xf32>, vector<2x1xf32> -> vector<2x5xf32>
    %311 = math.tanh %310 : vector<2x5xf32>
    %cst_91 = arith.constant dense<0xFF800000> : vector<2xf32>
    %312 = vector.multi_reduction <maximumf>, %311, %cst_91 [1] : vector<2x5xf32> to vector<2xf32>
    %313 = vector.shape_cast %312 : vector<2xf32> to vector<2x1xf32>
    %314 = vector.broadcast %313 : vector<2x1xf32> to vector<2x5xf32>
    %315 = arith.subf %311, %314 : vector<2x5xf32>
    %316 = math.exp %315 : vector<2x5xf32>
    %cst_92 = arith.constant dense<0.000000e+00> : vector<2xf32>
    %317 = vector.multi_reduction <add>, %316, %cst_92 [1] : vector<2x5xf32> to vector<2xf32>
    %318 = vector.shape_cast %317 : vector<2xf32> to vector<2x1xf32>
    %319 = vector.broadcast %318 : vector<2x1xf32> to vector<2x5xf32>
    %320 = arith.divf %316, %319 : vector<2x5xf32>
    %c136_93 = arith.constant 136 : index
    %c0_94 = arith.constant 0 : index
    %321 = vector.load %arg5[%c136_93, %c0_94] : memref<224x32xf32, #tpu.memory_space<vmem>>, vector<2x16xf32>
    %322 = vector.extract_strided_slice %320 {offsets = [0, 2], sizes = [2, 1], strides = [1, 1]} : vector<2x5xf32> to vector<2x1xf32>
    %323 = vector.broadcast %322 : vector<2x1xf32> to vector<2x16xf32>
    %324 = arith.mulf %323, %285 : vector<2x16xf32>
    %325 = tpu.concatenate %280, %324 in 1 : vector<2x16xf32>, vector<2x16xf32> -> vector<2x32xf32>
    %326 = arith.truncf %325 : vector<2x32xf32> to vector<2x32xbf16>
    %cst_95 = arith.constant dense<0.000000e+00> : vector<2x16xf32>
    %327 = tpu.matmul %326, %9, %cst_95 {dimension_numbers = #tpu.dot_dimension_numbers<[1], [0], [0], [1], [0, 0, 1, 1], [], []>} : vector<2x32xbf16>, vector<32x16xbf16>, vector<2x16xf32> -> vector<2x16xf32>
    %328 = arith.addf %321, %327 : vector<2x16xf32>
    %329 = math.tanh %328 : vector<2x16xf32>
    %cst_96 = arith.constant 2.000000e-01 : f32
    %330 = vector.broadcast %cst_96 : f32 to vector<2x5xf32>
    %c144_97 = arith.constant 144 : index
    %c0_98 = arith.constant 0 : index
    %331 = vector.load %arg5[%c144_97, %c0_98] : memref<224x32xf32, #tpu.memory_space<vmem>>, vector<2x16xf32>
    %332 = vector.extract_strided_slice %330 {offsets = [0, 3], sizes = [2, 1], strides = [1, 1]} : vector<2x5xf32> to vector<2x1xf32>
    %333 = vector.broadcast %332 : vector<2x1xf32> to vector<2x16xf32>
    %334 = arith.mulf %333, %285 : vector<2x16xf32>
    %335 = tpu.concatenate %232, %334 in 1 : vector<2x16xf32>, vector<2x16xf32> -> vector<2x32xf32>
    %336 = arith.truncf %335 : vector<2x32xf32> to vector<2x32xbf16>
    %cst_99 = arith.constant dense<0.000000e+00> : vector<2x16xf32>
    %337 = tpu.matmul %336, %9, %cst_99 {dimension_numbers = #tpu.dot_dimension_numbers<[1], [0], [0], [1], [0, 0, 1, 1], [], []>} : vector<2x32xbf16>, vector<32x16xbf16>, vector<2x16xf32> -> vector<2x16xf32>
    %338 = arith.addf %331, %337 : vector<2x16xf32>
    %339 = math.tanh %338 : vector<2x16xf32>
    %340 = vector.broadcast %5 : vector<1x16xf32> to vector<2x16xf32>
    %341 = arith.mulf %339, %340 : vector<2x16xf32>
    %cst_100 = arith.constant dense<0.000000e+00> : vector<2xf32>
    %342 = vector.multi_reduction <add>, %341, %cst_100 [1] : vector<2x16xf32> to vector<2xf32>
    %343 = vector.shape_cast %342 : vector<2xf32> to vector<2x1xf32>
    %344 = vector.broadcast %6 : vector<1x1xf32> to vector<2x1xf32>
    %345 = arith.addf %343, %344 : vector<2x1xf32>
    %346 = vector.broadcast %5 : vector<1x16xf32> to vector<2x16xf32>
    %347 = arith.mulf %16, %346 : vector<2x16xf32>
    %cst_101 = arith.constant dense<0.000000e+00> : vector<2xf32>
    %348 = vector.multi_reduction <add>, %347, %cst_101 [1] : vector<2x16xf32> to vector<2xf32>
    %349 = vector.shape_cast %348 : vector<2xf32> to vector<2x1xf32>
    %350 = vector.broadcast %6 : vector<1x1xf32> to vector<2x1xf32>
    %351 = arith.addf %349, %350 : vector<2x1xf32>
    %352 = vector.broadcast %5 : vector<1x16xf32> to vector<2x16xf32>
    %353 = arith.mulf %17, %352 : vector<2x16xf32>
    %cst_102 = arith.constant dense<0.000000e+00> : vector<2xf32>
    %354 = vector.multi_reduction <add>, %353, %cst_102 [1] : vector<2x16xf32> to vector<2xf32>
    %355 = vector.shape_cast %354 : vector<2xf32> to vector<2x1xf32>
    %356 = vector.broadcast %6 : vector<1x1xf32> to vector<2x1xf32>
    %357 = arith.addf %355, %356 : vector<2x1xf32>
    %c152 = arith.constant 152 : index
    %c16_103 = arith.constant 16 : index
    %358 = vector.load %arg5[%c152, %c16_103] : memref<224x32xf32, #tpu.memory_space<vmem>>, vector<2x1xf32>
    %359 = arith.addf %358, %345 : vector<2x1xf32>
    %c176 = arith.constant 176 : index
    %c16_104 = arith.constant 16 : index
    %360 = vector.load %arg5[%c176, %c16_104] : memref<224x32xf32, #tpu.memory_space<vmem>>, vector<2x1xf32>
    %361 = arith.addf %360, %345 : vector<2x1xf32>
    %362 = vector.broadcast %5 : vector<1x16xf32> to vector<2x16xf32>
    %363 = arith.mulf %285, %362 : vector<2x16xf32>
    %cst_105 = arith.constant dense<0.000000e+00> : vector<2xf32>
    %364 = vector.multi_reduction <add>, %363, %cst_105 [1] : vector<2x16xf32> to vector<2xf32>
    %365 = vector.shape_cast %364 : vector<2xf32> to vector<2x1xf32>
    %366 = vector.broadcast %6 : vector<1x1xf32> to vector<2x1xf32>
    %367 = arith.addf %365, %366 : vector<2x1xf32>
    %368 = tpu.concatenate %351, %357, %359, %361, %367 in 1 : vector<2x1xf32>, vector<2x1xf32>, vector<2x1xf32>, vector<2x1xf32>, vector<2x1xf32> -> vector<2x5xf32>
    %369 = math.tanh %368 : vector<2x5xf32>
    %cst_106 = arith.constant dense<0xFF800000> : vector<2xf32>
    %370 = vector.multi_reduction <maximumf>, %369, %cst_106 [1] : vector<2x5xf32> to vector<2xf32>
    %371 = vector.shape_cast %370 : vector<2xf32> to vector<2x1xf32>
    %372 = vector.broadcast %371 : vector<2x1xf32> to vector<2x5xf32>
    %373 = arith.subf %369, %372 : vector<2x5xf32>
    %374 = math.exp %373 : vector<2x5xf32>
    %cst_107 = arith.constant dense<0.000000e+00> : vector<2xf32>
    %375 = vector.multi_reduction <add>, %374, %cst_107 [1] : vector<2x5xf32> to vector<2xf32>
    %376 = vector.shape_cast %375 : vector<2xf32> to vector<2x1xf32>
    %377 = vector.broadcast %376 : vector<2x1xf32> to vector<2x5xf32>
    %378 = arith.divf %374, %377 : vector<2x5xf32>
    %c152_108 = arith.constant 152 : index
    %c0_109 = arith.constant 0 : index
    %379 = vector.load %arg5[%c152_108, %c0_109] : memref<224x32xf32, #tpu.memory_space<vmem>>, vector<2x16xf32>
    %380 = vector.extract_strided_slice %378 {offsets = [0, 2], sizes = [2, 1], strides = [1, 1]} : vector<2x5xf32> to vector<2x1xf32>
    %381 = vector.broadcast %380 : vector<2x1xf32> to vector<2x16xf32>
    %382 = arith.mulf %381, %339 : vector<2x16xf32>
    %383 = tpu.concatenate %329, %382 in 1 : vector<2x16xf32>, vector<2x16xf32> -> vector<2x32xf32>
    %384 = arith.truncf %383 : vector<2x32xf32> to vector<2x32xbf16>
    %cst_110 = arith.constant dense<0.000000e+00> : vector<2x16xf32>
    %385 = tpu.matmul %384, %9, %cst_110 {dimension_numbers = #tpu.dot_dimension_numbers<[1], [0], [0], [1], [0, 0, 1, 1], [], []>} : vector<2x32xbf16>, vector<32x16xbf16>, vector<2x16xf32> -> vector<2x16xf32>
    %386 = arith.addf %379, %385 : vector<2x16xf32>
    %387 = math.tanh %386 : vector<2x16xf32>
    %c160_111 = arith.constant 160 : index
    %c0_112 = arith.constant 0 : index
    %388 = vector.load %arg5[%c160_111, %c0_112] : memref<224x32xf32, #tpu.memory_space<vmem>>, vector<2x16xf32>
    %389 = arith.truncf %285 : vector<2x16xf32> to vector<2x16xbf16>
    %cst_113 = arith.constant dense<0.000000e+00> : vector<2x16xf32>
    %390 = tpu.matmul %389, %10, %cst_113 {dimension_numbers = #tpu.dot_dimension_numbers<[1], [0], [0], [1], [0, 0, 1, 1], [], []>} : vector<2x16xbf16>, vector<16x16xbf16>, vector<2x16xf32> -> vector<2x16xf32>
    %391 = arith.addf %388, %390 : vector<2x16xf32>
    %392 = math.tanh %391 : vector<2x16xf32>
    %393 = vector.broadcast %5 : vector<1x16xf32> to vector<2x16xf32>
    %394 = arith.mulf %392, %393 : vector<2x16xf32>
    %cst_114 = arith.constant dense<0.000000e+00> : vector<2xf32>
    %395 = vector.multi_reduction <add>, %394, %cst_114 [1] : vector<2x16xf32> to vector<2xf32>
    %396 = vector.shape_cast %395 : vector<2xf32> to vector<2x1xf32>
    %397 = vector.broadcast %6 : vector<1x1xf32> to vector<2x1xf32>
    %398 = arith.addf %396, %397 : vector<2x1xf32>
    %399 = vector.broadcast %5 : vector<1x16xf32> to vector<2x16xf32>
    %400 = arith.mulf %16, %399 : vector<2x16xf32>
    %cst_115 = arith.constant dense<0.000000e+00> : vector<2xf32>
    %401 = vector.multi_reduction <add>, %400, %cst_115 [1] : vector<2x16xf32> to vector<2xf32>
    %402 = vector.shape_cast %401 : vector<2xf32> to vector<2x1xf32>
    %403 = vector.broadcast %6 : vector<1x1xf32> to vector<2x1xf32>
    %404 = arith.addf %402, %403 : vector<2x1xf32>
    %405 = vector.broadcast %5 : vector<1x16xf32> to vector<2x16xf32>
    %406 = arith.mulf %17, %405 : vector<2x16xf32>
    %cst_116 = arith.constant dense<0.000000e+00> : vector<2xf32>
    %407 = vector.multi_reduction <add>, %406, %cst_116 [1] : vector<2x16xf32> to vector<2xf32>
    %408 = vector.shape_cast %407 : vector<2xf32> to vector<2x1xf32>
    %409 = vector.broadcast %6 : vector<1x1xf32> to vector<2x1xf32>
    %410 = arith.addf %408, %409 : vector<2x1xf32>
    %c168 = arith.constant 168 : index
    %c16_117 = arith.constant 16 : index
    %411 = vector.load %arg5[%c168, %c16_117] : memref<224x32xf32, #tpu.memory_space<vmem>>, vector<2x1xf32>
    %412 = arith.addf %411, %398 : vector<2x1xf32>
    %c176_118 = arith.constant 176 : index
    %c16_119 = arith.constant 16 : index
    %413 = vector.load %arg5[%c176_118, %c16_119] : memref<224x32xf32, #tpu.memory_space<vmem>>, vector<2x1xf32>
    %414 = arith.addf %413, %398 : vector<2x1xf32>
    %c192 = arith.constant 192 : index
    %c16_120 = arith.constant 16 : index
    %415 = vector.load %arg5[%c192, %c16_120] : memref<224x32xf32, #tpu.memory_space<vmem>>, vector<2x1xf32>
    %416 = arith.addf %415, %398 : vector<2x1xf32>
    %417 = tpu.concatenate %404, %410, %412, %414, %416 in 1 : vector<2x1xf32>, vector<2x1xf32>, vector<2x1xf32>, vector<2x1xf32>, vector<2x1xf32> -> vector<2x5xf32>
    %418 = math.tanh %417 : vector<2x5xf32>
    %cst_121 = arith.constant dense<0xFF800000> : vector<2xf32>
    %419 = vector.multi_reduction <maximumf>, %418, %cst_121 [1] : vector<2x5xf32> to vector<2xf32>
    %420 = vector.shape_cast %419 : vector<2xf32> to vector<2x1xf32>
    %421 = vector.broadcast %420 : vector<2x1xf32> to vector<2x5xf32>
    %422 = arith.subf %418, %421 : vector<2x5xf32>
    %423 = math.exp %422 : vector<2x5xf32>
    %cst_122 = arith.constant dense<0.000000e+00> : vector<2xf32>
    %424 = vector.multi_reduction <add>, %423, %cst_122 [1] : vector<2x5xf32> to vector<2xf32>
    %425 = vector.shape_cast %424 : vector<2xf32> to vector<2x1xf32>
    %426 = vector.broadcast %425 : vector<2x1xf32> to vector<2x5xf32>
    %427 = arith.divf %423, %426 : vector<2x5xf32>
    %c168_123 = arith.constant 168 : index
    %c0_124 = arith.constant 0 : index
    %428 = vector.load %arg5[%c168_123, %c0_124] : memref<224x32xf32, #tpu.memory_space<vmem>>, vector<2x16xf32>
    %429 = vector.extract_strided_slice %427 {offsets = [0, 2], sizes = [2, 1], strides = [1, 1]} : vector<2x5xf32> to vector<2x1xf32>
    %430 = vector.broadcast %429 : vector<2x1xf32> to vector<2x16xf32>
    %431 = arith.mulf %430, %392 : vector<2x16xf32>
    %432 = tpu.concatenate %387, %431 in 1 : vector<2x16xf32>, vector<2x16xf32> -> vector<2x32xf32>
    %433 = arith.truncf %432 : vector<2x32xf32> to vector<2x32xbf16>
    %cst_125 = arith.constant dense<0.000000e+00> : vector<2x16xf32>
    %434 = tpu.matmul %433, %9, %cst_125 {dimension_numbers = #tpu.dot_dimension_numbers<[1], [0], [0], [1], [0, 0, 1, 1], [], []>} : vector<2x32xbf16>, vector<32x16xbf16>, vector<2x16xf32> -> vector<2x16xf32>
    %435 = arith.addf %428, %434 : vector<2x16xf32>
    %436 = math.tanh %435 : vector<2x16xf32>
    %437 = vector.broadcast %5 : vector<1x16xf32> to vector<2x16xf32>
    %438 = arith.mulf %436, %437 : vector<2x16xf32>
    %cst_126 = arith.constant dense<0.000000e+00> : vector<2xf32>
    %439 = vector.multi_reduction <add>, %438, %cst_126 [1] : vector<2x16xf32> to vector<2xf32>
    %440 = vector.shape_cast %439 : vector<2xf32> to vector<2x1xf32>
    %441 = vector.broadcast %6 : vector<1x1xf32> to vector<2x1xf32>
    %442 = arith.addf %440, %441 : vector<2x1xf32>
    %443 = vector.broadcast %5 : vector<1x16xf32> to vector<2x16xf32>
    %444 = arith.mulf %16, %443 : vector<2x16xf32>
    %cst_127 = arith.constant dense<0.000000e+00> : vector<2xf32>
    %445 = vector.multi_reduction <add>, %444, %cst_127 [1] : vector<2x16xf32> to vector<2xf32>
    %446 = vector.shape_cast %445 : vector<2xf32> to vector<2x1xf32>
    %447 = vector.broadcast %6 : vector<1x1xf32> to vector<2x1xf32>
    %448 = arith.addf %446, %447 : vector<2x1xf32>
    %c172 = arith.constant 172 : index
    %c16_128 = arith.constant 16 : index
    %449 = vector.load %arg5[%c172, %c16_128] : memref<224x32xf32, #tpu.memory_space<vmem>>, vector<2x1xf32>
    %450 = arith.addf %449, %442 : vector<2x1xf32>
    %c184 = arith.constant 184 : index
    %c16_129 = arith.constant 16 : index
    %451 = vector.load %arg5[%c184, %c16_129] : memref<224x32xf32, #tpu.memory_space<vmem>>, vector<2x1xf32>
    %452 = arith.addf %451, %442 : vector<2x1xf32>
    %453 = vector.broadcast %5 : vector<1x16xf32> to vector<2x16xf32>
    %454 = arith.mulf %339, %453 : vector<2x16xf32>
    %cst_130 = arith.constant dense<0.000000e+00> : vector<2xf32>
    %455 = vector.multi_reduction <add>, %454, %cst_130 [1] : vector<2x16xf32> to vector<2xf32>
    %456 = vector.shape_cast %455 : vector<2xf32> to vector<2x1xf32>
    %457 = vector.broadcast %6 : vector<1x1xf32> to vector<2x1xf32>
    %458 = arith.addf %456, %457 : vector<2x1xf32>
    %459 = vector.broadcast %5 : vector<1x16xf32> to vector<2x16xf32>
    %460 = arith.mulf %392, %459 : vector<2x16xf32>
    %cst_131 = arith.constant dense<0.000000e+00> : vector<2xf32>
    %461 = vector.multi_reduction <add>, %460, %cst_131 [1] : vector<2x16xf32> to vector<2xf32>
    %462 = vector.shape_cast %461 : vector<2xf32> to vector<2x1xf32>
    %463 = vector.broadcast %6 : vector<1x1xf32> to vector<2x1xf32>
    %464 = arith.addf %462, %463 : vector<2x1xf32>
    %465 = tpu.concatenate %448, %450, %452, %458, %464 in 1 : vector<2x1xf32>, vector<2x1xf32>, vector<2x1xf32>, vector<2x1xf32>, vector<2x1xf32> -> vector<2x5xf32>
    %466 = math.tanh %465 : vector<2x5xf32>
    %cst_132 = arith.constant dense<0xFF800000> : vector<2xf32>
    %467 = vector.multi_reduction <maximumf>, %466, %cst_132 [1] : vector<2x5xf32> to vector<2xf32>
    %468 = vector.shape_cast %467 : vector<2xf32> to vector<2x1xf32>
    %469 = vector.broadcast %468 : vector<2x1xf32> to vector<2x5xf32>
    %470 = arith.subf %466, %469 : vector<2x5xf32>
    %471 = math.exp %470 : vector<2x5xf32>
    %cst_133 = arith.constant dense<0.000000e+00> : vector<2xf32>
    %472 = vector.multi_reduction <add>, %471, %cst_133 [1] : vector<2x5xf32> to vector<2xf32>
    %473 = vector.shape_cast %472 : vector<2xf32> to vector<2x1xf32>
    %474 = vector.broadcast %473 : vector<2x1xf32> to vector<2x5xf32>
    %475 = arith.divf %471, %474 : vector<2x5xf32>
    %c172_134 = arith.constant 172 : index
    %c0_135 = arith.constant 0 : index
    %476 = vector.load %arg5[%c172_134, %c0_135] : memref<224x32xf32, #tpu.memory_space<vmem>>, vector<2x16xf32>
    %477 = vector.extract_strided_slice %475 {offsets = [0, 1], sizes = [2, 1], strides = [1, 1]} : vector<2x5xf32> to vector<2x1xf32>
    %478 = vector.broadcast %477 : vector<2x1xf32> to vector<2x16xf32>
    %479 = arith.mulf %478, %436 : vector<2x16xf32>
    %480 = tpu.concatenate %17, %479 in 1 : vector<2x16xf32>, vector<2x16xf32> -> vector<2x32xf32>
    %481 = arith.truncf %480 : vector<2x32xf32> to vector<2x32xbf16>
    %cst_136 = arith.constant dense<0.000000e+00> : vector<2x16xf32>
    %482 = tpu.matmul %481, %9, %cst_136 {dimension_numbers = #tpu.dot_dimension_numbers<[1], [0], [0], [1], [0, 0, 1, 1], [], []>} : vector<2x32xbf16>, vector<32x16xbf16>, vector<2x16xf32> -> vector<2x16xf32>
    %483 = arith.addf %476, %482 : vector<2x16xf32>
    %484 = math.tanh %483 : vector<2x16xf32>
    %cst_137 = arith.constant 2.000000e-01 : f32
    %485 = vector.broadcast %cst_137 : f32 to vector<2x5xf32>
    %c176_138 = arith.constant 176 : index
    %c0_139 = arith.constant 0 : index
    %486 = vector.load %arg5[%c176_138, %c0_139] : memref<224x32xf32, #tpu.memory_space<vmem>>, vector<2x16xf32>
    %487 = vector.extract_strided_slice %485 {offsets = [0, 3], sizes = [2, 1], strides = [1, 1]} : vector<2x5xf32> to vector<2x1xf32>
    %488 = vector.broadcast %487 : vector<2x1xf32> to vector<2x16xf32>
    %489 = arith.mulf %488, %392 : vector<2x16xf32>
    %490 = tpu.concatenate %339, %489 in 1 : vector<2x16xf32>, vector<2x16xf32> -> vector<2x32xf32>
    %491 = arith.truncf %490 : vector<2x32xf32> to vector<2x32xbf16>
    %cst_140 = arith.constant dense<0.000000e+00> : vector<2x16xf32>
    %492 = tpu.matmul %491, %9, %cst_140 {dimension_numbers = #tpu.dot_dimension_numbers<[1], [0], [0], [1], [0, 0, 1, 1], [], []>} : vector<2x32xbf16>, vector<32x16xbf16>, vector<2x16xf32> -> vector<2x16xf32>
    %493 = arith.addf %486, %492 : vector<2x16xf32>
    %494 = math.tanh %493 : vector<2x16xf32>
    %495 = vector.broadcast %5 : vector<1x16xf32> to vector<2x16xf32>
    %496 = arith.mulf %494, %495 : vector<2x16xf32>
    %cst_141 = arith.constant dense<0.000000e+00> : vector<2xf32>
    %497 = vector.multi_reduction <add>, %496, %cst_141 [1] : vector<2x16xf32> to vector<2xf32>
    %498 = vector.shape_cast %497 : vector<2xf32> to vector<2x1xf32>
    %499 = vector.broadcast %6 : vector<1x1xf32> to vector<2x1xf32>
    %500 = arith.addf %498, %499 : vector<2x1xf32>
    %501 = vector.broadcast %5 : vector<1x16xf32> to vector<2x16xf32>
    %502 = arith.mulf %16, %501 : vector<2x16xf32>
    %cst_142 = arith.constant dense<0.000000e+00> : vector<2xf32>
    %503 = vector.multi_reduction <add>, %502, %cst_142 [1] : vector<2x16xf32> to vector<2xf32>
    %504 = vector.shape_cast %503 : vector<2xf32> to vector<2x1xf32>
    %505 = vector.broadcast %6 : vector<1x1xf32> to vector<2x1xf32>
    %506 = arith.addf %504, %505 : vector<2x1xf32>
    %c180 = arith.constant 180 : index
    %c16_143 = arith.constant 16 : index
    %507 = vector.load %arg5[%c180, %c16_143] : memref<224x32xf32, #tpu.memory_space<vmem>>, vector<2x1xf32>
    %508 = arith.addf %507, %500 : vector<2x1xf32>
    %c184_144 = arith.constant 184 : index
    %c16_145 = arith.constant 16 : index
    %509 = vector.load %arg5[%c184_144, %c16_145] : memref<224x32xf32, #tpu.memory_space<vmem>>, vector<2x1xf32>
    %510 = arith.addf %509, %500 : vector<2x1xf32>
    %c208 = arith.constant 208 : index
    %c16_146 = arith.constant 16 : index
    %511 = vector.load %arg5[%c208, %c16_146] : memref<224x32xf32, #tpu.memory_space<vmem>>, vector<2x1xf32>
    %512 = arith.addf %511, %500 : vector<2x1xf32>
    %513 = vector.broadcast %5 : vector<1x16xf32> to vector<2x16xf32>
    %514 = arith.mulf %392, %513 : vector<2x16xf32>
    %cst_147 = arith.constant dense<0.000000e+00> : vector<2xf32>
    %515 = vector.multi_reduction <add>, %514, %cst_147 [1] : vector<2x16xf32> to vector<2xf32>
    %516 = vector.shape_cast %515 : vector<2xf32> to vector<2x1xf32>
    %517 = vector.broadcast %6 : vector<1x1xf32> to vector<2x1xf32>
    %518 = arith.addf %516, %517 : vector<2x1xf32>
    %519 = tpu.concatenate %506, %508, %510, %512, %518 in 1 : vector<2x1xf32>, vector<2x1xf32>, vector<2x1xf32>, vector<2x1xf32>, vector<2x1xf32> -> vector<2x5xf32>
    %520 = math.tanh %519 : vector<2x5xf32>
    %cst_148 = arith.constant dense<0xFF800000> : vector<2xf32>
    %521 = vector.multi_reduction <maximumf>, %520, %cst_148 [1] : vector<2x5xf32> to vector<2xf32>
    %522 = vector.shape_cast %521 : vector<2xf32> to vector<2x1xf32>
    %523 = vector.broadcast %522 : vector<2x1xf32> to vector<2x5xf32>
    %524 = arith.subf %520, %523 : vector<2x5xf32>
    %525 = math.exp %524 : vector<2x5xf32>
    %cst_149 = arith.constant dense<0.000000e+00> : vector<2xf32>
    %526 = vector.multi_reduction <add>, %525, %cst_149 [1] : vector<2x5xf32> to vector<2xf32>
    %527 = vector.shape_cast %526 : vector<2xf32> to vector<2x1xf32>
    %528 = vector.broadcast %527 : vector<2x1xf32> to vector<2x5xf32>
    %529 = arith.divf %525, %528 : vector<2x5xf32>
    %c180_150 = arith.constant 180 : index
    %c0_151 = arith.constant 0 : index
    %530 = vector.load %arg5[%c180_150, %c0_151] : memref<224x32xf32, #tpu.memory_space<vmem>>, vector<2x16xf32>
    %531 = vector.extract_strided_slice %529 {offsets = [0, 1], sizes = [2, 1], strides = [1, 1]} : vector<2x5xf32> to vector<2x1xf32>
    %532 = vector.broadcast %531 : vector<2x1xf32> to vector<2x16xf32>
    %533 = arith.mulf %532, %494 : vector<2x16xf32>
    %534 = tpu.concatenate %484, %533 in 1 : vector<2x16xf32>, vector<2x16xf32> -> vector<2x32xf32>
    %535 = arith.truncf %534 : vector<2x32xf32> to vector<2x32xbf16>
    %cst_152 = arith.constant dense<0.000000e+00> : vector<2x16xf32>
    %536 = tpu.matmul %535, %9, %cst_152 {dimension_numbers = #tpu.dot_dimension_numbers<[1], [0], [0], [1], [0, 0, 1, 1], [], []>} : vector<2x32xbf16>, vector<32x16xbf16>, vector<2x16xf32> -> vector<2x16xf32>
    %537 = arith.addf %530, %536 : vector<2x16xf32>
    %538 = math.tanh %537 : vector<2x16xf32>
    %cst_153 = arith.constant 2.000000e-01 : f32
    %539 = vector.broadcast %cst_153 : f32 to vector<2x5xf32>
    %c184_154 = arith.constant 184 : index
    %c0_155 = arith.constant 0 : index
    %540 = vector.load %arg5[%c184_154, %c0_155] : memref<224x32xf32, #tpu.memory_space<vmem>>, vector<2x16xf32>
    %541 = vector.extract_strided_slice %539 {offsets = [0, 2], sizes = [2, 1], strides = [1, 1]} : vector<2x5xf32> to vector<2x1xf32>
    %542 = vector.broadcast %541 : vector<2x1xf32> to vector<2x16xf32>
    %543 = arith.mulf %542, %494 : vector<2x16xf32>
    %544 = tpu.concatenate %436, %543 in 1 : vector<2x16xf32>, vector<2x16xf32> -> vector<2x32xf32>
    %545 = arith.truncf %544 : vector<2x32xf32> to vector<2x32xbf16>
    %cst_156 = arith.constant dense<0.000000e+00> : vector<2x16xf32>
    %546 = tpu.matmul %545, %9, %cst_156 {dimension_numbers = #tpu.dot_dimension_numbers<[1], [0], [0], [1], [0, 0, 1, 1], [], []>} : vector<2x32xbf16>, vector<32x16xbf16>, vector<2x16xf32> -> vector<2x16xf32>
    %547 = arith.addf %540, %546 : vector<2x16xf32>
    %548 = math.tanh %547 : vector<2x16xf32>
    %549 = vector.broadcast %5 : vector<1x16xf32> to vector<2x16xf32>
    %550 = arith.mulf %548, %549 : vector<2x16xf32>
    %cst_157 = arith.constant dense<0.000000e+00> : vector<2xf32>
    %551 = vector.multi_reduction <add>, %550, %cst_157 [1] : vector<2x16xf32> to vector<2xf32>
    %552 = vector.shape_cast %551 : vector<2xf32> to vector<2x1xf32>
    %553 = vector.broadcast %6 : vector<1x1xf32> to vector<2x1xf32>
    %554 = arith.addf %552, %553 : vector<2x1xf32>
    %555 = vector.broadcast %5 : vector<1x16xf32> to vector<2x16xf32>
    %556 = arith.mulf %16, %555 : vector<2x16xf32>
    %cst_158 = arith.constant dense<0.000000e+00> : vector<2xf32>
    %557 = vector.multi_reduction <add>, %556, %cst_158 [1] : vector<2x16xf32> to vector<2xf32>
    %558 = vector.shape_cast %557 : vector<2xf32> to vector<2x1xf32>
    %559 = vector.broadcast %6 : vector<1x1xf32> to vector<2x1xf32>
    %560 = arith.addf %558, %559 : vector<2x1xf32>
    %c188 = arith.constant 188 : index
    %c16_159 = arith.constant 16 : index
    %561 = vector.load %arg5[%c188, %c16_159] : memref<224x32xf32, #tpu.memory_space<vmem>>, vector<2x1xf32>
    %562 = arith.addf %561, %554 : vector<2x1xf32>
    %c200 = arith.constant 200 : index
    %c16_160 = arith.constant 16 : index
    %563 = vector.load %arg5[%c200, %c16_160] : memref<224x32xf32, #tpu.memory_space<vmem>>, vector<2x1xf32>
    %564 = arith.addf %563, %554 : vector<2x1xf32>
    %565 = vector.broadcast %5 : vector<1x16xf32> to vector<2x16xf32>
    %566 = arith.mulf %494, %565 : vector<2x16xf32>
    %cst_161 = arith.constant dense<0.000000e+00> : vector<2xf32>
    %567 = vector.multi_reduction <add>, %566, %cst_161 [1] : vector<2x16xf32> to vector<2xf32>
    %568 = vector.shape_cast %567 : vector<2xf32> to vector<2x1xf32>
    %569 = vector.broadcast %6 : vector<1x1xf32> to vector<2x1xf32>
    %570 = arith.addf %568, %569 : vector<2x1xf32>
    %571 = vector.broadcast %5 : vector<1x16xf32> to vector<2x16xf32>
    %572 = arith.mulf %392, %571 : vector<2x16xf32>
    %cst_162 = arith.constant dense<0.000000e+00> : vector<2xf32>
    %573 = vector.multi_reduction <add>, %572, %cst_162 [1] : vector<2x16xf32> to vector<2xf32>
    %574 = vector.shape_cast %573 : vector<2xf32> to vector<2x1xf32>
    %575 = vector.broadcast %6 : vector<1x1xf32> to vector<2x1xf32>
    %576 = arith.addf %574, %575 : vector<2x1xf32>
    %577 = tpu.concatenate %560, %562, %564, %570, %576 in 1 : vector<2x1xf32>, vector<2x1xf32>, vector<2x1xf32>, vector<2x1xf32>, vector<2x1xf32> -> vector<2x5xf32>
    %578 = math.tanh %577 : vector<2x5xf32>
    %cst_163 = arith.constant dense<0xFF800000> : vector<2xf32>
    %579 = vector.multi_reduction <maximumf>, %578, %cst_163 [1] : vector<2x5xf32> to vector<2xf32>
    %580 = vector.shape_cast %579 : vector<2xf32> to vector<2x1xf32>
    %581 = vector.broadcast %580 : vector<2x1xf32> to vector<2x5xf32>
    %582 = arith.subf %578, %581 : vector<2x5xf32>
    %583 = math.exp %582 : vector<2x5xf32>
    %cst_164 = arith.constant dense<0.000000e+00> : vector<2xf32>
    %584 = vector.multi_reduction <add>, %583, %cst_164 [1] : vector<2x5xf32> to vector<2xf32>
    %585 = vector.shape_cast %584 : vector<2xf32> to vector<2x1xf32>
    %586 = vector.broadcast %585 : vector<2x1xf32> to vector<2x5xf32>
    %587 = arith.divf %583, %586 : vector<2x5xf32>
    %c188_165 = arith.constant 188 : index
    %c0_166 = arith.constant 0 : index
    %588 = vector.load %arg5[%c188_165, %c0_166] : memref<224x32xf32, #tpu.memory_space<vmem>>, vector<2x16xf32>
    %589 = vector.extract_strided_slice %587 {offsets = [0, 1], sizes = [2, 1], strides = [1, 1]} : vector<2x5xf32> to vector<2x1xf32>
    %590 = vector.broadcast %589 : vector<2x1xf32> to vector<2x16xf32>
    %591 = arith.mulf %590, %548 : vector<2x16xf32>
    %592 = tpu.concatenate %538, %591 in 1 : vector<2x16xf32>, vector<2x16xf32> -> vector<2x32xf32>
    %593 = arith.truncf %592 : vector<2x32xf32> to vector<2x32xbf16>
    %cst_167 = arith.constant dense<0.000000e+00> : vector<2x16xf32>
    %594 = tpu.matmul %593, %9, %cst_167 {dimension_numbers = #tpu.dot_dimension_numbers<[1], [0], [0], [1], [0, 0, 1, 1], [], []>} : vector<2x32xbf16>, vector<32x16xbf16>, vector<2x16xf32> -> vector<2x16xf32>
    %595 = arith.addf %588, %594 : vector<2x16xf32>
    %596 = math.tanh %595 : vector<2x16xf32>
    %c192_168 = arith.constant 192 : index
    %c0_169 = arith.constant 0 : index
    %597 = vector.load %arg5[%c192_168, %c0_169] : memref<224x32xf32, #tpu.memory_space<vmem>>, vector<2x16xf32>
    %598 = arith.truncf %392 : vector<2x16xf32> to vector<2x16xbf16>
    %cst_170 = arith.constant dense<0.000000e+00> : vector<2x16xf32>
    %599 = tpu.matmul %598, %10, %cst_170 {dimension_numbers = #tpu.dot_dimension_numbers<[1], [0], [0], [1], [0, 0, 1, 1], [], []>} : vector<2x16xbf16>, vector<16x16xbf16>, vector<2x16xf32> -> vector<2x16xf32>
    %600 = arith.addf %597, %599 : vector<2x16xf32>
    %601 = math.tanh %600 : vector<2x16xf32>
    %602 = vector.broadcast %5 : vector<1x16xf32> to vector<2x16xf32>
    %603 = arith.mulf %601, %602 : vector<2x16xf32>
    %cst_171 = arith.constant dense<0.000000e+00> : vector<2xf32>
    %604 = vector.multi_reduction <add>, %603, %cst_171 [1] : vector<2x16xf32> to vector<2xf32>
    %605 = vector.shape_cast %604 : vector<2xf32> to vector<2x1xf32>
    %606 = vector.broadcast %6 : vector<1x1xf32> to vector<2x1xf32>
    %607 = arith.addf %605, %606 : vector<2x1xf32>
    %608 = vector.broadcast %5 : vector<1x16xf32> to vector<2x16xf32>
    %609 = arith.mulf %16, %608 : vector<2x16xf32>
    %cst_172 = arith.constant dense<0.000000e+00> : vector<2xf32>
    %610 = vector.multi_reduction <add>, %609, %cst_172 [1] : vector<2x16xf32> to vector<2xf32>
    %611 = vector.shape_cast %610 : vector<2xf32> to vector<2x1xf32>
    %612 = vector.broadcast %6 : vector<1x1xf32> to vector<2x1xf32>
    %613 = arith.addf %611, %612 : vector<2x1xf32>
    %c196 = arith.constant 196 : index
    %c16_173 = arith.constant 16 : index
    %614 = vector.load %arg5[%c196, %c16_173] : memref<224x32xf32, #tpu.memory_space<vmem>>, vector<2x1xf32>
    %615 = arith.addf %614, %607 : vector<2x1xf32>
    %c200_174 = arith.constant 200 : index
    %c16_175 = arith.constant 16 : index
    %616 = vector.load %arg5[%c200_174, %c16_175] : memref<224x32xf32, #tpu.memory_space<vmem>>, vector<2x1xf32>
    %617 = arith.addf %616, %607 : vector<2x1xf32>
    %c208_176 = arith.constant 208 : index
    %c16_177 = arith.constant 16 : index
    %618 = vector.load %arg5[%c208_176, %c16_177] : memref<224x32xf32, #tpu.memory_space<vmem>>, vector<2x1xf32>
    %619 = arith.addf %618, %607 : vector<2x1xf32>
    %620 = tpu.concatenate %613, %615, %617, %619, %607 in 1 : vector<2x1xf32>, vector<2x1xf32>, vector<2x1xf32>, vector<2x1xf32>, vector<2x1xf32> -> vector<2x5xf32>
    %621 = math.tanh %620 : vector<2x5xf32>
    %cst_178 = arith.constant dense<0xFF800000> : vector<2xf32>
    %622 = vector.multi_reduction <maximumf>, %621, %cst_178 [1] : vector<2x5xf32> to vector<2xf32>
    %623 = vector.shape_cast %622 : vector<2xf32> to vector<2x1xf32>
    %624 = vector.broadcast %623 : vector<2x1xf32> to vector<2x5xf32>
    %625 = arith.subf %621, %624 : vector<2x5xf32>
    %626 = math.exp %625 : vector<2x5xf32>
    %cst_179 = arith.constant dense<0.000000e+00> : vector<2xf32>
    %627 = vector.multi_reduction <add>, %626, %cst_179 [1] : vector<2x5xf32> to vector<2xf32>
    %628 = vector.shape_cast %627 : vector<2xf32> to vector<2x1xf32>
    %629 = vector.broadcast %628 : vector<2x1xf32> to vector<2x5xf32>
    %630 = arith.divf %626, %629 : vector<2x5xf32>
    %c196_180 = arith.constant 196 : index
    %c0_181 = arith.constant 0 : index
    %631 = vector.load %arg5[%c196_180, %c0_181] : memref<224x32xf32, #tpu.memory_space<vmem>>, vector<2x16xf32>
    %632 = vector.extract_strided_slice %630 {offsets = [0, 1], sizes = [2, 1], strides = [1, 1]} : vector<2x5xf32> to vector<2x1xf32>
    %633 = vector.broadcast %632 : vector<2x1xf32> to vector<2x16xf32>
    %634 = arith.mulf %633, %601 : vector<2x16xf32>
    %635 = tpu.concatenate %596, %634 in 1 : vector<2x16xf32>, vector<2x16xf32> -> vector<2x32xf32>
    %636 = arith.truncf %635 : vector<2x32xf32> to vector<2x32xbf16>
    %cst_182 = arith.constant dense<0.000000e+00> : vector<2x16xf32>
    %637 = tpu.matmul %636, %9, %cst_182 {dimension_numbers = #tpu.dot_dimension_numbers<[1], [0], [0], [1], [0, 0, 1, 1], [], []>} : vector<2x32xbf16>, vector<32x16xbf16>, vector<2x16xf32> -> vector<2x16xf32>
    %638 = arith.addf %631, %637 : vector<2x16xf32>
    %639 = math.tanh %638 : vector<2x16xf32>
    %640 = vector.broadcast %5 : vector<1x16xf32> to vector<2x16xf32>
    %641 = arith.mulf %639, %640 : vector<2x16xf32>
    %cst_183 = arith.constant dense<0.000000e+00> : vector<2xf32>
    %642 = vector.multi_reduction <add>, %641, %cst_183 [1] : vector<2x16xf32> to vector<2xf32>
    %643 = vector.shape_cast %642 : vector<2xf32> to vector<2x1xf32>
    %644 = vector.broadcast %6 : vector<1x1xf32> to vector<2x1xf32>
    %645 = arith.addf %643, %644 : vector<2x1xf32>
    %c198 = arith.constant 198 : index
    %c16_184 = arith.constant 16 : index
    %646 = vector.load %arg5[%c198, %c16_184] : memref<224x32xf32, #tpu.memory_space<vmem>>, vector<2x1xf32>
    %647 = arith.addf %646, %645 : vector<2x1xf32>
    %c204 = arith.constant 204 : index
    %c16_185 = arith.constant 16 : index
    %648 = vector.load %arg5[%c204, %c16_185] : memref<224x32xf32, #tpu.memory_space<vmem>>, vector<2x1xf32>
    %649 = arith.addf %648, %645 : vector<2x1xf32>
    %650 = vector.broadcast %5 : vector<1x16xf32> to vector<2x16xf32>
    %651 = arith.mulf %548, %650 : vector<2x16xf32>
    %cst_186 = arith.constant dense<0.000000e+00> : vector<2xf32>
    %652 = vector.multi_reduction <add>, %651, %cst_186 [1] : vector<2x16xf32> to vector<2xf32>
    %653 = vector.shape_cast %652 : vector<2xf32> to vector<2x1xf32>
    %654 = vector.broadcast %6 : vector<1x1xf32> to vector<2x1xf32>
    %655 = arith.addf %653, %654 : vector<2x1xf32>
    %656 = vector.broadcast %5 : vector<1x16xf32> to vector<2x16xf32>
    %657 = arith.mulf %494, %656 : vector<2x16xf32>
    %cst_187 = arith.constant dense<0.000000e+00> : vector<2xf32>
    %658 = vector.multi_reduction <add>, %657, %cst_187 [1] : vector<2x16xf32> to vector<2xf32>
    %659 = vector.shape_cast %658 : vector<2xf32> to vector<2x1xf32>
    %660 = vector.broadcast %6 : vector<1x1xf32> to vector<2x1xf32>
    %661 = arith.addf %659, %660 : vector<2x1xf32>
    %662 = vector.broadcast %5 : vector<1x16xf32> to vector<2x16xf32>
    %663 = arith.mulf %601, %662 : vector<2x16xf32>
    %cst_188 = arith.constant dense<0.000000e+00> : vector<2xf32>
    %664 = vector.multi_reduction <add>, %663, %cst_188 [1] : vector<2x16xf32> to vector<2xf32>
    %665 = vector.shape_cast %664 : vector<2xf32> to vector<2x1xf32>
    %666 = vector.broadcast %6 : vector<1x1xf32> to vector<2x1xf32>
    %667 = arith.addf %665, %666 : vector<2x1xf32>
    %668 = tpu.concatenate %647, %649, %655, %661, %667 in 1 : vector<2x1xf32>, vector<2x1xf32>, vector<2x1xf32>, vector<2x1xf32>, vector<2x1xf32> -> vector<2x5xf32>
    %669 = math.tanh %668 : vector<2x5xf32>
    %cst_189 = arith.constant dense<0xFF800000> : vector<2xf32>
    %670 = vector.multi_reduction <maximumf>, %669, %cst_189 [1] : vector<2x5xf32> to vector<2xf32>
    %671 = vector.shape_cast %670 : vector<2xf32> to vector<2x1xf32>
    %672 = vector.broadcast %671 : vector<2x1xf32> to vector<2x5xf32>
    %673 = arith.subf %669, %672 : vector<2x5xf32>
    %674 = math.exp %673 : vector<2x5xf32>
    %cst_190 = arith.constant dense<0.000000e+00> : vector<2xf32>
    %675 = vector.multi_reduction <add>, %674, %cst_190 [1] : vector<2x5xf32> to vector<2xf32>
    %676 = vector.shape_cast %675 : vector<2xf32> to vector<2x1xf32>
    %677 = vector.broadcast %676 : vector<2x1xf32> to vector<2x5xf32>
    %678 = arith.divf %674, %677 : vector<2x5xf32>
    %c198_191 = arith.constant 198 : index
    %c0_192 = arith.constant 0 : index
    %679 = vector.load %arg5[%c198_191, %c0_192] : memref<224x32xf32, #tpu.memory_space<vmem>>, vector<2x16xf32>
    %680 = vector.extract_strided_slice %678 {offsets = [0, 0], sizes = [2, 1], strides = [1, 1]} : vector<2x5xf32> to vector<2x1xf32>
    %681 = vector.broadcast %680 : vector<2x1xf32> to vector<2x16xf32>
    %682 = arith.mulf %681, %639 : vector<2x16xf32>
    %683 = tpu.concatenate %16, %682 in 1 : vector<2x16xf32>, vector<2x16xf32> -> vector<2x32xf32>
    %684 = arith.truncf %683 : vector<2x32xf32> to vector<2x32xbf16>
    %cst_193 = arith.constant dense<0.000000e+00> : vector<2x16xf32>
    %685 = tpu.matmul %684, %9, %cst_193 {dimension_numbers = #tpu.dot_dimension_numbers<[1], [0], [0], [1], [0, 0, 1, 1], [], []>} : vector<2x32xbf16>, vector<32x16xbf16>, vector<2x16xf32> -> vector<2x16xf32>
    %686 = arith.addf %679, %685 : vector<2x16xf32>
    %687 = math.tanh %686 : vector<2x16xf32>
    %cst_194 = arith.constant 2.000000e-01 : f32
    %688 = vector.broadcast %cst_194 : f32 to vector<2x5xf32>
    %c200_195 = arith.constant 200 : index
    %c0_196 = arith.constant 0 : index
    %689 = vector.load %arg5[%c200_195, %c0_196] : memref<224x32xf32, #tpu.memory_space<vmem>>, vector<2x16xf32>
    %690 = vector.extract_strided_slice %688 {offsets = [0, 2], sizes = [2, 1], strides = [1, 1]} : vector<2x5xf32> to vector<2x1xf32>
    %691 = vector.broadcast %690 : vector<2x1xf32> to vector<2x16xf32>
    %692 = arith.mulf %691, %601 : vector<2x16xf32>
    %693 = tpu.concatenate %548, %692 in 1 : vector<2x16xf32>, vector<2x16xf32> -> vector<2x32xf32>
    %694 = arith.truncf %693 : vector<2x32xf32> to vector<2x32xbf16>
    %cst_197 = arith.constant dense<0.000000e+00> : vector<2x16xf32>
    %695 = tpu.matmul %694, %9, %cst_197 {dimension_numbers = #tpu.dot_dimension_numbers<[1], [0], [0], [1], [0, 0, 1, 1], [], []>} : vector<2x32xbf16>, vector<32x16xbf16>, vector<2x16xf32> -> vector<2x16xf32>
    %696 = arith.addf %689, %695 : vector<2x16xf32>
    %697 = math.tanh %696 : vector<2x16xf32>
    %698 = vector.broadcast %5 : vector<1x16xf32> to vector<2x16xf32>
    %699 = arith.mulf %697, %698 : vector<2x16xf32>
    %cst_198 = arith.constant dense<0.000000e+00> : vector<2xf32>
    %700 = vector.multi_reduction <add>, %699, %cst_198 [1] : vector<2x16xf32> to vector<2xf32>
    %701 = vector.shape_cast %700 : vector<2xf32> to vector<2x1xf32>
    %702 = vector.broadcast %6 : vector<1x1xf32> to vector<2x1xf32>
    %703 = arith.addf %701, %702 : vector<2x1xf32>
    %c202 = arith.constant 202 : index
    %c16_199 = arith.constant 16 : index
    %704 = vector.load %arg5[%c202, %c16_199] : memref<224x32xf32, #tpu.memory_space<vmem>>, vector<2x1xf32>
    %705 = arith.addf %704, %703 : vector<2x1xf32>
    %c204_200 = arith.constant 204 : index
    %c16_201 = arith.constant 16 : index
    %706 = vector.load %arg5[%c204_200, %c16_201] : memref<224x32xf32, #tpu.memory_space<vmem>>, vector<2x1xf32>
    %707 = arith.addf %706, %703 : vector<2x1xf32>
    %c216 = arith.constant 216 : index
    %c16_202 = arith.constant 16 : index
    %708 = vector.load %arg5[%c216, %c16_202] : memref<224x32xf32, #tpu.memory_space<vmem>>, vector<2x1xf32>
    %709 = arith.addf %708, %703 : vector<2x1xf32>
    %710 = vector.broadcast %5 : vector<1x16xf32> to vector<2x16xf32>
    %711 = arith.mulf %494, %710 : vector<2x16xf32>
    %cst_203 = arith.constant dense<0.000000e+00> : vector<2xf32>
    %712 = vector.multi_reduction <add>, %711, %cst_203 [1] : vector<2x16xf32> to vector<2xf32>
    %713 = vector.shape_cast %712 : vector<2xf32> to vector<2x1xf32>
    %714 = vector.broadcast %6 : vector<1x1xf32> to vector<2x1xf32>
    %715 = arith.addf %713, %714 : vector<2x1xf32>
    %716 = vector.broadcast %5 : vector<1x16xf32> to vector<2x16xf32>
    %717 = arith.mulf %601, %716 : vector<2x16xf32>
    %cst_204 = arith.constant dense<0.000000e+00> : vector<2xf32>
    %718 = vector.multi_reduction <add>, %717, %cst_204 [1] : vector<2x16xf32> to vector<2xf32>
    %719 = vector.shape_cast %718 : vector<2xf32> to vector<2x1xf32>
    %720 = vector.broadcast %6 : vector<1x1xf32> to vector<2x1xf32>
    %721 = arith.addf %719, %720 : vector<2x1xf32>
    %722 = tpu.concatenate %705, %707, %709, %715, %721 in 1 : vector<2x1xf32>, vector<2x1xf32>, vector<2x1xf32>, vector<2x1xf32>, vector<2x1xf32> -> vector<2x5xf32>
    %723 = math.tanh %722 : vector<2x5xf32>
    %cst_205 = arith.constant dense<0xFF800000> : vector<2xf32>
    %724 = vector.multi_reduction <maximumf>, %723, %cst_205 [1] : vector<2x5xf32> to vector<2xf32>
    %725 = vector.shape_cast %724 : vector<2xf32> to vector<2x1xf32>
    %726 = vector.broadcast %725 : vector<2x1xf32> to vector<2x5xf32>
    %727 = arith.subf %723, %726 : vector<2x5xf32>
    %728 = math.exp %727 : vector<2x5xf32>
    %cst_206 = arith.constant dense<0.000000e+00> : vector<2xf32>
    %729 = vector.multi_reduction <add>, %728, %cst_206 [1] : vector<2x5xf32> to vector<2xf32>
    %730 = vector.shape_cast %729 : vector<2xf32> to vector<2x1xf32>
    %731 = vector.broadcast %730 : vector<2x1xf32> to vector<2x5xf32>
    %732 = arith.divf %728, %731 : vector<2x5xf32>
    %c202_207 = arith.constant 202 : index
    %c0_208 = arith.constant 0 : index
    %733 = vector.load %arg5[%c202_207, %c0_208] : memref<224x32xf32, #tpu.memory_space<vmem>>, vector<2x16xf32>
    %734 = vector.extract_strided_slice %732 {offsets = [0, 0], sizes = [2, 1], strides = [1, 1]} : vector<2x5xf32> to vector<2x1xf32>
    %735 = vector.broadcast %734 : vector<2x1xf32> to vector<2x16xf32>
    %736 = arith.mulf %735, %697 : vector<2x16xf32>
    %737 = tpu.concatenate %687, %736 in 1 : vector<2x16xf32>, vector<2x16xf32> -> vector<2x32xf32>
    %738 = arith.truncf %737 : vector<2x32xf32> to vector<2x32xbf16>
    %cst_209 = arith.constant dense<0.000000e+00> : vector<2x16xf32>
    %739 = tpu.matmul %738, %9, %cst_209 {dimension_numbers = #tpu.dot_dimension_numbers<[1], [0], [0], [1], [0, 0, 1, 1], [], []>} : vector<2x32xbf16>, vector<32x16xbf16>, vector<2x16xf32> -> vector<2x16xf32>
    %740 = arith.addf %733, %739 : vector<2x16xf32>
    %741 = math.tanh %740 : vector<2x16xf32>
    %cst_210 = arith.constant 2.000000e-01 : f32
    %742 = vector.broadcast %cst_210 : f32 to vector<2x5xf32>
    %c204_211 = arith.constant 204 : index
    %c0_212 = arith.constant 0 : index
    %743 = vector.load %arg5[%c204_211, %c0_212] : memref<224x32xf32, #tpu.memory_space<vmem>>, vector<2x16xf32>
    %744 = vector.extract_strided_slice %742 {offsets = [0, 1], sizes = [2, 1], strides = [1, 1]} : vector<2x5xf32> to vector<2x1xf32>
    %745 = vector.broadcast %744 : vector<2x1xf32> to vector<2x16xf32>
    %746 = arith.mulf %745, %697 : vector<2x16xf32>
    %747 = tpu.concatenate %639, %746 in 1 : vector<2x16xf32>, vector<2x16xf32> -> vector<2x32xf32>
    %748 = arith.truncf %747 : vector<2x32xf32> to vector<2x32xbf16>
    %cst_213 = arith.constant dense<0.000000e+00> : vector<2x16xf32>
    %749 = tpu.matmul %748, %9, %cst_213 {dimension_numbers = #tpu.dot_dimension_numbers<[1], [0], [0], [1], [0, 0, 1, 1], [], []>} : vector<2x32xbf16>, vector<32x16xbf16>, vector<2x16xf32> -> vector<2x16xf32>
    %750 = arith.addf %743, %749 : vector<2x16xf32>
    %751 = math.tanh %750 : vector<2x16xf32>
    %752 = vector.broadcast %5 : vector<1x16xf32> to vector<2x16xf32>
    %753 = arith.mulf %751, %752 : vector<2x16xf32>
    %cst_214 = arith.constant dense<0.000000e+00> : vector<2xf32>
    %754 = vector.multi_reduction <add>, %753, %cst_214 [1] : vector<2x16xf32> to vector<2xf32>
    %755 = vector.shape_cast %754 : vector<2xf32> to vector<2x1xf32>
    %756 = vector.broadcast %6 : vector<1x1xf32> to vector<2x1xf32>
    %757 = arith.addf %755, %756 : vector<2x1xf32>
    %c206 = arith.constant 206 : index
    %c16_215 = arith.constant 16 : index
    %758 = vector.load %arg5[%c206, %c16_215] : memref<224x32xf32, #tpu.memory_space<vmem>>, vector<2x1xf32>
    %759 = arith.addf %758, %757 : vector<2x1xf32>
    %c212 = arith.constant 212 : index
    %c16_216 = arith.constant 16 : index
    %760 = vector.load %arg5[%c212, %c16_216] : memref<224x32xf32, #tpu.memory_space<vmem>>, vector<2x1xf32>
    %761 = arith.addf %760, %757 : vector<2x1xf32>
    %762 = vector.broadcast %5 : vector<1x16xf32> to vector<2x16xf32>
    %763 = arith.mulf %697, %762 : vector<2x16xf32>
    %cst_217 = arith.constant dense<0.000000e+00> : vector<2xf32>
    %764 = vector.multi_reduction <add>, %763, %cst_217 [1] : vector<2x16xf32> to vector<2xf32>
    %765 = vector.shape_cast %764 : vector<2xf32> to vector<2x1xf32>
    %766 = vector.broadcast %6 : vector<1x1xf32> to vector<2x1xf32>
    %767 = arith.addf %765, %766 : vector<2x1xf32>
    %768 = vector.broadcast %5 : vector<1x16xf32> to vector<2x16xf32>
    %769 = arith.mulf %494, %768 : vector<2x16xf32>
    %cst_218 = arith.constant dense<0.000000e+00> : vector<2xf32>
    %770 = vector.multi_reduction <add>, %769, %cst_218 [1] : vector<2x16xf32> to vector<2xf32>
    %771 = vector.shape_cast %770 : vector<2xf32> to vector<2x1xf32>
    %772 = vector.broadcast %6 : vector<1x1xf32> to vector<2x1xf32>
    %773 = arith.addf %771, %772 : vector<2x1xf32>
    %774 = vector.broadcast %5 : vector<1x16xf32> to vector<2x16xf32>
    %775 = arith.mulf %601, %774 : vector<2x16xf32>
    %cst_219 = arith.constant dense<0.000000e+00> : vector<2xf32>
    %776 = vector.multi_reduction <add>, %775, %cst_219 [1] : vector<2x16xf32> to vector<2xf32>
    %777 = vector.shape_cast %776 : vector<2xf32> to vector<2x1xf32>
    %778 = vector.broadcast %6 : vector<1x1xf32> to vector<2x1xf32>
    %779 = arith.addf %777, %778 : vector<2x1xf32>
    %780 = tpu.concatenate %759, %761, %767, %773, %779 in 1 : vector<2x1xf32>, vector<2x1xf32>, vector<2x1xf32>, vector<2x1xf32>, vector<2x1xf32> -> vector<2x5xf32>
    %781 = math.tanh %780 : vector<2x5xf32>
    %cst_220 = arith.constant dense<0xFF800000> : vector<2xf32>
    %782 = vector.multi_reduction <maximumf>, %781, %cst_220 [1] : vector<2x5xf32> to vector<2xf32>
    %783 = vector.shape_cast %782 : vector<2xf32> to vector<2x1xf32>
    %784 = vector.broadcast %783 : vector<2x1xf32> to vector<2x5xf32>
    %785 = arith.subf %781, %784 : vector<2x5xf32>
    %786 = math.exp %785 : vector<2x5xf32>
    %cst_221 = arith.constant dense<0.000000e+00> : vector<2xf32>
    %787 = vector.multi_reduction <add>, %786, %cst_221 [1] : vector<2x5xf32> to vector<2xf32>
    %788 = vector.shape_cast %787 : vector<2xf32> to vector<2x1xf32>
    %789 = vector.broadcast %788 : vector<2x1xf32> to vector<2x5xf32>
    %790 = arith.divf %786, %789 : vector<2x5xf32>
    %c206_222 = arith.constant 206 : index
    %c0_223 = arith.constant 0 : index
    %791 = vector.load %arg5[%c206_222, %c0_223] : memref<224x32xf32, #tpu.memory_space<vmem>>, vector<2x16xf32>
    %792 = vector.extract_strided_slice %790 {offsets = [0, 0], sizes = [2, 1], strides = [1, 1]} : vector<2x5xf32> to vector<2x1xf32>
    %793 = vector.broadcast %792 : vector<2x1xf32> to vector<2x16xf32>
    %794 = arith.mulf %793, %751 : vector<2x16xf32>
    %795 = tpu.concatenate %741, %794 in 1 : vector<2x16xf32>, vector<2x16xf32> -> vector<2x32xf32>
    %796 = arith.truncf %795 : vector<2x32xf32> to vector<2x32xbf16>
    %cst_224 = arith.constant dense<0.000000e+00> : vector<2x16xf32>
    %797 = tpu.matmul %796, %9, %cst_224 {dimension_numbers = #tpu.dot_dimension_numbers<[1], [0], [0], [1], [0, 0, 1, 1], [], []>} : vector<2x32xbf16>, vector<32x16xbf16>, vector<2x16xf32> -> vector<2x16xf32>
    %798 = arith.addf %791, %797 : vector<2x16xf32>
    %799 = math.tanh %798 : vector<2x16xf32>
    %cst_225 = arith.constant 2.000000e-01 : f32
    %800 = vector.broadcast %cst_225 : f32 to vector<2x5xf32>
    %c208_226 = arith.constant 208 : index
    %c0_227 = arith.constant 0 : index
    %801 = vector.load %arg5[%c208_226, %c0_227] : memref<224x32xf32, #tpu.memory_space<vmem>>, vector<2x16xf32>
    %802 = vector.extract_strided_slice %800 {offsets = [0, 3], sizes = [2, 1], strides = [1, 1]} : vector<2x5xf32> to vector<2x1xf32>
    %803 = vector.broadcast %802 : vector<2x1xf32> to vector<2x16xf32>
    %804 = arith.mulf %803, %601 : vector<2x16xf32>
    %805 = tpu.concatenate %494, %804 in 1 : vector<2x16xf32>, vector<2x16xf32> -> vector<2x32xf32>
    %806 = arith.truncf %805 : vector<2x32xf32> to vector<2x32xbf16>
    %cst_228 = arith.constant dense<0.000000e+00> : vector<2x16xf32>
    %807 = tpu.matmul %806, %9, %cst_228 {dimension_numbers = #tpu.dot_dimension_numbers<[1], [0], [0], [1], [0, 0, 1, 1], [], []>} : vector<2x32xbf16>, vector<32x16xbf16>, vector<2x16xf32> -> vector<2x16xf32>
    %808 = arith.addf %801, %807 : vector<2x16xf32>
    %809 = math.tanh %808 : vector<2x16xf32>
    %810 = vector.broadcast %5 : vector<1x16xf32> to vector<2x16xf32>
    %811 = arith.mulf %809, %810 : vector<2x16xf32>
    %cst_229 = arith.constant dense<0.000000e+00> : vector<2xf32>
    %812 = vector.multi_reduction <add>, %811, %cst_229 [1] : vector<2x16xf32> to vector<2xf32>
    %813 = vector.shape_cast %812 : vector<2xf32> to vector<2x1xf32>
    %814 = vector.broadcast %6 : vector<1x1xf32> to vector<2x1xf32>
    %815 = arith.addf %813, %814 : vector<2x1xf32>
    %c210 = arith.constant 210 : index
    %c16_230 = arith.constant 16 : index
    %816 = vector.load %arg5[%c210, %c16_230] : memref<224x32xf32, #tpu.memory_space<vmem>>, vector<2x1xf32>
    %817 = arith.addf %816, %815 : vector<2x1xf32>
    %c212_231 = arith.constant 212 : index
    %c16_232 = arith.constant 16 : index
    %818 = vector.load %arg5[%c212_231, %c16_232] : memref<224x32xf32, #tpu.memory_space<vmem>>, vector<2x1xf32>
    %819 = arith.addf %818, %815 : vector<2x1xf32>
    %c216_233 = arith.constant 216 : index
    %c16_234 = arith.constant 16 : index
    %820 = vector.load %arg5[%c216_233, %c16_234] : memref<224x32xf32, #tpu.memory_space<vmem>>, vector<2x1xf32>
    %821 = arith.addf %820, %815 : vector<2x1xf32>
    %822 = vector.broadcast %5 : vector<1x16xf32> to vector<2x16xf32>
    %823 = arith.mulf %601, %822 : vector<2x16xf32>
    %cst_235 = arith.constant dense<0.000000e+00> : vector<2xf32>
    %824 = vector.multi_reduction <add>, %823, %cst_235 [1] : vector<2x16xf32> to vector<2xf32>
    %825 = vector.shape_cast %824 : vector<2xf32> to vector<2x1xf32>
    %826 = vector.broadcast %6 : vector<1x1xf32> to vector<2x1xf32>
    %827 = arith.addf %825, %826 : vector<2x1xf32>
    %828 = tpu.concatenate %817, %819, %821, %815, %827 in 1 : vector<2x1xf32>, vector<2x1xf32>, vector<2x1xf32>, vector<2x1xf32>, vector<2x1xf32> -> vector<2x5xf32>
    %829 = math.tanh %828 : vector<2x5xf32>
    %cst_236 = arith.constant dense<0xFF800000> : vector<2xf32>
    %830 = vector.multi_reduction <maximumf>, %829, %cst_236 [1] : vector<2x5xf32> to vector<2xf32>
    %831 = vector.shape_cast %830 : vector<2xf32> to vector<2x1xf32>
    %832 = vector.broadcast %831 : vector<2x1xf32> to vector<2x5xf32>
    %833 = arith.subf %829, %832 : vector<2x5xf32>
    %834 = math.exp %833 : vector<2x5xf32>
    %cst_237 = arith.constant dense<0.000000e+00> : vector<2xf32>
    %835 = vector.multi_reduction <add>, %834, %cst_237 [1] : vector<2x5xf32> to vector<2xf32>
    %836 = vector.shape_cast %835 : vector<2xf32> to vector<2x1xf32>
    %837 = vector.broadcast %836 : vector<2x1xf32> to vector<2x5xf32>
    %838 = arith.divf %834, %837 : vector<2x5xf32>
    %c210_238 = arith.constant 210 : index
    %c0_239 = arith.constant 0 : index
    %839 = vector.load %arg5[%c210_238, %c0_239] : memref<224x32xf32, #tpu.memory_space<vmem>>, vector<2x16xf32>
    %840 = vector.extract_strided_slice %838 {offsets = [0, 0], sizes = [2, 1], strides = [1, 1]} : vector<2x5xf32> to vector<2x1xf32>
    %841 = vector.broadcast %840 : vector<2x1xf32> to vector<2x16xf32>
    %842 = arith.mulf %841, %809 : vector<2x16xf32>
    %843 = tpu.concatenate %799, %842 in 1 : vector<2x16xf32>, vector<2x16xf32> -> vector<2x32xf32>
    %844 = arith.truncf %843 : vector<2x32xf32> to vector<2x32xbf16>
    %cst_240 = arith.constant dense<0.000000e+00> : vector<2x16xf32>
    %845 = tpu.matmul %844, %9, %cst_240 {dimension_numbers = #tpu.dot_dimension_numbers<[1], [0], [0], [1], [0, 0, 1, 1], [], []>} : vector<2x32xbf16>, vector<32x16xbf16>, vector<2x16xf32> -> vector<2x16xf32>
    %846 = arith.addf %839, %845 : vector<2x16xf32>
    %847 = math.tanh %846 : vector<2x16xf32>
    %cst_241 = arith.constant 2.000000e-01 : f32
    %848 = vector.broadcast %cst_241 : f32 to vector<2x5xf32>
    %c212_242 = arith.constant 212 : index
    %c0_243 = arith.constant 0 : index
    %849 = vector.load %arg5[%c212_242, %c0_243] : memref<224x32xf32, #tpu.memory_space<vmem>>, vector<2x16xf32>
    %850 = vector.extract_strided_slice %848 {offsets = [0, 1], sizes = [2, 1], strides = [1, 1]} : vector<2x5xf32> to vector<2x1xf32>
    %851 = vector.broadcast %850 : vector<2x1xf32> to vector<2x16xf32>
    %852 = arith.mulf %851, %809 : vector<2x16xf32>
    %853 = tpu.concatenate %751, %852 in 1 : vector<2x16xf32>, vector<2x16xf32> -> vector<2x32xf32>
    %854 = arith.truncf %853 : vector<2x32xf32> to vector<2x32xbf16>
    %cst_244 = arith.constant dense<0.000000e+00> : vector<2x16xf32>
    %855 = tpu.matmul %854, %9, %cst_244 {dimension_numbers = #tpu.dot_dimension_numbers<[1], [0], [0], [1], [0, 0, 1, 1], [], []>} : vector<2x32xbf16>, vector<32x16xbf16>, vector<2x16xf32> -> vector<2x16xf32>
    %856 = arith.addf %849, %855 : vector<2x16xf32>
    %857 = math.tanh %856 : vector<2x16xf32>
    %858 = vector.broadcast %5 : vector<1x16xf32> to vector<2x16xf32>
    %859 = arith.mulf %857, %858 : vector<2x16xf32>
    %cst_245 = arith.constant dense<0.000000e+00> : vector<2xf32>
    %860 = vector.multi_reduction <add>, %859, %cst_245 [1] : vector<2x16xf32> to vector<2xf32>
    %861 = vector.shape_cast %860 : vector<2xf32> to vector<2x1xf32>
    %862 = vector.broadcast %6 : vector<1x1xf32> to vector<2x1xf32>
    %863 = arith.addf %861, %862 : vector<2x1xf32>
    %c214 = arith.constant 214 : index
    %c16_246 = arith.constant 16 : index
    %864 = vector.load %arg5[%c214, %c16_246] : memref<224x32xf32, #tpu.memory_space<vmem>>, vector<2x1xf32>
    %865 = arith.addf %864, %863 : vector<2x1xf32>
    %c220 = arith.constant 220 : index
    %c16_247 = arith.constant 16 : index
    %866 = vector.load %arg5[%c220, %c16_247] : memref<224x32xf32, #tpu.memory_space<vmem>>, vector<2x1xf32>
    %867 = arith.addf %866, %863 : vector<2x1xf32>
    %868 = vector.broadcast %5 : vector<1x16xf32> to vector<2x16xf32>
    %869 = arith.mulf %697, %868 : vector<2x16xf32>
    %cst_248 = arith.constant dense<0.000000e+00> : vector<2xf32>
    %870 = vector.multi_reduction <add>, %869, %cst_248 [1] : vector<2x16xf32> to vector<2xf32>
    %871 = vector.shape_cast %870 : vector<2xf32> to vector<2x1xf32>
    %872 = vector.broadcast %6 : vector<1x1xf32> to vector<2x1xf32>
    %873 = arith.addf %871, %872 : vector<2x1xf32>
    %874 = vector.broadcast %5 : vector<1x16xf32> to vector<2x16xf32>
    %875 = arith.mulf %809, %874 : vector<2x16xf32>
    %cst_249 = arith.constant dense<0.000000e+00> : vector<2xf32>
    %876 = vector.multi_reduction <add>, %875, %cst_249 [1] : vector<2x16xf32> to vector<2xf32>
    %877 = vector.shape_cast %876 : vector<2xf32> to vector<2x1xf32>
    %878 = vector.broadcast %6 : vector<1x1xf32> to vector<2x1xf32>
    %879 = arith.addf %877, %878 : vector<2x1xf32>
    %880 = vector.broadcast %5 : vector<1x16xf32> to vector<2x16xf32>
    %881 = arith.mulf %601, %880 : vector<2x16xf32>
    %cst_250 = arith.constant dense<0.000000e+00> : vector<2xf32>
    %882 = vector.multi_reduction <add>, %881, %cst_250 [1] : vector<2x16xf32> to vector<2xf32>
    %883 = vector.shape_cast %882 : vector<2xf32> to vector<2x1xf32>
    %884 = vector.broadcast %6 : vector<1x1xf32> to vector<2x1xf32>
    %885 = arith.addf %883, %884 : vector<2x1xf32>
    %886 = tpu.concatenate %865, %867, %873, %879, %885 in 1 : vector<2x1xf32>, vector<2x1xf32>, vector<2x1xf32>, vector<2x1xf32>, vector<2x1xf32> -> vector<2x5xf32>
    %887 = math.tanh %886 : vector<2x5xf32>
    %cst_251 = arith.constant dense<0xFF800000> : vector<2xf32>
    %888 = vector.multi_reduction <maximumf>, %887, %cst_251 [1] : vector<2x5xf32> to vector<2xf32>
    %889 = vector.shape_cast %888 : vector<2xf32> to vector<2x1xf32>
    %890 = vector.broadcast %889 : vector<2x1xf32> to vector<2x5xf32>
    %891 = arith.subf %887, %890 : vector<2x5xf32>
    %892 = math.exp %891 : vector<2x5xf32>
    %cst_252 = arith.constant dense<0.000000e+00> : vector<2xf32>
    %893 = vector.multi_reduction <add>, %892, %cst_252 [1] : vector<2x5xf32> to vector<2xf32>
    %894 = vector.shape_cast %893 : vector<2xf32> to vector<2x1xf32>
    %895 = vector.broadcast %894 : vector<2x1xf32> to vector<2x5xf32>
    %896 = arith.divf %892, %895 : vector<2x5xf32>
    %c214_253 = arith.constant 214 : index
    %c0_254 = arith.constant 0 : index
    %897 = vector.load %arg5[%c214_253, %c0_254] : memref<224x32xf32, #tpu.memory_space<vmem>>, vector<2x16xf32>
    %898 = vector.extract_strided_slice %896 {offsets = [0, 0], sizes = [2, 1], strides = [1, 1]} : vector<2x5xf32> to vector<2x1xf32>
    %899 = vector.broadcast %898 : vector<2x1xf32> to vector<2x16xf32>
    %900 = arith.mulf %899, %857 : vector<2x16xf32>
    %901 = tpu.concatenate %847, %900 in 1 : vector<2x16xf32>, vector<2x16xf32> -> vector<2x32xf32>
    %902 = arith.truncf %901 : vector<2x32xf32> to vector<2x32xbf16>
    %cst_255 = arith.constant dense<0.000000e+00> : vector<2x16xf32>
    %903 = tpu.matmul %902, %9, %cst_255 {dimension_numbers = #tpu.dot_dimension_numbers<[1], [0], [0], [1], [0, 0, 1, 1], [], []>} : vector<2x32xbf16>, vector<32x16xbf16>, vector<2x16xf32> -> vector<2x16xf32>
    %904 = arith.addf %897, %903 : vector<2x16xf32>
    %905 = math.tanh %904 : vector<2x16xf32>
    %cst_256 = arith.constant 2.000000e-01 : f32
    %906 = vector.broadcast %cst_256 : f32 to vector<2x5xf32>
    %c216_257 = arith.constant 216 : index
    %c0_258 = arith.constant 0 : index
    %907 = vector.load %arg5[%c216_257, %c0_258] : memref<224x32xf32, #tpu.memory_space<vmem>>, vector<2x16xf32>
    %908 = vector.extract_strided_slice %906 {offsets = [0, 2], sizes = [2, 1], strides = [1, 1]} : vector<2x5xf32> to vector<2x1xf32>
    %909 = vector.broadcast %908 : vector<2x1xf32> to vector<2x16xf32>
    %910 = arith.mulf %909, %809 : vector<2x16xf32>
    %911 = tpu.concatenate %697, %910 in 1 : vector<2x16xf32>, vector<2x16xf32> -> vector<2x32xf32>
    %912 = arith.truncf %911 : vector<2x32xf32> to vector<2x32xbf16>
    %cst_259 = arith.constant dense<0.000000e+00> : vector<2x16xf32>
    %913 = tpu.matmul %912, %9, %cst_259 {dimension_numbers = #tpu.dot_dimension_numbers<[1], [0], [0], [1], [0, 0, 1, 1], [], []>} : vector<2x32xbf16>, vector<32x16xbf16>, vector<2x16xf32> -> vector<2x16xf32>
    %914 = arith.addf %907, %913 : vector<2x16xf32>
    %915 = math.tanh %914 : vector<2x16xf32>
    %916 = vector.broadcast %5 : vector<1x16xf32> to vector<2x16xf32>
    %917 = arith.mulf %915, %916 : vector<2x16xf32>
    %cst_260 = arith.constant dense<0.000000e+00> : vector<2xf32>
    %918 = vector.multi_reduction <add>, %917, %cst_260 [1] : vector<2x16xf32> to vector<2xf32>
    %919 = vector.shape_cast %918 : vector<2xf32> to vector<2x1xf32>
    %920 = vector.broadcast %6 : vector<1x1xf32> to vector<2x1xf32>
    %921 = arith.addf %919, %920 : vector<2x1xf32>
    %c218 = arith.constant 218 : index
    %c16_261 = arith.constant 16 : index
    %922 = vector.load %arg5[%c218, %c16_261] : memref<224x32xf32, #tpu.memory_space<vmem>>, vector<2x1xf32>
    %923 = arith.addf %922, %921 : vector<2x1xf32>
    %c220_262 = arith.constant 220 : index
    %c16_263 = arith.constant 16 : index
    %924 = vector.load %arg5[%c220_262, %c16_263] : memref<224x32xf32, #tpu.memory_space<vmem>>, vector<2x1xf32>
    %925 = arith.addf %924, %921 : vector<2x1xf32>
    %926 = vector.broadcast %5 : vector<1x16xf32> to vector<2x16xf32>
    %927 = arith.mulf %809, %926 : vector<2x16xf32>
    %cst_264 = arith.constant dense<0.000000e+00> : vector<2xf32>
    %928 = vector.multi_reduction <add>, %927, %cst_264 [1] : vector<2x16xf32> to vector<2xf32>
    %929 = vector.shape_cast %928 : vector<2xf32> to vector<2x1xf32>
    %930 = vector.broadcast %6 : vector<1x1xf32> to vector<2x1xf32>
    %931 = arith.addf %929, %930 : vector<2x1xf32>
    %932 = vector.broadcast %5 : vector<1x16xf32> to vector<2x16xf32>
    %933 = arith.mulf %601, %932 : vector<2x16xf32>
    %cst_265 = arith.constant dense<0.000000e+00> : vector<2xf32>
    %934 = vector.multi_reduction <add>, %933, %cst_265 [1] : vector<2x16xf32> to vector<2xf32>
    %935 = vector.shape_cast %934 : vector<2xf32> to vector<2x1xf32>
    %936 = vector.broadcast %6 : vector<1x1xf32> to vector<2x1xf32>
    %937 = arith.addf %935, %936 : vector<2x1xf32>
    %938 = tpu.concatenate %923, %925, %921, %931, %937 in 1 : vector<2x1xf32>, vector<2x1xf32>, vector<2x1xf32>, vector<2x1xf32>, vector<2x1xf32> -> vector<2x5xf32>
    %939 = math.tanh %938 : vector<2x5xf32>
    %cst_266 = arith.constant dense<0xFF800000> : vector<2xf32>
    %940 = vector.multi_reduction <maximumf>, %939, %cst_266 [1] : vector<2x5xf32> to vector<2xf32>
    %941 = vector.shape_cast %940 : vector<2xf32> to vector<2x1xf32>
    %942 = vector.broadcast %941 : vector<2x1xf32> to vector<2x5xf32>
    %943 = arith.subf %939, %942 : vector<2x5xf32>
    %944 = math.exp %943 : vector<2x5xf32>
    %cst_267 = arith.constant dense<0.000000e+00> : vector<2xf32>
    %945 = vector.multi_reduction <add>, %944, %cst_267 [1] : vector<2x5xf32> to vector<2xf32>
    %946 = vector.shape_cast %945 : vector<2xf32> to vector<2x1xf32>
    %947 = vector.broadcast %946 : vector<2x1xf32> to vector<2x5xf32>
    %948 = arith.divf %944, %947 : vector<2x5xf32>
    %c218_268 = arith.constant 218 : index
    %c0_269 = arith.constant 0 : index
    %949 = vector.load %arg5[%c218_268, %c0_269] : memref<224x32xf32, #tpu.memory_space<vmem>>, vector<2x16xf32>
    %950 = vector.extract_strided_slice %948 {offsets = [0, 0], sizes = [2, 1], strides = [1, 1]} : vector<2x5xf32> to vector<2x1xf32>
    %951 = vector.broadcast %950 : vector<2x1xf32> to vector<2x16xf32>
    %952 = arith.mulf %951, %915 : vector<2x16xf32>
    %953 = tpu.concatenate %905, %952 in 1 : vector<2x16xf32>, vector<2x16xf32> -> vector<2x32xf32>
    %954 = arith.truncf %953 : vector<2x32xf32> to vector<2x32xbf16>
    %cst_270 = arith.constant dense<0.000000e+00> : vector<2x16xf32>
    %955 = tpu.matmul %954, %9, %cst_270 {dimension_numbers = #tpu.dot_dimension_numbers<[1], [0], [0], [1], [0, 0, 1, 1], [], []>} : vector<2x32xbf16>, vector<32x16xbf16>, vector<2x16xf32> -> vector<2x16xf32>
    %956 = arith.addf %949, %955 : vector<2x16xf32>
    %957 = math.tanh %956 : vector<2x16xf32>
    %cst_271 = arith.constant 2.000000e-01 : f32
    %958 = vector.broadcast %cst_271 : f32 to vector<2x5xf32>
    %c220_272 = arith.constant 220 : index
    %c0_273 = arith.constant 0 : index
    %959 = vector.load %arg5[%c220_272, %c0_273] : memref<224x32xf32, #tpu.memory_space<vmem>>, vector<2x16xf32>
    %960 = vector.extract_strided_slice %958 {offsets = [0, 1], sizes = [2, 1], strides = [1, 1]} : vector<2x5xf32> to vector<2x1xf32>
    %961 = vector.broadcast %960 : vector<2x1xf32> to vector<2x16xf32>
    %962 = arith.mulf %961, %915 : vector<2x16xf32>
    %963 = tpu.concatenate %857, %962 in 1 : vector<2x16xf32>, vector<2x16xf32> -> vector<2x32xf32>
    %964 = arith.truncf %963 : vector<2x32xf32> to vector<2x32xbf16>
    %cst_274 = arith.constant dense<0.000000e+00> : vector<2x16xf32>
    %965 = tpu.matmul %964, %9, %cst_274 {dimension_numbers = #tpu.dot_dimension_numbers<[1], [0], [0], [1], [0, 0, 1, 1], [], []>} : vector<2x32xbf16>, vector<32x16xbf16>, vector<2x16xf32> -> vector<2x16xf32>
    %966 = arith.addf %959, %965 : vector<2x16xf32>
    %967 = math.tanh %966 : vector<2x16xf32>
    %968 = vector.broadcast %5 : vector<1x16xf32> to vector<2x16xf32>
    %969 = arith.mulf %967, %968 : vector<2x16xf32>
    %cst_275 = arith.constant dense<0.000000e+00> : vector<2xf32>
    %970 = vector.multi_reduction <add>, %969, %cst_275 [1] : vector<2x16xf32> to vector<2xf32>
    %971 = vector.shape_cast %970 : vector<2xf32> to vector<2x1xf32>
    %972 = vector.broadcast %6 : vector<1x1xf32> to vector<2x1xf32>
    %973 = arith.addf %971, %972 : vector<2x1xf32>
    %c222 = arith.constant 222 : index
    %c16_276 = arith.constant 16 : index
    %974 = vector.load %arg5[%c222, %c16_276] : memref<224x32xf32, #tpu.memory_space<vmem>>, vector<2x1xf32>
    %975 = arith.addf %974, %973 : vector<2x1xf32>
    %976 = vector.broadcast %5 : vector<1x16xf32> to vector<2x16xf32>
    %977 = arith.mulf %915, %976 : vector<2x16xf32>
    %cst_277 = arith.constant dense<0.000000e+00> : vector<2xf32>
    %978 = vector.multi_reduction <add>, %977, %cst_277 [1] : vector<2x16xf32> to vector<2xf32>
    %979 = vector.shape_cast %978 : vector<2xf32> to vector<2x1xf32>
    %980 = vector.broadcast %6 : vector<1x1xf32> to vector<2x1xf32>
    %981 = arith.addf %979, %980 : vector<2x1xf32>
    %982 = vector.broadcast %5 : vector<1x16xf32> to vector<2x16xf32>
    %983 = arith.mulf %809, %982 : vector<2x16xf32>
    %cst_278 = arith.constant dense<0.000000e+00> : vector<2xf32>
    %984 = vector.multi_reduction <add>, %983, %cst_278 [1] : vector<2x16xf32> to vector<2xf32>
    %985 = vector.shape_cast %984 : vector<2xf32> to vector<2x1xf32>
    %986 = vector.broadcast %6 : vector<1x1xf32> to vector<2x1xf32>
    %987 = arith.addf %985, %986 : vector<2x1xf32>
    %988 = vector.broadcast %5 : vector<1x16xf32> to vector<2x16xf32>
    %989 = arith.mulf %601, %988 : vector<2x16xf32>
    %cst_279 = arith.constant dense<0.000000e+00> : vector<2xf32>
    %990 = vector.multi_reduction <add>, %989, %cst_279 [1] : vector<2x16xf32> to vector<2xf32>
    %991 = vector.shape_cast %990 : vector<2xf32> to vector<2x1xf32>
    %992 = vector.broadcast %6 : vector<1x1xf32> to vector<2x1xf32>
    %993 = arith.addf %991, %992 : vector<2x1xf32>
    %994 = tpu.concatenate %975, %973, %981, %987, %993 in 1 : vector<2x1xf32>, vector<2x1xf32>, vector<2x1xf32>, vector<2x1xf32>, vector<2x1xf32> -> vector<2x5xf32>
    %995 = math.tanh %994 : vector<2x5xf32>
    %cst_280 = arith.constant dense<0xFF800000> : vector<2xf32>
    %996 = vector.multi_reduction <maximumf>, %995, %cst_280 [1] : vector<2x5xf32> to vector<2xf32>
    %997 = vector.shape_cast %996 : vector<2xf32> to vector<2x1xf32>
    %998 = vector.broadcast %997 : vector<2x1xf32> to vector<2x5xf32>
    %999 = arith.subf %995, %998 : vector<2x5xf32>
    %1000 = math.exp %999 : vector<2x5xf32>
    %cst_281 = arith.constant dense<0.000000e+00> : vector<2xf32>
    %1001 = vector.multi_reduction <add>, %1000, %cst_281 [1] : vector<2x5xf32> to vector<2xf32>
    %1002 = vector.shape_cast %1001 : vector<2xf32> to vector<2x1xf32>
    %1003 = vector.broadcast %1002 : vector<2x1xf32> to vector<2x5xf32>
    %1004 = arith.divf %1000, %1003 : vector<2x5xf32>
    %c222_282 = arith.constant 222 : index
    %c0_283 = arith.constant 0 : index
    %1005 = vector.load %arg5[%c222_282, %c0_283] : memref<224x32xf32, #tpu.memory_space<vmem>>, vector<2x16xf32>
    %1006 = vector.extract_strided_slice %1004 {offsets = [0, 0], sizes = [2, 1], strides = [1, 1]} : vector<2x5xf32> to vector<2x1xf32>
    %1007 = vector.broadcast %1006 : vector<2x1xf32> to vector<2x16xf32>
    %1008 = arith.mulf %1007, %967 : vector<2x16xf32>
    %1009 = tpu.concatenate %957, %1008 in 1 : vector<2x16xf32>, vector<2x16xf32> -> vector<2x32xf32>
    %1010 = arith.truncf %1009 : vector<2x32xf32> to vector<2x32xbf16>
    %cst_284 = arith.constant dense<0.000000e+00> : vector<2x16xf32>
    %1011 = tpu.matmul %1010, %9, %cst_284 {dimension_numbers = #tpu.dot_dimension_numbers<[1], [0], [0], [1], [0, 0, 1, 1], [], []>} : vector<2x32xbf16>, vector<32x16xbf16>, vector<2x16xf32> -> vector<2x16xf32>
    %1012 = arith.addf %1005, %1011 : vector<2x16xf32>
    %1013 = math.tanh %1012 : vector<2x16xf32>
    %cst_285 = arith.constant 0.000000e+00 : f32
    %1014 = vector.broadcast %cst_285 : f32 to vector<2x48xf32>
    %1015 = tpu.concatenate %1013, %967, %915, %809, %601, %1014 in 1 : vector<2x16xf32>, vector<2x16xf32>, vector<2x16xf32>, vector<2x16xf32>, vector<2x16xf32>, vector<2x48xf32> -> vector<2x128xf32>
    %c48_286 = arith.constant 48 : index
    %c0_287 = arith.constant 0 : index
    %1016 = vector.load %arg1[%c48_286, %c0_287] : memref<176x128xbf16, #tpu.memory_space<vmem>>, vector<128x128xbf16>
    %1017 = arith.truncf %1015 : vector<2x128xf32> to vector<2x128xbf16>
    %cst_288 = arith.constant dense<0.000000e+00> : vector<2x128xf32>
    %1018 = tpu.matmul %1017, %1016, %cst_288 {dimension_numbers = #tpu.dot_dimension_numbers<[1], [0], [0], [1], [0, 0, 1, 1], [], []>} : vector<2x128xbf16>, vector<128x128xbf16>, vector<2x128xf32> -> vector<2x128xf32>
    %1019 = vector.broadcast %3 : vector<1x128xf32> to vector<2x128xf32>
    %1020 = arith.addf %1018, %1019 : vector<2x128xf32>
    %c224 = arith.constant 224 : index
    %c0_289 = arith.constant 0 : index
    %1021 = vector.load %arg0[%c224, %c0_289] : memref<240x16xbf16, #tpu.memory_space<vmem>>, vector<16x16xbf16>
    %c0_290 = arith.constant 0 : index
    %c0_291 = arith.constant 0 : index
    %1022 = vector.load %arg2[%c0_290, %c0_291] : memref<144x512xbf16, #tpu.memory_space<vmem>>, vector<16x512xbf16>
    %cst_292 = arith.constant dense<0.000000e+00> : vector<16x512xf32>
    %1023 = tpu.matmul %1021, %1022, %cst_292 {dimension_numbers = #tpu.dot_dimension_numbers<[1], [0], [0], [1], [0, 0, 1, 1], [], []>} : vector<16x16xbf16>, vector<16x512xbf16>, vector<16x512xf32> -> vector<16x512xf32>
    %1024 = vector.broadcast %2 : vector<1x512xf32> to vector<16x512xf32>
    %1025 = arith.addf %1023, %1024 : vector<16x512xf32>
    %cst_293 = arith.constant 0.000000e+00 : f32
    %1026 = vector.broadcast %cst_293 : f32 to vector<2x128xf32>
    %c16_294 = arith.constant 16 : index
    %c0_295 = arith.constant 0 : index
    %1027 = vector.load %arg2[%c16_294, %c0_295] : memref<144x512xbf16, #tpu.memory_space<vmem>>, vector<128x512xbf16>
    %1028 = vector.extract_strided_slice %1025 {offsets = [0, 0], sizes = [2, 512], strides = [1, 1]} : vector<16x512xf32> to vector<2x512xf32>
    %1029 = arith.truncf %1015 : vector<2x128xf32> to vector<2x128xbf16>
    %cst_296 = arith.constant dense<0.000000e+00> : vector<2x512xf32>
    %1030 = tpu.matmul %1029, %1027, %cst_296 {dimension_numbers = #tpu.dot_dimension_numbers<[1], [0], [0], [1], [0, 0, 1, 1], [], []>} : vector<2x128xbf16>, vector<128x512xbf16>, vector<2x512xf32> -> vector<2x512xf32>
    %1031 = arith.addf %1028, %1030 : vector<2x512xf32>
    %1032 = vector.extract_strided_slice %1031 {offsets = [0, 0], sizes = [2, 128], strides = [1, 1]} : vector<2x512xf32> to vector<2x128xf32>
    %cst_297 = arith.constant 5.000000e-01 : f32
    %1033 = vector.broadcast %cst_297 : f32 to vector<2x128xf32>
    %1034 = arith.mulf %1033, %1032 : vector<2x128xf32>
    %1035 = math.tanh %1034 : vector<2x128xf32>
    %cst_298 = arith.constant 5.000000e-01 : f32
    %1036 = vector.broadcast %cst_298 : f32 to vector<2x128xf32>
    %1037 = arith.mulf %1036, %1035 : vector<2x128xf32>
    %cst_299 = arith.constant 5.000000e-01 : f32
    %1038 = vector.broadcast %cst_299 : f32 to vector<2x128xf32>
    %1039 = arith.addf %1037, %1038 : vector<2x128xf32>
    %1040 = vector.extract_strided_slice %1031 {offsets = [0, 128], sizes = [2, 128], strides = [1, 1]} : vector<2x512xf32> to vector<2x128xf32>
    %cst_300 = arith.constant 5.000000e-01 : f32
    %1041 = vector.broadcast %cst_300 : f32 to vector<2x128xf32>
    %1042 = arith.mulf %1041, %1040 : vector<2x128xf32>
    %1043 = math.tanh %1042 : vector<2x128xf32>
    %cst_301 = arith.constant 5.000000e-01 : f32
    %1044 = vector.broadcast %cst_301 : f32 to vector<2x128xf32>
    %1045 = arith.mulf %1044, %1043 : vector<2x128xf32>
    %cst_302 = arith.constant 5.000000e-01 : f32
    %1046 = vector.broadcast %cst_302 : f32 to vector<2x128xf32>
    %1047 = arith.addf %1045, %1046 : vector<2x128xf32>
    %1048 = vector.extract_strided_slice %1031 {offsets = [0, 256], sizes = [2, 128], strides = [1, 1]} : vector<2x512xf32> to vector<2x128xf32>
    %1049 = math.tanh %1048 : vector<2x128xf32>
    %1050 = vector.extract_strided_slice %1031 {offsets = [0, 384], sizes = [2, 128], strides = [1, 1]} : vector<2x512xf32> to vector<2x128xf32>
    %cst_303 = arith.constant 5.000000e-01 : f32
    %1051 = vector.broadcast %cst_303 : f32 to vector<2x128xf32>
    %1052 = arith.mulf %1051, %1050 : vector<2x128xf32>
    %1053 = math.tanh %1052 : vector<2x128xf32>
    %cst_304 = arith.constant 5.000000e-01 : f32
    %1054 = vector.broadcast %cst_304 : f32 to vector<2x128xf32>
    %1055 = arith.mulf %1054, %1053 : vector<2x128xf32>
    %cst_305 = arith.constant 5.000000e-01 : f32
    %1056 = vector.broadcast %cst_305 : f32 to vector<2x128xf32>
    %1057 = arith.addf %1055, %1056 : vector<2x128xf32>
    %1058 = arith.mulf %1047, %1026 : vector<2x128xf32>
    %1059 = arith.mulf %1039, %1049 : vector<2x128xf32>
    %1060 = arith.addf %1058, %1059 : vector<2x128xf32>
    %1061 = math.tanh %1060 : vector<2x128xf32>
    %1062 = arith.mulf %1057, %1061 : vector<2x128xf32>
    %1063 = vector.broadcast %4 : vector<1x128xf32> to vector<2x128xf32>
    %1064 = arith.mulf %1062, %1063 : vector<2x128xf32>
    %cst_306 = arith.constant dense<0.000000e+00> : vector<2xf32>
    %1065 = vector.multi_reduction <add>, %1064, %cst_306 [1] : vector<2x128xf32> to vector<2xf32>
    %1066 = vector.shape_cast %1065 : vector<2xf32> to vector<2x1xf32>
    %c16_307 = arith.constant 16 : index
    %c0_308 = arith.constant 0 : index
    %1067 = vector.load %arg2[%c16_307, %c0_308] : memref<144x512xbf16, #tpu.memory_space<vmem>>, vector<128x512xbf16>
    %1068 = vector.extract_strided_slice %1025 {offsets = [2, 0], sizes = [2, 512], strides = [1, 1]} : vector<16x512xf32> to vector<2x512xf32>
    %1069 = arith.truncf %1062 : vector<2x128xf32> to vector<2x128xbf16>
    %cst_309 = arith.constant dense<0.000000e+00> : vector<2x512xf32>
    %1070 = tpu.matmul %1069, %1067, %cst_309 {dimension_numbers = #tpu.dot_dimension_numbers<[1], [0], [0], [1], [0, 0, 1, 1], [], []>} : vector<2x128xbf16>, vector<128x512xbf16>, vector<2x512xf32> -> vector<2x512xf32>
    %1071 = arith.addf %1068, %1070 : vector<2x512xf32>
    %1072 = vector.extract_strided_slice %1071 {offsets = [0, 0], sizes = [2, 128], strides = [1, 1]} : vector<2x512xf32> to vector<2x128xf32>
    %cst_310 = arith.constant 5.000000e-01 : f32
    %1073 = vector.broadcast %cst_310 : f32 to vector<2x128xf32>
    %1074 = arith.mulf %1073, %1072 : vector<2x128xf32>
    %1075 = math.tanh %1074 : vector<2x128xf32>
    %cst_311 = arith.constant 5.000000e-01 : f32
    %1076 = vector.broadcast %cst_311 : f32 to vector<2x128xf32>
    %1077 = arith.mulf %1076, %1075 : vector<2x128xf32>
    %cst_312 = arith.constant 5.000000e-01 : f32
    %1078 = vector.broadcast %cst_312 : f32 to vector<2x128xf32>
    %1079 = arith.addf %1077, %1078 : vector<2x128xf32>
    %1080 = vector.extract_strided_slice %1071 {offsets = [0, 128], sizes = [2, 128], strides = [1, 1]} : vector<2x512xf32> to vector<2x128xf32>
    %cst_313 = arith.constant 5.000000e-01 : f32
    %1081 = vector.broadcast %cst_313 : f32 to vector<2x128xf32>
    %1082 = arith.mulf %1081, %1080 : vector<2x128xf32>
    %1083 = math.tanh %1082 : vector<2x128xf32>
    %cst_314 = arith.constant 5.000000e-01 : f32
    %1084 = vector.broadcast %cst_314 : f32 to vector<2x128xf32>
    %1085 = arith.mulf %1084, %1083 : vector<2x128xf32>
    %cst_315 = arith.constant 5.000000e-01 : f32
    %1086 = vector.broadcast %cst_315 : f32 to vector<2x128xf32>
    %1087 = arith.addf %1085, %1086 : vector<2x128xf32>
    %1088 = vector.extract_strided_slice %1071 {offsets = [0, 256], sizes = [2, 128], strides = [1, 1]} : vector<2x512xf32> to vector<2x128xf32>
    %1089 = math.tanh %1088 : vector<2x128xf32>
    %1090 = vector.extract_strided_slice %1071 {offsets = [0, 384], sizes = [2, 128], strides = [1, 1]} : vector<2x512xf32> to vector<2x128xf32>
    %cst_316 = arith.constant 5.000000e-01 : f32
    %1091 = vector.broadcast %cst_316 : f32 to vector<2x128xf32>
    %1092 = arith.mulf %1091, %1090 : vector<2x128xf32>
    %1093 = math.tanh %1092 : vector<2x128xf32>
    %cst_317 = arith.constant 5.000000e-01 : f32
    %1094 = vector.broadcast %cst_317 : f32 to vector<2x128xf32>
    %1095 = arith.mulf %1094, %1093 : vector<2x128xf32>
    %cst_318 = arith.constant 5.000000e-01 : f32
    %1096 = vector.broadcast %cst_318 : f32 to vector<2x128xf32>
    %1097 = arith.addf %1095, %1096 : vector<2x128xf32>
    %1098 = arith.mulf %1087, %1060 : vector<2x128xf32>
    %1099 = arith.mulf %1079, %1089 : vector<2x128xf32>
    %1100 = arith.addf %1098, %1099 : vector<2x128xf32>
    %1101 = math.tanh %1100 : vector<2x128xf32>
    %1102 = arith.mulf %1097, %1101 : vector<2x128xf32>
    %1103 = vector.broadcast %4 : vector<1x128xf32> to vector<2x128xf32>
    %1104 = arith.mulf %1102, %1103 : vector<2x128xf32>
    %cst_319 = arith.constant dense<0.000000e+00> : vector<2xf32>
    %1105 = vector.multi_reduction <add>, %1104, %cst_319 [1] : vector<2x128xf32> to vector<2xf32>
    %1106 = vector.shape_cast %1105 : vector<2xf32> to vector<2x1xf32>
    %c16_320 = arith.constant 16 : index
    %c0_321 = arith.constant 0 : index
    %1107 = vector.load %arg2[%c16_320, %c0_321] : memref<144x512xbf16, #tpu.memory_space<vmem>>, vector<128x512xbf16>
    %1108 = vector.extract_strided_slice %1025 {offsets = [4, 0], sizes = [2, 512], strides = [1, 1]} : vector<16x512xf32> to vector<2x512xf32>
    %1109 = arith.truncf %1102 : vector<2x128xf32> to vector<2x128xbf16>
    %cst_322 = arith.constant dense<0.000000e+00> : vector<2x512xf32>
    %1110 = tpu.matmul %1109, %1107, %cst_322 {dimension_numbers = #tpu.dot_dimension_numbers<[1], [0], [0], [1], [0, 0, 1, 1], [], []>} : vector<2x128xbf16>, vector<128x512xbf16>, vector<2x512xf32> -> vector<2x512xf32>
    %1111 = arith.addf %1108, %1110 : vector<2x512xf32>
    %1112 = vector.extract_strided_slice %1111 {offsets = [0, 0], sizes = [2, 128], strides = [1, 1]} : vector<2x512xf32> to vector<2x128xf32>
    %cst_323 = arith.constant 5.000000e-01 : f32
    %1113 = vector.broadcast %cst_323 : f32 to vector<2x128xf32>
    %1114 = arith.mulf %1113, %1112 : vector<2x128xf32>
    %1115 = math.tanh %1114 : vector<2x128xf32>
    %cst_324 = arith.constant 5.000000e-01 : f32
    %1116 = vector.broadcast %cst_324 : f32 to vector<2x128xf32>
    %1117 = arith.mulf %1116, %1115 : vector<2x128xf32>
    %cst_325 = arith.constant 5.000000e-01 : f32
    %1118 = vector.broadcast %cst_325 : f32 to vector<2x128xf32>
    %1119 = arith.addf %1117, %1118 : vector<2x128xf32>
    %1120 = vector.extract_strided_slice %1111 {offsets = [0, 128], sizes = [2, 128], strides = [1, 1]} : vector<2x512xf32> to vector<2x128xf32>
    %cst_326 = arith.constant 5.000000e-01 : f32
    %1121 = vector.broadcast %cst_326 : f32 to vector<2x128xf32>
    %1122 = arith.mulf %1121, %1120 : vector<2x128xf32>
    %1123 = math.tanh %1122 : vector<2x128xf32>
    %cst_327 = arith.constant 5.000000e-01 : f32
    %1124 = vector.broadcast %cst_327 : f32 to vector<2x128xf32>
    %1125 = arith.mulf %1124, %1123 : vector<2x128xf32>
    %cst_328 = arith.constant 5.000000e-01 : f32
    %1126 = vector.broadcast %cst_328 : f32 to vector<2x128xf32>
    %1127 = arith.addf %1125, %1126 : vector<2x128xf32>
    %1128 = vector.extract_strided_slice %1111 {offsets = [0, 256], sizes = [2, 128], strides = [1, 1]} : vector<2x512xf32> to vector<2x128xf32>
    %1129 = math.tanh %1128 : vector<2x128xf32>
    %1130 = vector.extract_strided_slice %1111 {offsets = [0, 384], sizes = [2, 128], strides = [1, 1]} : vector<2x512xf32> to vector<2x128xf32>
    %cst_329 = arith.constant 5.000000e-01 : f32
    %1131 = vector.broadcast %cst_329 : f32 to vector<2x128xf32>
    %1132 = arith.mulf %1131, %1130 : vector<2x128xf32>
    %1133 = math.tanh %1132 : vector<2x128xf32>
    %cst_330 = arith.constant 5.000000e-01 : f32
    %1134 = vector.broadcast %cst_330 : f32 to vector<2x128xf32>
    %1135 = arith.mulf %1134, %1133 : vector<2x128xf32>
    %cst_331 = arith.constant 5.000000e-01 : f32
    %1136 = vector.broadcast %cst_331 : f32 to vector<2x128xf32>
    %1137 = arith.addf %1135, %1136 : vector<2x128xf32>
    %1138 = arith.mulf %1127, %1100 : vector<2x128xf32>
    %1139 = arith.mulf %1119, %1129 : vector<2x128xf32>
    %1140 = arith.addf %1138, %1139 : vector<2x128xf32>
    %1141 = math.tanh %1140 : vector<2x128xf32>
    %1142 = arith.mulf %1137, %1141 : vector<2x128xf32>
    %1143 = vector.broadcast %4 : vector<1x128xf32> to vector<2x128xf32>
    %1144 = arith.mulf %1142, %1143 : vector<2x128xf32>
    %cst_332 = arith.constant dense<0.000000e+00> : vector<2xf32>
    %1145 = vector.multi_reduction <add>, %1144, %cst_332 [1] : vector<2x128xf32> to vector<2xf32>
    %1146 = vector.shape_cast %1145 : vector<2xf32> to vector<2x1xf32>
    %c16_333 = arith.constant 16 : index
    %c0_334 = arith.constant 0 : index
    %1147 = vector.load %arg2[%c16_333, %c0_334] : memref<144x512xbf16, #tpu.memory_space<vmem>>, vector<128x512xbf16>
    %1148 = vector.extract_strided_slice %1025 {offsets = [6, 0], sizes = [2, 512], strides = [1, 1]} : vector<16x512xf32> to vector<2x512xf32>
    %1149 = arith.truncf %1142 : vector<2x128xf32> to vector<2x128xbf16>
    %cst_335 = arith.constant dense<0.000000e+00> : vector<2x512xf32>
    %1150 = tpu.matmul %1149, %1147, %cst_335 {dimension_numbers = #tpu.dot_dimension_numbers<[1], [0], [0], [1], [0, 0, 1, 1], [], []>} : vector<2x128xbf16>, vector<128x512xbf16>, vector<2x512xf32> -> vector<2x512xf32>
    %1151 = arith.addf %1148, %1150 : vector<2x512xf32>
    %1152 = vector.extract_strided_slice %1151 {offsets = [0, 0], sizes = [2, 128], strides = [1, 1]} : vector<2x512xf32> to vector<2x128xf32>
    %cst_336 = arith.constant 5.000000e-01 : f32
    %1153 = vector.broadcast %cst_336 : f32 to vector<2x128xf32>
    %1154 = arith.mulf %1153, %1152 : vector<2x128xf32>
    %1155 = math.tanh %1154 : vector<2x128xf32>
    %cst_337 = arith.constant 5.000000e-01 : f32
    %1156 = vector.broadcast %cst_337 : f32 to vector<2x128xf32>
    %1157 = arith.mulf %1156, %1155 : vector<2x128xf32>
    %cst_338 = arith.constant 5.000000e-01 : f32
    %1158 = vector.broadcast %cst_338 : f32 to vector<2x128xf32>
    %1159 = arith.addf %1157, %1158 : vector<2x128xf32>
    %1160 = vector.extract_strided_slice %1151 {offsets = [0, 128], sizes = [2, 128], strides = [1, 1]} : vector<2x512xf32> to vector<2x128xf32>
    %cst_339 = arith.constant 5.000000e-01 : f32
    %1161 = vector.broadcast %cst_339 : f32 to vector<2x128xf32>
    %1162 = arith.mulf %1161, %1160 : vector<2x128xf32>
    %1163 = math.tanh %1162 : vector<2x128xf32>
    %cst_340 = arith.constant 5.000000e-01 : f32
    %1164 = vector.broadcast %cst_340 : f32 to vector<2x128xf32>
    %1165 = arith.mulf %1164, %1163 : vector<2x128xf32>
    %cst_341 = arith.constant 5.000000e-01 : f32
    %1166 = vector.broadcast %cst_341 : f32 to vector<2x128xf32>
    %1167 = arith.addf %1165, %1166 : vector<2x128xf32>
    %1168 = vector.extract_strided_slice %1151 {offsets = [0, 256], sizes = [2, 128], strides = [1, 1]} : vector<2x512xf32> to vector<2x128xf32>
    %1169 = math.tanh %1168 : vector<2x128xf32>
    %1170 = vector.extract_strided_slice %1151 {offsets = [0, 384], sizes = [2, 128], strides = [1, 1]} : vector<2x512xf32> to vector<2x128xf32>
    %cst_342 = arith.constant 5.000000e-01 : f32
    %1171 = vector.broadcast %cst_342 : f32 to vector<2x128xf32>
    %1172 = arith.mulf %1171, %1170 : vector<2x128xf32>
    %1173 = math.tanh %1172 : vector<2x128xf32>
    %cst_343 = arith.constant 5.000000e-01 : f32
    %1174 = vector.broadcast %cst_343 : f32 to vector<2x128xf32>
    %1175 = arith.mulf %1174, %1173 : vector<2x128xf32>
    %cst_344 = arith.constant 5.000000e-01 : f32
    %1176 = vector.broadcast %cst_344 : f32 to vector<2x128xf32>
    %1177 = arith.addf %1175, %1176 : vector<2x128xf32>
    %1178 = arith.mulf %1167, %1140 : vector<2x128xf32>
    %1179 = arith.mulf %1159, %1169 : vector<2x128xf32>
    %1180 = arith.addf %1178, %1179 : vector<2x128xf32>
    %1181 = math.tanh %1180 : vector<2x128xf32>
    %1182 = arith.mulf %1177, %1181 : vector<2x128xf32>
    %1183 = vector.broadcast %4 : vector<1x128xf32> to vector<2x128xf32>
    %1184 = arith.mulf %1182, %1183 : vector<2x128xf32>
    %cst_345 = arith.constant dense<0.000000e+00> : vector<2xf32>
    %1185 = vector.multi_reduction <add>, %1184, %cst_345 [1] : vector<2x128xf32> to vector<2xf32>
    %1186 = vector.shape_cast %1185 : vector<2xf32> to vector<2x1xf32>
    %c16_346 = arith.constant 16 : index
    %c0_347 = arith.constant 0 : index
    %1187 = vector.load %arg2[%c16_346, %c0_347] : memref<144x512xbf16, #tpu.memory_space<vmem>>, vector<128x512xbf16>
    %1188 = vector.extract_strided_slice %1025 {offsets = [8, 0], sizes = [2, 512], strides = [1, 1]} : vector<16x512xf32> to vector<2x512xf32>
    %1189 = arith.truncf %1182 : vector<2x128xf32> to vector<2x128xbf16>
    %cst_348 = arith.constant dense<0.000000e+00> : vector<2x512xf32>
    %1190 = tpu.matmul %1189, %1187, %cst_348 {dimension_numbers = #tpu.dot_dimension_numbers<[1], [0], [0], [1], [0, 0, 1, 1], [], []>} : vector<2x128xbf16>, vector<128x512xbf16>, vector<2x512xf32> -> vector<2x512xf32>
    %1191 = arith.addf %1188, %1190 : vector<2x512xf32>
    %1192 = vector.extract_strided_slice %1191 {offsets = [0, 0], sizes = [2, 128], strides = [1, 1]} : vector<2x512xf32> to vector<2x128xf32>
    %cst_349 = arith.constant 5.000000e-01 : f32
    %1193 = vector.broadcast %cst_349 : f32 to vector<2x128xf32>
    %1194 = arith.mulf %1193, %1192 : vector<2x128xf32>
    %1195 = math.tanh %1194 : vector<2x128xf32>
    %cst_350 = arith.constant 5.000000e-01 : f32
    %1196 = vector.broadcast %cst_350 : f32 to vector<2x128xf32>
    %1197 = arith.mulf %1196, %1195 : vector<2x128xf32>
    %cst_351 = arith.constant 5.000000e-01 : f32
    %1198 = vector.broadcast %cst_351 : f32 to vector<2x128xf32>
    %1199 = arith.addf %1197, %1198 : vector<2x128xf32>
    %1200 = vector.extract_strided_slice %1191 {offsets = [0, 128], sizes = [2, 128], strides = [1, 1]} : vector<2x512xf32> to vector<2x128xf32>
    %cst_352 = arith.constant 5.000000e-01 : f32
    %1201 = vector.broadcast %cst_352 : f32 to vector<2x128xf32>
    %1202 = arith.mulf %1201, %1200 : vector<2x128xf32>
    %1203 = math.tanh %1202 : vector<2x128xf32>
    %cst_353 = arith.constant 5.000000e-01 : f32
    %1204 = vector.broadcast %cst_353 : f32 to vector<2x128xf32>
    %1205 = arith.mulf %1204, %1203 : vector<2x128xf32>
    %cst_354 = arith.constant 5.000000e-01 : f32
    %1206 = vector.broadcast %cst_354 : f32 to vector<2x128xf32>
    %1207 = arith.addf %1205, %1206 : vector<2x128xf32>
    %1208 = vector.extract_strided_slice %1191 {offsets = [0, 256], sizes = [2, 128], strides = [1, 1]} : vector<2x512xf32> to vector<2x128xf32>
    %1209 = math.tanh %1208 : vector<2x128xf32>
    %1210 = vector.extract_strided_slice %1191 {offsets = [0, 384], sizes = [2, 128], strides = [1, 1]} : vector<2x512xf32> to vector<2x128xf32>
    %cst_355 = arith.constant 5.000000e-01 : f32
    %1211 = vector.broadcast %cst_355 : f32 to vector<2x128xf32>
    %1212 = arith.mulf %1211, %1210 : vector<2x128xf32>
    %1213 = math.tanh %1212 : vector<2x128xf32>
    %cst_356 = arith.constant 5.000000e-01 : f32
    %1214 = vector.broadcast %cst_356 : f32 to vector<2x128xf32>
    %1215 = arith.mulf %1214, %1213 : vector<2x128xf32>
    %cst_357 = arith.constant 5.000000e-01 : f32
    %1216 = vector.broadcast %cst_357 : f32 to vector<2x128xf32>
    %1217 = arith.addf %1215, %1216 : vector<2x128xf32>
    %1218 = arith.mulf %1207, %1180 : vector<2x128xf32>
    %1219 = arith.mulf %1199, %1209 : vector<2x128xf32>
    %1220 = arith.addf %1218, %1219 : vector<2x128xf32>
    %1221 = math.tanh %1220 : vector<2x128xf32>
    %1222 = arith.mulf %1217, %1221 : vector<2x128xf32>
    %1223 = vector.broadcast %4 : vector<1x128xf32> to vector<2x128xf32>
    %1224 = arith.mulf %1222, %1223 : vector<2x128xf32>
    %cst_358 = arith.constant dense<0.000000e+00> : vector<2xf32>
    %1225 = vector.multi_reduction <add>, %1224, %cst_358 [1] : vector<2x128xf32> to vector<2xf32>
    %1226 = vector.shape_cast %1225 : vector<2xf32> to vector<2x1xf32>
    %c16_359 = arith.constant 16 : index
    %c0_360 = arith.constant 0 : index
    %1227 = vector.load %arg2[%c16_359, %c0_360] : memref<144x512xbf16, #tpu.memory_space<vmem>>, vector<128x512xbf16>
    %1228 = vector.extract_strided_slice %1025 {offsets = [10, 0], sizes = [2, 512], strides = [1, 1]} : vector<16x512xf32> to vector<2x512xf32>
    %1229 = arith.truncf %1222 : vector<2x128xf32> to vector<2x128xbf16>
    %cst_361 = arith.constant dense<0.000000e+00> : vector<2x512xf32>
    %1230 = tpu.matmul %1229, %1227, %cst_361 {dimension_numbers = #tpu.dot_dimension_numbers<[1], [0], [0], [1], [0, 0, 1, 1], [], []>} : vector<2x128xbf16>, vector<128x512xbf16>, vector<2x512xf32> -> vector<2x512xf32>
    %1231 = arith.addf %1228, %1230 : vector<2x512xf32>
    %1232 = vector.extract_strided_slice %1231 {offsets = [0, 0], sizes = [2, 128], strides = [1, 1]} : vector<2x512xf32> to vector<2x128xf32>
    %cst_362 = arith.constant 5.000000e-01 : f32
    %1233 = vector.broadcast %cst_362 : f32 to vector<2x128xf32>
    %1234 = arith.mulf %1233, %1232 : vector<2x128xf32>
    %1235 = math.tanh %1234 : vector<2x128xf32>
    %cst_363 = arith.constant 5.000000e-01 : f32
    %1236 = vector.broadcast %cst_363 : f32 to vector<2x128xf32>
    %1237 = arith.mulf %1236, %1235 : vector<2x128xf32>
    %cst_364 = arith.constant 5.000000e-01 : f32
    %1238 = vector.broadcast %cst_364 : f32 to vector<2x128xf32>
    %1239 = arith.addf %1237, %1238 : vector<2x128xf32>
    %1240 = vector.extract_strided_slice %1231 {offsets = [0, 128], sizes = [2, 128], strides = [1, 1]} : vector<2x512xf32> to vector<2x128xf32>
    %cst_365 = arith.constant 5.000000e-01 : f32
    %1241 = vector.broadcast %cst_365 : f32 to vector<2x128xf32>
    %1242 = arith.mulf %1241, %1240 : vector<2x128xf32>
    %1243 = math.tanh %1242 : vector<2x128xf32>
    %cst_366 = arith.constant 5.000000e-01 : f32
    %1244 = vector.broadcast %cst_366 : f32 to vector<2x128xf32>
    %1245 = arith.mulf %1244, %1243 : vector<2x128xf32>
    %cst_367 = arith.constant 5.000000e-01 : f32
    %1246 = vector.broadcast %cst_367 : f32 to vector<2x128xf32>
    %1247 = arith.addf %1245, %1246 : vector<2x128xf32>
    %1248 = vector.extract_strided_slice %1231 {offsets = [0, 256], sizes = [2, 128], strides = [1, 1]} : vector<2x512xf32> to vector<2x128xf32>
    %1249 = math.tanh %1248 : vector<2x128xf32>
    %1250 = vector.extract_strided_slice %1231 {offsets = [0, 384], sizes = [2, 128], strides = [1, 1]} : vector<2x512xf32> to vector<2x128xf32>
    %cst_368 = arith.constant 5.000000e-01 : f32
    %1251 = vector.broadcast %cst_368 : f32 to vector<2x128xf32>
    %1252 = arith.mulf %1251, %1250 : vector<2x128xf32>
    %1253 = math.tanh %1252 : vector<2x128xf32>
    %cst_369 = arith.constant 5.000000e-01 : f32
    %1254 = vector.broadcast %cst_369 : f32 to vector<2x128xf32>
    %1255 = arith.mulf %1254, %1253 : vector<2x128xf32>
    %cst_370 = arith.constant 5.000000e-01 : f32
    %1256 = vector.broadcast %cst_370 : f32 to vector<2x128xf32>
    %1257 = arith.addf %1255, %1256 : vector<2x128xf32>
    %1258 = arith.mulf %1247, %1220 : vector<2x128xf32>
    %1259 = arith.mulf %1239, %1249 : vector<2x128xf32>
    %1260 = arith.addf %1258, %1259 : vector<2x128xf32>
    %1261 = math.tanh %1260 : vector<2x128xf32>
    %1262 = arith.mulf %1257, %1261 : vector<2x128xf32>
    %1263 = vector.broadcast %4 : vector<1x128xf32> to vector<2x128xf32>
    %1264 = arith.mulf %1262, %1263 : vector<2x128xf32>
    %cst_371 = arith.constant dense<0.000000e+00> : vector<2xf32>
    %1265 = vector.multi_reduction <add>, %1264, %cst_371 [1] : vector<2x128xf32> to vector<2xf32>
    %1266 = vector.shape_cast %1265 : vector<2xf32> to vector<2x1xf32>
    %c16_372 = arith.constant 16 : index
    %c0_373 = arith.constant 0 : index
    %1267 = vector.load %arg2[%c16_372, %c0_373] : memref<144x512xbf16, #tpu.memory_space<vmem>>, vector<128x512xbf16>
    %1268 = vector.extract_strided_slice %1025 {offsets = [12, 0], sizes = [2, 512], strides = [1, 1]} : vector<16x512xf32> to vector<2x512xf32>
    %1269 = arith.truncf %1262 : vector<2x128xf32> to vector<2x128xbf16>
    %cst_374 = arith.constant dense<0.000000e+00> : vector<2x512xf32>
    %1270 = tpu.matmul %1269, %1267, %cst_374 {dimension_numbers = #tpu.dot_dimension_numbers<[1], [0], [0], [1], [0, 0, 1, 1], [], []>} : vector<2x128xbf16>, vector<128x512xbf16>, vector<2x512xf32> -> vector<2x512xf32>
    %1271 = arith.addf %1268, %1270 : vector<2x512xf32>
    %1272 = vector.extract_strided_slice %1271 {offsets = [0, 0], sizes = [2, 128], strides = [1, 1]} : vector<2x512xf32> to vector<2x128xf32>
    %cst_375 = arith.constant 5.000000e-01 : f32
    %1273 = vector.broadcast %cst_375 : f32 to vector<2x128xf32>
    %1274 = arith.mulf %1273, %1272 : vector<2x128xf32>
    %1275 = math.tanh %1274 : vector<2x128xf32>
    %cst_376 = arith.constant 5.000000e-01 : f32
    %1276 = vector.broadcast %cst_376 : f32 to vector<2x128xf32>
    %1277 = arith.mulf %1276, %1275 : vector<2x128xf32>
    %cst_377 = arith.constant 5.000000e-01 : f32
    %1278 = vector.broadcast %cst_377 : f32 to vector<2x128xf32>
    %1279 = arith.addf %1277, %1278 : vector<2x128xf32>
    %1280 = vector.extract_strided_slice %1271 {offsets = [0, 128], sizes = [2, 128], strides = [1, 1]} : vector<2x512xf32> to vector<2x128xf32>
    %cst_378 = arith.constant 5.000000e-01 : f32
    %1281 = vector.broadcast %cst_378 : f32 to vector<2x128xf32>
    %1282 = arith.mulf %1281, %1280 : vector<2x128xf32>
    %1283 = math.tanh %1282 : vector<2x128xf32>
    %cst_379 = arith.constant 5.000000e-01 : f32
    %1284 = vector.broadcast %cst_379 : f32 to vector<2x128xf32>
    %1285 = arith.mulf %1284, %1283 : vector<2x128xf32>
    %cst_380 = arith.constant 5.000000e-01 : f32
    %1286 = vector.broadcast %cst_380 : f32 to vector<2x128xf32>
    %1287 = arith.addf %1285, %1286 : vector<2x128xf32>
    %1288 = vector.extract_strided_slice %1271 {offsets = [0, 256], sizes = [2, 128], strides = [1, 1]} : vector<2x512xf32> to vector<2x128xf32>
    %1289 = math.tanh %1288 : vector<2x128xf32>
    %1290 = vector.extract_strided_slice %1271 {offsets = [0, 384], sizes = [2, 128], strides = [1, 1]} : vector<2x512xf32> to vector<2x128xf32>
    %cst_381 = arith.constant 5.000000e-01 : f32
    %1291 = vector.broadcast %cst_381 : f32 to vector<2x128xf32>
    %1292 = arith.mulf %1291, %1290 : vector<2x128xf32>
    %1293 = math.tanh %1292 : vector<2x128xf32>
    %cst_382 = arith.constant 5.000000e-01 : f32
    %1294 = vector.broadcast %cst_382 : f32 to vector<2x128xf32>
    %1295 = arith.mulf %1294, %1293 : vector<2x128xf32>
    %cst_383 = arith.constant 5.000000e-01 : f32
    %1296 = vector.broadcast %cst_383 : f32 to vector<2x128xf32>
    %1297 = arith.addf %1295, %1296 : vector<2x128xf32>
    %1298 = arith.mulf %1287, %1260 : vector<2x128xf32>
    %1299 = arith.mulf %1279, %1289 : vector<2x128xf32>
    %1300 = arith.addf %1298, %1299 : vector<2x128xf32>
    %1301 = math.tanh %1300 : vector<2x128xf32>
    %1302 = arith.mulf %1297, %1301 : vector<2x128xf32>
    %1303 = vector.broadcast %4 : vector<1x128xf32> to vector<2x128xf32>
    %1304 = arith.mulf %1302, %1303 : vector<2x128xf32>
    %cst_384 = arith.constant dense<0.000000e+00> : vector<2xf32>
    %1305 = vector.multi_reduction <add>, %1304, %cst_384 [1] : vector<2x128xf32> to vector<2xf32>
    %1306 = vector.shape_cast %1305 : vector<2xf32> to vector<2x1xf32>
    %c16_385 = arith.constant 16 : index
    %c0_386 = arith.constant 0 : index
    %1307 = vector.load %arg2[%c16_385, %c0_386] : memref<144x512xbf16, #tpu.memory_space<vmem>>, vector<128x512xbf16>
    %1308 = vector.extract_strided_slice %1025 {offsets = [14, 0], sizes = [2, 512], strides = [1, 1]} : vector<16x512xf32> to vector<2x512xf32>
    %1309 = arith.truncf %1302 : vector<2x128xf32> to vector<2x128xbf16>
    %cst_387 = arith.constant dense<0.000000e+00> : vector<2x512xf32>
    %1310 = tpu.matmul %1309, %1307, %cst_387 {dimension_numbers = #tpu.dot_dimension_numbers<[1], [0], [0], [1], [0, 0, 1, 1], [], []>} : vector<2x128xbf16>, vector<128x512xbf16>, vector<2x512xf32> -> vector<2x512xf32>
    %1311 = arith.addf %1308, %1310 : vector<2x512xf32>
    %1312 = vector.extract_strided_slice %1311 {offsets = [0, 0], sizes = [2, 128], strides = [1, 1]} : vector<2x512xf32> to vector<2x128xf32>
    %cst_388 = arith.constant 5.000000e-01 : f32
    %1313 = vector.broadcast %cst_388 : f32 to vector<2x128xf32>
    %1314 = arith.mulf %1313, %1312 : vector<2x128xf32>
    %1315 = math.tanh %1314 : vector<2x128xf32>
    %cst_389 = arith.constant 5.000000e-01 : f32
    %1316 = vector.broadcast %cst_389 : f32 to vector<2x128xf32>
    %1317 = arith.mulf %1316, %1315 : vector<2x128xf32>
    %cst_390 = arith.constant 5.000000e-01 : f32
    %1318 = vector.broadcast %cst_390 : f32 to vector<2x128xf32>
    %1319 = arith.addf %1317, %1318 : vector<2x128xf32>
    %1320 = vector.extract_strided_slice %1311 {offsets = [0, 128], sizes = [2, 128], strides = [1, 1]} : vector<2x512xf32> to vector<2x128xf32>
    %cst_391 = arith.constant 5.000000e-01 : f32
    %1321 = vector.broadcast %cst_391 : f32 to vector<2x128xf32>
    %1322 = arith.mulf %1321, %1320 : vector<2x128xf32>
    %1323 = math.tanh %1322 : vector<2x128xf32>
    %cst_392 = arith.constant 5.000000e-01 : f32
    %1324 = vector.broadcast %cst_392 : f32 to vector<2x128xf32>
    %1325 = arith.mulf %1324, %1323 : vector<2x128xf32>
    %cst_393 = arith.constant 5.000000e-01 : f32
    %1326 = vector.broadcast %cst_393 : f32 to vector<2x128xf32>
    %1327 = arith.addf %1325, %1326 : vector<2x128xf32>
    %1328 = vector.extract_strided_slice %1311 {offsets = [0, 256], sizes = [2, 128], strides = [1, 1]} : vector<2x512xf32> to vector<2x128xf32>
    %1329 = math.tanh %1328 : vector<2x128xf32>
    %1330 = vector.extract_strided_slice %1311 {offsets = [0, 384], sizes = [2, 128], strides = [1, 1]} : vector<2x512xf32> to vector<2x128xf32>
    %cst_394 = arith.constant 5.000000e-01 : f32
    %1331 = vector.broadcast %cst_394 : f32 to vector<2x128xf32>
    %1332 = arith.mulf %1331, %1330 : vector<2x128xf32>
    %1333 = math.tanh %1332 : vector<2x128xf32>
    %cst_395 = arith.constant 5.000000e-01 : f32
    %1334 = vector.broadcast %cst_395 : f32 to vector<2x128xf32>
    %1335 = arith.mulf %1334, %1333 : vector<2x128xf32>
    %cst_396 = arith.constant 5.000000e-01 : f32
    %1336 = vector.broadcast %cst_396 : f32 to vector<2x128xf32>
    %1337 = arith.addf %1335, %1336 : vector<2x128xf32>
    %1338 = arith.mulf %1327, %1300 : vector<2x128xf32>
    %1339 = arith.mulf %1319, %1329 : vector<2x128xf32>
    %1340 = arith.addf %1338, %1339 : vector<2x128xf32>
    %1341 = math.tanh %1340 : vector<2x128xf32>
    %1342 = arith.mulf %1337, %1341 : vector<2x128xf32>
    %1343 = vector.broadcast %4 : vector<1x128xf32> to vector<2x128xf32>
    %1344 = arith.mulf %1342, %1343 : vector<2x128xf32>
    %cst_397 = arith.constant dense<0.000000e+00> : vector<2xf32>
    %1345 = vector.multi_reduction <add>, %1344, %cst_397 [1] : vector<2x128xf32> to vector<2xf32>
    %1346 = vector.shape_cast %1345 : vector<2xf32> to vector<2x1xf32>
    %1347 = tpu.concatenate %1066, %1106, %1146, %1186, %1226, %1266, %1306, %1346 in 1 : vector<2x1xf32>, vector<2x1xf32>, vector<2x1xf32>, vector<2x1xf32>, vector<2x1xf32>, vector<2x1xf32>, vector<2x1xf32>, vector<2x1xf32> -> vector<2x8xf32>
    %1348 = vector.broadcast %7 : vector<1x1xf32> to vector<2x8xf32>
    %1349 = arith.addf %1347, %1348 : vector<2x8xf32>
    %1350 = vector.extract_strided_slice %1020 {offsets = [0, 0], sizes = [2, 112], strides = [1, 1]} : vector<2x128xf32> to vector<2x112xf32>
    %1351 = vector.extract_strided_slice %1020 {offsets = [0, 120], sizes = [2, 8], strides = [1, 1]} : vector<2x128xf32> to vector<2x8xf32>
    %1352 = tpu.concatenate %1350, %1349, %1351 in 1 : vector<2x112xf32>, vector<2x8xf32>, vector<2x8xf32> -> vector<2x128xf32>
    %c0_398 = arith.constant 0 : index
    %c0_399 = arith.constant 0 : index
    %1353 = vector.load %arg4[%c0_398, %c0_399] : memref<2x128xf32, #tpu.memory_space<vmem>>, vector<2x128xf32>
    tpu.vector_store %arg4[%c0_398, %c0_399], %1352 {strides = array<i32>} : memref<2x128xf32, #tpu.memory_space<vmem>>, vector<2x128xf32>,
    return
  }
}

</mosaic_0001>

<llo_original>
// kernel: encoder1_forward.1
$region0: #{encoder1_forward.1}
  #allocation0 [shape = 'u32[]', space=smem, size = 0x4, offset = 0x4, fixed_abs, tag = 'smem constant byte address 0x4 - core index']
  #allocation1 [shape = 'u32[72,128]{1,0:T(1,128)}', space=vmem, size = 0x9000, scoped, tag = 'internal scratch']
  #allocation2 [shape = 'f32[224,32]{1,0:T(8,128)}', space=vmem, size = 0x1c000, scoped, tag = 'scratch operand']
  %s0 = inlined_call_operand.vmem [shape: bf16[240,16], index: 0, kind: input, shape index: {}]
  %s1 = inlined_call_operand.vmem [shape: bf16[176,128], index: 1, kind: input, shape index: {}]
  %s2 = inlined_call_operand.vmem [shape: bf16[144,512], index: 2, kind: input, shape index: {}]
  %s3 = inlined_call_operand.vmem [shape: f32[8,512], index: 3, kind: input, shape index: {}]
  %s4 = inlined_call_operand.hbm [shape: f32[2,128], index: 4, kind: output, shape index: {}]
  %s5 = sld [smem:[#allocation0]]
  $region26: #{encoder1_forward.1} parent=0
    _
  %s7 = ssub.s32 1, %s5
  %s8 = scalar_select 0, %s7, %s5
  $region1: #{encoder1_forward.1} parent=0
    #allocation3 [shape = 'u8[1024]{0}', space=vmem, size = 0x400, scoped, tag = 'output window, operand 0, single buffered']
    #allocation4 [shape = 's32[1]{0}', space=sflag, size = 0x4, scoped, tag = 'scoped memory for encoder1_forward.1']
    %9 = vsyncpa [#allocation4], 0
    // Predicated region
    $region2: #{encoder1_forward.1} parent=1 // pred_check
      _
    $region3: #{encoder1_forward.1} parent=1 // pred_check_branch
      %11 = sbr.rel (0) target = $region5
    $region4: #{encoder1_forward.1} parent=1 // pred_region
      _
    $region5: #{encoder1_forward.1} parent=1 // pred_fallthru
      _
    // Predicated region
    $region6: #{encoder1_forward.1} parent=1 // pred_check
      _
    $region7: #{encoder1_forward.1} parent=1 // pred_check_branch
      %13 = sbr.rel (0) target = $region9
    $region8: #{encoder1_forward.1} parent=1 // pred_region
      _
    $region9: #{encoder1_forward.1} parent=1 // pred_fallthru
      _
    // Predicated region
    $region10: #{encoder1_forward.1} parent=1 // pred_check
      _
    $region11: #{encoder1_forward.1} parent=1 // pred_check_branch
      %15 = sbr.rel (0) target = $region13
    $region12: #{encoder1_forward.1} parent=1 // pred_region
      _
    $region13: #{encoder1_forward.1} parent=1 // pred_fallthru
      _
    // Predicated region
    $region14: #{encoder1_forward.1} parent=1 // pred_check
      _
    $region15: #{encoder1_forward.1} parent=1 // pred_check_branch
      %17 = sbr.rel (0) target = $region17
    $region16: #{encoder1_forward.1} parent=1 // pred_region
      _
    $region17: #{encoder1_forward.1} parent=1 // pred_fallthru
      _
    %v19 = vld [vmem:[%s3] sm:$0xff]
    %v20 = vld [vmem:[%s3 + $0x8] sm:$0xff]
    %v21 = vld [vmem:[%s3 + $0x10] sm:$0xff]
    %v22 = vld [vmem:[%s3 + $0x18] sm:$0xff]
    %v23 = vld [vmem:[%s1] sm:$0xf]
    %v24 = vld [vmem:[%s1 + $0x4] sm:$0xf]
    %v25 = vld [vmem:[%s1 + $0x8] sm:$0xf]
    %v26 = vld [vmem:[%s1 + $0xc] sm:$0xf]
    %v27 = vld [vmem:[%s1 + $0x10] sm:$0xf]
    %v28 = vld [vmem:[%s1 + $0x14] sm:$0xf]
    %v29 = vld [vmem:[%s0] sm:$0xf]
    %v30 = vld [vmem:[%s0 + $0x4] sm:$0xf]
    %v31 = vld [vmem:[%s0 + $0x8] sm:$0xf]
    %v32 = vld [vmem:[%s0 + $0xc] sm:$0xf]
    %v33 = vld [vmem:[%s0 + $0x10] sm:$0xf]
    %v34 = vld [vmem:[%s0 + $0x14] sm:$0xf]
    %v35 = vld [vmem:[%s0 + $0x18] sm:$0xf]
    %v36 = vld [vmem:[%s0 + $0x1c] sm:$0xf]
    %v37 = vld [vmem:[%s0 + $0x20] sm:$0xf]
    %v38 = vld [vmem:[%s0 + $0x24] sm:$0xf]
    %v39 = vld [vmem:[%s0 + $0x28] sm:$0xf]
    %v40 = vld [vmem:[%s0 + $0x2c] sm:$0xf]
    %v41 = vld [vmem:[%s0 + $0x30] sm:$0xf]
    %v42 = vld [vmem:[%s0 + $0x34] sm:$0xf]
    %v43 = vld [vmem:[%s0 + $0x38] sm:$0xf]
    %v44 = vld [vmem:[%s0 + $0x3c] sm:$0xf]
    %v45 = vld [vmem:[%s0 + $0x40] sm:$0xf]
    %v46 = vld [vmem:[%s0 + $0x44] sm:$0xf]
    %v47 = vld [vmem:[%s0 + $0x48] sm:$0xf]
    %v48 = vld [vmem:[%s0 + $0x4c] sm:$0xf]
    %v49 = vld [vmem:[%s0 + $0x50] sm:$0xf]
    %v50 = vld [vmem:[%s0 + $0x54] sm:$0xf]
    %v51 = vld [vmem:[%s0 + $0x58] sm:$0xf]
    %v52 = vld [vmem:[%s0 + $0x5c] sm:$0xf]
    %v53 = vld [vmem:[%s0 + $0x60] sm:$0xf]
    %v54 = vld [vmem:[%s0 + $0x64] sm:$0xf]
    %v55 = vld [vmem:[%s0 + $0x68] sm:$0xf]
    %v56 = vld [vmem:[%s0 + $0x6c] sm:$0xf]
    %v57 = vperm.slane %v19, 0
    %v86 = vunpack.c.l.b16 %v29
    %v87 = vunpack.c.l.b16 %v30
    %v88 = vunpack.c.l.b16 %v31
    %v89 = vunpack.c.l.b16 %v32
    %v90 = vunpack.c.l.b16 %v33
    %v91 = vunpack.c.l.b16 %v34
    %v92 = vunpack.c.l.b16 %v35
    %v93 = vunpack.c.l.b16 %v36
    %v94 = vunpack.c.l.b16 %v37
    %v95 = vunpack.c.l.b16 %v38
    %v96 = vunpack.c.l.b16 %v39
    %v97 = vunpack.c.l.b16 %v40
    %v98 = vunpack.c.l.b16 %v41
    %v99 = vunpack.c.l.b16 %v42
    %v100 = vunpack.c.l.b16 %v43
    %v101 = vunpack.c.l.b16 %v44
    %v102 = vunpack.c.l.b16 %v45
    %v103 = vunpack.c.l.b16 %v46
    %v104 = vunpack.c.l.b16 %v47
    %v105 = vunpack.c.l.b16 %v48
    %v106 = vunpack.c.l.b16 %v49
    %v107 = vunpack.c.l.b16 %v50
    %v108 = vunpack.c.l.b16 %v51
    %v109 = vunpack.c.l.b16 %v52
    %v110 = vunpack.c.l.b16 %v53
    %v111 = vunpack.c.l.b16 %v54
    %v112 = vunpack.c.l.b16 %v55
    %v113 = vunpack.c.l.b16 %v56
    %v114 = vpack.c.b16 %v87, %v86
    %v115 = vpack.c.b16 %v89, %v88
    %v116 = vpack.c.b16 %v91, %v90
    %v117 = vpack.c.b16 %v93, %v92
    %v118 = vpack.c.b16 %v95, %v94
    %v119 = vpack.c.b16 %v97, %v96
    %v120 = vpack.c.b16 %v99, %v98
    %v121 = vpack.c.b16 %v101, %v100
    %v122 = vpack.c.b16 %v103, %v102
    %v123 = vpack.c.b16 %v105, %v104
    %v124 = vpack.c.b16 %v107, %v106
    %v125 = vpack.c.b16 %v109, %v108
    %v126 = vpack.c.b16 %v111, %v110
    %v127 = vpack.c.b16 %v113, %v112
    %v130 = vunpack.c.l.b16 %v23
    %v131 = vunpack.c.l.b16 %v24
    %v132 = vpack.c.b16 %v131, %v130
    %vm134 = vcmask 130048
    %v136 = vsel %vm134, %v114, 0
    %v139 = vsel %vm134, %v115, 0
    %v142 = vsel %vm134, %v116, 0
    %v145 = vsel %vm134, %v117, 0
    %v148 = vsel %vm134, %v118, 0
    %v151 = vsel %vm134, %v119, 0
    %v154 = vsel %vm134, %v120, 0
    %v157 = vsel %vm134, %v121, 0
    %v160 = vsel %vm134, %v122, 0
    %v163 = vsel %vm134, %v123, 0
    %v166 = vsel %vm134, %v124, 0
    %v169 = vsel %vm134, %v125, 0
    %v172 = vsel %vm134, %v126, 0
    %v175 = vsel %vm134, %v127, 0
    %177 = vmatpush.bf16.msra.mxu0 0
    %178 = vmatpush.bf16.msra.mxu0 0
    %179 = vmatpush.bf16.msra.mxu0 0
    %180 = vmatpush.bf16.msra.mxu0 0
    %181 = vmatpush.bf16.msra.mxu0 0
    %182 = vmatpush.bf16.msra.mxu0 0
    %183 = vmatpush.bf16.msra.mxu0 0
    %184 = vmatpush.bf16.msra.mxu0 %v132
    %185 = vmatmul.bf16.gmra.mxu0 %v136
    %v186 = vpop.f32.mrf.mxu0
    %v187 = vadd.f32 %v57, %v186
    %v188 = vpop.f32.mrf.mxu0
    %v189 = vadd.f32 %v57, %v188
    %190 = vmatmul.bf16.gmra.mxu0 %v139
    %v191 = vpop.f32.mrf.mxu0
    %v192 = vadd.f32 %v57, %v191
    %v193 = vpop.f32.mrf.mxu0
    %v194 = vadd.f32 %v57, %v193
    %195 = vmatmul.bf16.gmra.mxu0 %v142
    %v196 = vpop.f32.mrf.mxu0
    %v197 = vadd.f32 %v57, %v196
    %v198 = vpop.f32.mrf.mxu0
    %v199 = vadd.f32 %v57, %v198
    %200 = vmatmul.bf16.gmra.mxu0 %v145
    %v201 = vpop.f32.mrf.mxu0
    %v202 = vadd.f32 %v57, %v201
    %v203 = vpop.f32.mrf.mxu0
    %v204 = vadd.f32 %v57, %v203
    %205 = vmatmul.bf16.gmra.mxu0 %v148
    %v206 = vpop.f32.mrf.mxu0
    %v207 = vadd.f32 %v57, %v206
    %v208 = vpop.f32.mrf.mxu0
    %v209 = vadd.f32 %v57, %v208
    %210 = vmatmul.bf16.gmra.mxu0 %v151
    %v211 = vpop.f32.mrf.mxu0
    %v212 = vadd.f32 %v57, %v211
    %v213 = vpop.f32.mrf.mxu0
    %v214 = vadd.f32 %v57, %v213
    %215 = vmatmul.bf16.gmra.mxu0 %v154
    %v216 = vpop.f32.mrf.mxu0
    %v217 = vadd.f32 %v57, %v216
    %v218 = vpop.f32.mrf.mxu0
    %v219 = vadd.f32 %v57, %v218
    %220 = vmatmul.bf16.gmra.mxu0 %v157
    %v221 = vpop.f32.mrf.mxu0
    %v222 = vadd.f32 %v57, %v221
    %v223 = vpop.f32.mrf.mxu0
    %v224 = vadd.f32 %v57, %v223
    %225 = vmatmul.bf16.gmra.mxu0 %v160
    %v226 = vpop.f32.mrf.mxu0
    %v227 = vadd.f32 %v57, %v226
    %v228 = vpop.f32.mrf.mxu0
    %v229 = vadd.f32 %v57, %v228
    %230 = vmatmul.bf16.gmra.mxu0 %v163
    %v231 = vpop.f32.mrf.mxu0
    %v232 = vadd.f32 %v57, %v231
    %v233 = vpop.f32.mrf.mxu0
    %v234 = vadd.f32 %v57, %v233
    %235 = vmatmul.bf16.gmra.mxu0 %v166
    %v236 = vpop.f32.mrf.mxu0
    %v237 = vadd.f32 %v57, %v236
    %v238 = vpop.f32.mrf.mxu0
    %v239 = vadd.f32 %v57, %v238
    %240 = vmatmul.bf16.gmra.mxu0 %v169
    %v241 = vpop.f32.mrf.mxu0
    %v242 = vadd.f32 %v57, %v241
    %v243 = vpop.f32.mrf.mxu0
    %v244 = vadd.f32 %v57, %v243
    %245 = vmatmul.bf16.gmra.mxu0 %v172
    %v246 = vpop.f32.mrf.mxu0
    %v247 = vadd.f32 %v57, %v246
    %v248 = vpop.f32.mrf.mxu0
    %v249 = vadd.f32 %v57, %v248
    %250 = vmatmul.bf16.gmra.mxu0 %v175
    %v251 = vpop.f32.mrf.mxu0
    %v252 = vadd.f32 %v57, %v251
    %v253 = vpop.f32.mrf.mxu0
    %v254 = vadd.f32 %v57, %v253
    %255 = vdwg.mxu0
    %vm256 = vcmask 261120
    %257 = vst.msk [vmem:[#allocation2] sm:$0xff] %vm256, %v187
    %258 = vst.msk [vmem:[#allocation2 + $0x8] sm:$0xff] %vm256, %v189
    %259 = vst.msk [vmem:[#allocation2 + $0x10] sm:$0xff] %vm256, %v192
    %260 = vst.msk [vmem:[#allocation2 + $0x18] sm:$0xff] %vm256, %v194
    %261 = vst.msk [vmem:[#allocation2 + $0x20] sm:$0xff] %vm256, %v197
    %262 = vst.msk [vmem:[#allocation2 + $0x28] sm:$0xff] %vm256, %v199
    %263 = vst.msk [vmem:[#allocation2 + $0x30] sm:$0xff] %vm256, %v202
    %264 = vst.msk [vmem:[#allocation2 + $0x38] sm:$0xff] %vm256, %v204
    %265 = vst.msk [vmem:[#allocation2 + $0x40] sm:$0xff] %vm256, %v207
    %266 = vst.msk [vmem:[#allocation2 + $0x48] sm:$0xff] %vm256, %v209
    %267 = vst.msk [vmem:[#allocation2 + $0x50] sm:$0xff] %vm256, %v212
    %268 = vst.msk [vmem:[#allocation2 + $0x58] sm:$0xff] %vm256, %v214
    %269 = vst.msk [vmem:[#allocation2 + $0x60] sm:$0xff] %vm256, %v217
    %270 = vst.msk [vmem:[#allocation2 + $0x68] sm:$0xff] %vm256, %v219
    %271 = vst.msk [vmem:[#allocation2 + $0x70] sm:$0xff] %vm256, %v222
    %272 = vst.msk [vmem:[#allocation2 + $0x78] sm:$0xff] %vm256, %v224
    %273 = vst.msk [vmem:[#allocation2 + $0x80] sm:$0xff] %vm256, %v227
    %274 = vst.msk [vmem:[#allocation2 + $0x88] sm:$0xff] %vm256, %v229
    %275 = vst.msk [vmem:[#allocation2 + $0x90] sm:$0xff] %vm256, %v232
    %276 = vst.msk [vmem:[#allocation2 + $0x98] sm:$0xff] %vm256, %v234
    %277 = vst.msk [vmem:[#allocation2 + $0xa0] sm:$0xff] %vm256, %v237
    %278 = vst.msk [vmem:[#allocation2 + $0xa8] sm:$0xff] %vm256, %v239
    %279 = vst.msk [vmem:[#allocation2 + $0xb0] sm:$0xff] %vm256, %v242
    %280 = vst.msk [vmem:[#allocation2 + $0xb8] sm:$0xff] %vm256, %v244
    %281 = vst.msk [vmem:[#allocation2 + $0xc0] sm:$0xff] %vm256, %v247
    %282 = vst.msk [vmem:[#allocation2 + $0xc8] sm:$0xff] %vm256, %v249
    %283 = vst.msk [vmem:[#allocation2 + $0xd0] sm:$0xff] %vm256, %v252
    %284 = vst.msk [vmem:[#allocation2 + $0xd8] sm:$0xff] %vm256, %v254
    %v285 = vld [vmem:[#allocation2] sm:$0x3]
    %v288 = vunpack.c.l.b16 %v25
    %v289 = vunpack.c.l.b16 %v26
    %v290 = vpack.c.b16 %v289, %v288
    %v293 = vsel %vm134, 0, 0
    %295 = vmatpush.bf16.msra.mxu0 0
    %296 = vmatpush.bf16.msra.mxu0 0
    %297 = vmatpush.bf16.msra.mxu0 0
    %298 = vmatpush.bf16.msra.mxu0 0
    %299 = vmatpush.bf16.msra.mxu0 0
    %300 = vmatpush.bf16.msra.mxu0 0
    %301 = vmatpush.bf16.msra.mxu0 0
    %302 = vmatpush.bf16.msra.mxu0 %v290
    %303 = vmatmul.bf16.gmra.mxu0 %v293
    %v304 = vpop.f32.mrf.mxu0
    %v305 = vadd.f32 0.0, %v304
    %v306 = vpop.f32.mrf.mxu0
    %307 = vdwg.mxu0
    %v308 = vadd.f32 %v285, %v305
    %v309 = vtanh.pop %v308
    %v310 = vperm.slane %v19, 4
    %v311 = vmul.f32 %v309, %v310
    %vm312 = vcmask 123904
    %v313 = vsel %vm312, %v311, 0.0
    %314 = vadd.xlane.f32.xlu0 %v313
    %v315 = vpop.xlane.xlu0 %314
    %v316 = vadd.f32 %v315, %v310
    %v317 = vmul.f32 %v310, 0.0
    %v318 = vsel %vm134, %v317, 0.0
    %319 = vadd.xlane.f32.xlu0 %v318
    %v320 = vpop.xlane.xlu0 %319
    %v321 = vadd.f32 %v320, %v310
    %v322 = vld [vmem:[#allocation2 + $0x10] sm:$0x3]
    %v323 = vadd.f32 %v322, %v316
    %v324 = vld [vmem:[#allocation2 + $0x20] sm:$0x3]
    %v325 = vadd.f32 %v324, %v316
    %327 = vrot.lane.b32.xlu0 %v321, 112
    %v328 = vpop.permute.xlu0 %327
    %330 = vrot.lane.b32.xlu0 %v321, 113
    %v331 = vpop.permute.xlu0 %330
    %333 = vrot.lane.b32.xlu0 %v321, 114
    %v334 = vpop.permute.xlu0 %333
    %337 = vrot.lane.b32.xlu0 %v323, 115
    %v338 = vpop.permute.xlu0 %337
    %341 = vrot.lane.b32.xlu0 %v325, 116
    %v342 = vpop.permute.xlu0 %341
    %vm344 = vcmask 7168
    %v345 = vsel %vm344, %v328, %v331
    %vm346 = vcmask 15360
    %v347 = vsel %vm346, %v345, %v334
    %vm348 = vcmask 23552
    %v349 = vsel %vm348, %v347, %v338
    %vm350 = vcmask 31744
    %v351 = vsel %vm350, %v349, %v342
    %v352 = vtanh.pop %v351
    %vm353 = vcmask 33792
    %v354 = vsel %vm353, %v352, -inf
    %355 = vmax.xlane.f32.xlu0 %v354
    %v356 = vpop.xlane.xlu0 %355
    %v357 = vsub.f32 %v352, %v356
    %v358 = vmul.f32 %v357, 1.442695
    %v359 = vpow.pop %v358
    %v360 = vsel %vm353, %v359, 0.0
    %361 = vadd.xlane.f32.xlu0 %v360
    %v362 = vpop.xlane.xlu0 %361
    %v363 = vrcp.pop %v362
    %v364 = vmul.f32 %v362, %v363
    %v365 = vsub.f32 1.0, %v364
    %v366 = vmul.f32 %v363, %v365
    %v367 = vadd.f32 %v363, %v366
    %vm368 = vweird.f32 %v362
    %vm369 = vweird.f32 %v363
    %vm370 = vmor %vm368, %vm369
    %v371 = vsel %vm370, %v363, %v367
    %v372 = vand.u32 2147483647, %v362
    %vm373 = vcmp.eq.f32.partialorder %v372, 8.507059e+37
    %v374 = vand.u32 %v362, 2147483648
    %v375 = vor.u32 1.1754944e-38, %v374
    %v376 = vsel %vm373, %v375, %v371
    %v377 = vmul.f32 %v359, %v376
    %379 = vset.pattern.permute.xlu0 3
    %380 = vperm.xlu0 %379, %v377
    %v381 = vpop.permute.xlu0 %380
    %v383 = vmul.f32 %v381, %v309
    %385 = vrot.lane.b32.xlu0 %v383, 16
    %v386 = vpop.permute.xlu0 %385
    %v388 = vsel %vm134, 0.0, %v386
    %v389 = vpack.c.bf16 %v388, %v388
    %v392 = vunpack.c.l.b16 %v27
    %v393 = vunpack.c.l.b16 %v28
    %v394 = vpack.c.b16 %v393, %v392
    %v397 = vsel %vm256, %v389, 0
    %399 = vmatpush.bf16.msra.mxu0 0
    %400 = vmatpush.bf16.msra.mxu0 0
    %401 = vmatpush.bf16.msra.mxu0 0
    %402 = vmatpush.bf16.msra.mxu0 0
    %403 = vmatpush.bf16.msra.mxu0 0
    %404 = vmatpush.bf16.msra.mxu0 0
    %405 = vmatpush.bf16.msra.mxu0 %v394
    %406 = vmatpush.bf16.msra.mxu0 %v290
    %407 = vmatmul.bf16.gmra.mxu0 %v397
    %v408 = vpop.f32.mrf.mxu0
    %v409 = vadd.f32 0.0, %v408
    %v410 = vpop.f32.mrf.mxu0
    %411 = vdwg.mxu0
    %v412 = vadd.f32 %v322, %v409
    %v413 = vtanh.pop %v412
    %v414 = vpack.c.bf16 %v309, %v309
    %v416 = vsel %vm134, %v414, 0
    %418 = vmatpush.bf16.msra.mxu0 0
    %419 = vmatpush.bf16.msra.mxu0 0
    %420 = vmatpush.bf16.msra.mxu0 0
    %421 = vmatpush.bf16.msra.mxu0 0
    %422 = vmatpush.bf16.msra.mxu0 0
    %423 = vmatpush.bf16.msra.mxu0 0
    %424 = vmatpush.bf16.msra.mxu0 0
    %425 = vmatpush.bf16.msra.mxu0 %v290
    %426 = vmatmul.bf16.gmra.mxu0 %v416
    %v427 = vpop.f32.mrf.mxu0
    %v428 = vadd.f32 0.0, %v427
    %v429 = vpop.f32.mrf.mxu0
    %430 = vdwg.mxu0
    %v431 = vadd.f32 %v324, %v428
    %v432 = vtanh.pop %v431
    %v433 = vmul.f32 %v432, %v310
    %v434 = vsel %vm312, %v433, 0.0
    %435 = vadd.xlane.f32.xlu0 %v434
    %v436 = vpop.xlane.xlu0 %435
    %v437 = vadd.f32 %v436, %v310
    %v438 = vld [vmem:[#allocation2 + $0x30] sm:$0x3]
    %v439 = vadd.f32 %v438, %v437
    %v440 = vld [vmem:[#allocation2 + $0x40] sm:$0x3]
    %v441 = vadd.f32 %v440, %v437
    %443 = vrot.lane.b32.xlu0 %v439, 115
    %v444 = vpop.permute.xlu0 %443
    %447 = vrot.lane.b32.xlu0 %v441, 116
    %v448 = vpop.permute.xlu0 %447
    %v450 = vsel %vm348, %v347, %v444
    %v451 = vsel %vm350, %v450, %v448
    %v452 = vtanh.pop %v451
    %v453 = vsel %vm353, %v452, -inf
    %454 = vmax.xlane.f32.xlu0 %v453
    %v455 = vpop.xlane.xlu0 %454
    %v456 = vsub.f32 %v452, %v455
    %v457 = vmul.f32 %v456, 1.442695
    %v458 = vpow.pop %v457
    %v459 = vsel %vm353, %v458, 0.0
    %460 = vadd.xlane.f32.xlu0 %v459
    %v461 = vpop.xlane.xlu0 %460
    %v462 = vrcp.pop %v461
    %v463 = vmul.f32 %v461, %v462
    %v464 = vsub.f32 1.0, %v463
    %v465 = vmul.f32 %v462, %v464
    %v466 = vadd.f32 %v462, %v465
    %vm467 = vweird.f32 %v461
    %vm468 = vweird.f32 %v462
    %vm469 = vmor %vm467, %vm468
    %v470 = vsel %vm469, %v462, %v466
    %v471 = vand.u32 2147483647, %v461
    %vm472 = vcmp.eq.f32.partialorder %v471, 8.507059e+37
    %v473 = vand.u32 %v461, 2147483648
    %v474 = vor.u32 1.1754944e-38, %v473
    %v475 = vsel %vm472, %v474, %v470
    %v476 = vmul.f32 %v458, %v475
    %478 = vset.pattern.permute.xlu0 3
    %479 = vperm.xlu0 %478, %v476
    %v480 = vpop.permute.xlu0 %479
    %v482 = vmul.f32 %v480, %v432
    %484 = vrot.lane.b32.xlu0 %v482, 16
    %v485 = vpop.permute.xlu0 %484
    %v487 = vsel %vm134, %v413, %v485
    %v488 = vpack.c.bf16 %v487, %v487
    %v490 = vsel %vm256, %v488, 0
    %492 = vmatpush.bf16.msra.mxu0 0
    %493 = vmatpush.bf16.msra.mxu0 0
    %494 = vmatpush.bf16.msra.mxu0 0
    %495 = vmatpush.bf16.msra.mxu0 0
    %496 = vmatpush.bf16.msra.mxu0 0
    %497 = vmatpush.bf16.msra.mxu0 0
    %498 = vmatpush.bf16.msra.mxu0 %v394
    %499 = vmatpush.bf16.msra.mxu0 %v290
    %500 = vmatmul.bf16.gmra.mxu0 %v490
    %v501 = vpop.f32.mrf.mxu0
    %v502 = vadd.f32 0.0, %v501
    %v503 = vpop.f32.mrf.mxu0
    %504 = vdwg.mxu0
    %v505 = vadd.f32 %v438, %v502
    %v506 = vtanh.pop %v505
    %v507 = vpack.c.bf16 %v432, %v432
    %v509 = vsel %vm134, %v507, 0
    %511 = vmatpush.bf16.msra.mxu0 0
    %512 = vmatpush.bf16.msra.mxu0 0
    %513 = vmatpush.bf16.msra.mxu0 0
    %514 = vmatpush.bf16.msra.mxu0 0
    %515 = vmatpush.bf16.msra.mxu0 0
    %516 = vmatpush.bf16.msra.mxu0 0
    %517 = vmatpush.bf16.msra.mxu0 0
    %518 = vmatpush.bf16.msra.mxu0 %v290
    %519 = vmatmul.bf16.gmra.mxu0 %v509
    %v520 = vpop.f32.mrf.mxu0
    %v521 = vadd.f32 0.0, %v520
    %v522 = vpop.f32.mrf.mxu0
    %523 = vdwg.mxu0
    %v524 = vadd.f32 %v440, %v521
    %v525 = vtanh.pop %v524
    %v526 = vmul.f32 %v525, %v310
    %v527 = vsel %vm312, %v526, 0.0
    %528 = vadd.xlane.f32.xlu0 %v527
    %v529 = vpop.xlane.xlu0 %528
    %v530 = vadd.f32 %v529, %v310
    %v531 = vld [vmem:[#allocation2 + $0x50] sm:$0x3]
    %v532 = vadd.f32 %v531, %v530
    %v533 = vld [vmem:[#allocation2 + $0x60] sm:$0x3]
    %v534 = vadd.f32 %v533, %v530
    %536 = vrot.lane.b32.xlu0 %v532, 115
    %v537 = vpop.permute.xlu0 %536
    %540 = vrot.lane.b32.xlu0 %v534, 116
    %v541 = vpop.permute.xlu0 %540
    %v543 = vsel %vm348, %v347, %v537
    %v544 = vsel %vm350, %v543, %v541
    %v545 = vtanh.pop %v544
    %v546 = vsel %vm353, %v545, -inf
    %547 = vmax.xlane.f32.xlu0 %v546
    %v548 = vpop.xlane.xlu0 %547
    %v549 = vsub.f32 %v545, %v548
    %v550 = vmul.f32 %v549, 1.442695
    %v551 = vpow.pop %v550
    %v552 = vsel %vm353, %v551, 0.0
    %553 = vadd.xlane.f32.xlu0 %v552
    %v554 = vpop.xlane.xlu0 %553
    %v555 = vrcp.pop %v554
    %v556 = vmul.f32 %v554, %v555
    %v557 = vsub.f32 1.0, %v556
    %v558 = vmul.f32 %v555, %v557
    %v559 = vadd.f32 %v555, %v558
    %vm560 = vweird.f32 %v554
    %vm561 = vweird.f32 %v555
    %vm562 = vmor %vm560, %vm561
    %v563 = vsel %vm562, %v555, %v559
    %v564 = vand.u32 2147483647, %v554
    %vm565 = vcmp.eq.f32.partialorder %v564, 8.507059e+37
    %v566 = vand.u32 %v554, 2147483648
    %v567 = vor.u32 1.1754944e-38, %v566
    %v568 = vsel %vm565, %v567, %v563
    %v569 = vmul.f32 %v551, %v568
    %571 = vset.pattern.permute.xlu0 3
    %572 = vperm.xlu0 %571, %v569
    %v573 = vpop.permute.xlu0 %572
    %v575 = vmul.f32 %v573, %v525
    %577 = vrot.lane.b32.xlu0 %v575, 16
    %v578 = vpop.permute.xlu0 %577
    %v580 = vsel %vm134, %v506, %v578
    %v581 = vpack.c.bf16 %v580, %v580
    %v583 = vsel %vm256, %v581, 0
    %585 = vmatpush.bf16.msra.mxu0 0
    %586 = vmatpush.bf16.msra.mxu0 0
    %587 = vmatpush.bf16.msra.mxu0 0
    %588 = vmatpush.bf16.msra.mxu0 0
    %589 = vmatpush.bf16.msra.mxu0 0
    %590 = vmatpush.bf16.msra.mxu0 0
    %591 = vmatpush.bf16.msra.mxu0 %v394
    %592 = vmatpush.bf16.msra.mxu0 %v290
    %593 = vmatmul.bf16.gmra.mxu0 %v583
    %v594 = vpop.f32.mrf.mxu0
    %v595 = vadd.f32 0.0, %v594
    %v596 = vpop.f32.mrf.mxu0
    %597 = vdwg.mxu0
    %v598 = vadd.f32 %v531, %v595
    %v599 = vtanh.pop %v598
    %v600 = vpack.c.bf16 %v525, %v525
    %v602 = vsel %vm134, %v600, 0
    %604 = vmatpush.bf16.msra.mxu0 0
    %605 = vmatpush.bf16.msra.mxu0 0
    %606 = vmatpush.bf16.msra.mxu0 0
    %607 = vmatpush.bf16.msra.mxu0 0
    %608 = vmatpush.bf16.msra.mxu0 0
    %609 = vmatpush.bf16.msra.mxu0 0
    %610 = vmatpush.bf16.msra.mxu0 0
    %611 = vmatpush.bf16.msra.mxu0 %v290
    %612 = vmatmul.bf16.gmra.mxu0 %v602
    %v613 = vpop.f32.mrf.mxu0
    %v614 = vadd.f32 0.0, %v613
    %v615 = vpop.f32.mrf.mxu0
    %616 = vdwg.mxu0
    %v617 = vadd.f32 %v533, %v614
    %v618 = vtanh.pop %v617
    %v619 = vmul.f32 %v618, %v310
    %v620 = vsel %vm312, %v619, 0.0
    %621 = vadd.xlane.f32.xlu0 %v620
    %v622 = vpop.xlane.xlu0 %621
    %v623 = vadd.f32 %v622, %v310
    %v624 = vld [vmem:[#allocation2 + $0x70] sm:$0x3]
    %v625 = vadd.f32 %v624, %v623
    %v626 = vld [vmem:[#allocation2 + $0x80] sm:$0x3]
    %v627 = vadd.f32 %v626, %v623
    %629 = vrot.lane.b32.xlu0 %v625, 115
    %v630 = vpop.permute.xlu0 %629
    %633 = vrot.lane.b32.xlu0 %v627, 116
    %v634 = vpop.permute.xlu0 %633
    %v636 = vsel %vm348, %v347, %v630
    %v637 = vsel %vm350, %v636, %v634
    %v638 = vtanh.pop %v637
    %v639 = vsel %vm353, %v638, -inf
    %640 = vmax.xlane.f32.xlu0 %v639
    %v641 = vpop.xlane.xlu0 %640
    %v642 = vsub.f32 %v638, %v641
    %v643 = vmul.f32 %v642, 1.442695
    %v644 = vpow.pop %v643
    %v645 = vsel %vm353, %v644, 0.0
    %646 = vadd.xlane.f32.xlu0 %v645
    %v647 = vpop.xlane.xlu0 %646
    %v648 = vrcp.pop %v647
    %v649 = vmul.f32 %v647, %v648
    %v650 = vsub.f32 1.0, %v649
    %v651 = vmul.f32 %v648, %v650
    %v652 = vadd.f32 %v648, %v651
    %vm653 = vweird.f32 %v647
    %vm654 = vweird.f32 %v648
    %vm655 = vmor %vm653, %vm654
    %v656 = vsel %vm655, %v648, %v652
    %v657 = vand.u32 2147483647, %v647
    %vm658 = vcmp.eq.f32.partialorder %v657, 8.507059e+37
    %v659 = vand.u32 %v647, 2147483648
    %v660 = vor.u32 1.1754944e-38, %v659
    %v661 = vsel %vm658, %v660, %v656
    %v662 = vmul.f32 %v644, %v661
    %664 = vset.pattern.permute.xlu0 3
    %665 = vperm.xlu0 %664, %v662
    %v666 = vpop.permute.xlu0 %665
    %v668 = vmul.f32 %v666, %v618
    %670 = vrot.lane.b32.xlu0 %v668, 16
    %v671 = vpop.permute.xlu0 %670
    %v673 = vsel %vm134, %v599, %v671
    %v674 = vpack.c.bf16 %v673, %v673
    %v676 = vsel %vm256, %v674, 0
    %678 = vmatpush.bf16.msra.mxu0 0
    %679 = vmatpush.bf16.msra.mxu0 0
    %680 = vmatpush.bf16.msra.mxu0 0
    %681 = vmatpush.bf16.msra.mxu0 0
    %682 = vmatpush.bf16.msra.mxu0 0
    %683 = vmatpush.bf16.msra.mxu0 0
    %684 = vmatpush.bf16.msra.mxu0 %v394
    %685 = vmatpush.bf16.msra.mxu0 %v290
    %686 = vmatmul.bf16.gmra.mxu0 %v676
    %v687 = vpop.f32.mrf.mxu0
    %v688 = vadd.f32 0.0, %v687
    %v689 = vpop.f32.mrf.mxu0
    %690 = vdwg.mxu0
    %v691 = vadd.f32 %v624, %v688
    %v692 = vtanh.pop %v691
    %v693 = vmul.f32 %v692, %v310
    %v694 = vsel %vm312, %v693, 0.0
    %695 = vadd.xlane.f32.xlu0 %v694
    %v696 = vpop.xlane.xlu0 %695
    %v697 = vadd.f32 %v696, %v310
    %v698 = vld [vmem:[#allocation2 + $0x78] sm:$0x3]
    %v699 = vadd.f32 %v698, %v697
    %v700 = vld [vmem:[#allocation2 + $0x90] sm:$0x3]
    %v701 = vadd.f32 %v700, %v697
    %703 = vrot.lane.b32.xlu0 %v699, 114
    %v704 = vpop.permute.xlu0 %703
    %707 = vrot.lane.b32.xlu0 %v701, 115
    %v708 = vpop.permute.xlu0 %707
    %711 = vrot.lane.b32.xlu0 %v623, 116
    %v712 = vpop.permute.xlu0 %711
    %v714 = vsel %vm346, %v345, %v704
    %v715 = vsel %vm348, %v714, %v708
    %v716 = vsel %vm350, %v715, %v712
    %v717 = vtanh.pop %v716
    %v718 = vsel %vm353, %v717, -inf
    %719 = vmax.xlane.f32.xlu0 %v718
    %v720 = vpop.xlane.xlu0 %719
    %v721 = vsub.f32 %v717, %v720
    %v722 = vmul.f32 %v721, 1.442695
    %v723 = vpow.pop %v722
    %v724 = vsel %vm353, %v723, 0.0
    %725 = vadd.xlane.f32.xlu0 %v724
    %v726 = vpop.xlane.xlu0 %725
    %v727 = vrcp.pop %v726
    %v728 = vmul.f32 %v726, %v727
    %v729 = vsub.f32 1.0, %v728
    %v730 = vmul.f32 %v727, %v729
    %v731 = vadd.f32 %v727, %v730
    %vm732 = vweird.f32 %v726
    %vm733 = vweird.f32 %v727
    %vm734 = vmor %vm732, %vm733
    %v735 = vsel %vm734, %v727, %v731
    %v736 = vand.u32 2147483647, %v726
    %vm737 = vcmp.eq.f32.partialorder %v736, 8.507059e+37
    %v738 = vand.u32 %v726, 2147483648
    %v739 = vor.u32 1.1754944e-38, %v738
    %v740 = vsel %vm737, %v739, %v735
    %v741 = vmul.f32 %v723, %v740
    %743 = vset.pattern.permute.xlu0 2
    %744 = vperm.xlu0 %743, %v741
    %v745 = vpop.permute.xlu0 %744
    %v747 = vmul.f32 %v745, %v692
    %749 = vrot.lane.b32.xlu0 %v747, 16
    %v750 = vpop.permute.xlu0 %749
    %v752 = vsel %vm134, 0.0, %v750
    %v753 = vpack.c.bf16 %v752, %v752
    %v755 = vsel %vm256, %v753, 0
    %757 = vmatpush.bf16.msra.mxu0 0
    %758 = vmatpush.bf16.msra.mxu0 0
    %759 = vmatpush.bf16.msra.mxu0 0
    %760 = vmatpush.bf16.msra.mxu0 0
    %761 = vmatpush.bf16.msra.mxu0 0
    %762 = vmatpush.bf16.msra.mxu0 0
    %763 = vmatpush.bf16.msra.mxu0 %v394
    %764 = vmatpush.bf16.msra.mxu0 %v290
    %765 = vmatmul.bf16.gmra.mxu0 %v755
    %v766 = vpop.f32.mrf.mxu0
    %v767 = vadd.f32 0.0, %v766
    %v768 = vpop.f32.mrf.mxu0
    %769 = vdwg.mxu0
    %v770 = vadd.f32 %v698, %v767
    %v771 = vtanh.pop %v770
    %v772 = vpack.c.bf16 %v618, %v618
    %v774 = vsel %vm134, %v772, 0
    %776 = vmatpush.bf16.msra.mxu0 0
    %777 = vmatpush.bf16.msra.mxu0 0
    %778 = vmatpush.bf16.msra.mxu0 0
    %779 = vmatpush.bf16.msra.mxu0 0
    %780 = vmatpush.bf16.msra.mxu0 0
    %781 = vmatpush.bf16.msra.mxu0 0
    %782 = vmatpush.bf16.msra.mxu0 0
    %783 = vmatpush.bf16.msra.mxu0 %v290
    %784 = vmatmul.bf16.gmra.mxu0 %v774
    %v785 = vpop.f32.mrf.mxu0
    %v786 = vadd.f32 0.0, %v785
    %v787 = vpop.f32.mrf.mxu0
    %788 = vdwg.mxu0
    %v789 = vadd.f32 %v626, %v786
    %v790 = vtanh.pop %v789
    %v791 = vmul.f32 %v790, %v310
    %v792 = vsel %vm312, %v791, 0.0
    %793 = vadd.xlane.f32.xlu0 %v792
    %v794 = vpop.xlane.xlu0 %793
    %v795 = vadd.f32 %v794, %v310
    %v796 = vld [vmem:[#allocation2 + $0x88] sm:$0x3]
    %v797 = vadd.f32 %v796, %v795
    %v798 = vadd.f32 %v700, %v795
    %v799 = vld [vmem:[#allocation2 + $0xa0] sm:$0x3]
    %v800 = vadd.f32 %v799, %v795
    %802 = vrot.lane.b32.xlu0 %v797, 114
    %v803 = vpop.permute.xlu0 %802
    %806 = vrot.lane.b32.xlu0 %v798, 115
    %v807 = vpop.permute.xlu0 %806
    %810 = vrot.lane.b32.xlu0 %v800, 116
    %v811 = vpop.permute.xlu0 %810
    %v813 = vsel %vm346, %v345, %v803
    %v814 = vsel %vm348, %v813, %v807
    %v815 = vsel %vm350, %v814, %v811
    %v816 = vtanh.pop %v815
    %v817 = vsel %vm353, %v816, -inf
    %818 = vmax.xlane.f32.xlu0 %v817
    %v819 = vpop.xlane.xlu0 %818
    %v820 = vsub.f32 %v816, %v819
    %v821 = vmul.f32 %v820, 1.442695
    %v822 = vpow.pop %v821
    %v823 = vsel %vm353, %v822, 0.0
    %824 = vadd.xlane.f32.xlu0 %v823
    %v825 = vpop.xlane.xlu0 %824
    %v826 = vrcp.pop %v825
    %v827 = vmul.f32 %v825, %v826
    %v828 = vsub.f32 1.0, %v827
    %v829 = vmul.f32 %v826, %v828
    %v830 = vadd.f32 %v826, %v829
    %vm831 = vweird.f32 %v825
    %vm832 = vweird.f32 %v826
    %vm833 = vmor %vm831, %vm832
    %v834 = vsel %vm833, %v826, %v830
    %v835 = vand.u32 2147483647, %v825
    %vm836 = vcmp.eq.f32.partialorder %v835, 8.507059e+37
    %v837 = vand.u32 %v825, 2147483648
    %v838 = vor.u32 1.1754944e-38, %v837
    %v839 = vsel %vm836, %v838, %v834
    %v840 = vmul.f32 %v822, %v839
    %842 = vset.pattern.permute.xlu0 2
    %843 = vperm.xlu0 %842, %v840
    %v844 = vpop.permute.xlu0 %843
    %v846 = vmul.f32 %v844, %v790
    %848 = vrot.lane.b32.xlu0 %v846, 16
    %v849 = vpop.permute.xlu0 %848
    %v851 = vsel %vm134, %v771, %v849
    %v852 = vpack.c.bf16 %v851, %v851
    %v854 = vsel %vm256, %v852, 0
    %856 = vmatpush.bf16.msra.mxu0 0
    %857 = vmatpush.bf16.msra.mxu0 0
    %858 = vmatpush.bf16.msra.mxu0 0
    %859 = vmatpush.bf16.msra.mxu0 0
    %860 = vmatpush.bf16.msra.mxu0 0
    %861 = vmatpush.bf16.msra.mxu0 0
    %862 = vmatpush.bf16.msra.mxu0 %v394
    %863 = vmatpush.bf16.msra.mxu0 %v290
    %864 = vmatmul.bf16.gmra.mxu0 %v854
    %v865 = vpop.f32.mrf.mxu0
    %v866 = vadd.f32 0.0, %v865
    %v867 = vpop.f32.mrf.mxu0
    %868 = vdwg.mxu0
    %v869 = vadd.f32 %v796, %v866
    %v870 = vtanh.pop %v869
    %v871 = vmul.f32 %v790, 0.2
    %873 = vrot.lane.b32.xlu0 %v871, 16
    %v874 = vpop.permute.xlu0 %873
    %v876 = vsel %vm134, %v692, %v874
    %v877 = vpack.c.bf16 %v876, %v876
    %v879 = vsel %vm256, %v877, 0
    %881 = vmatpush.bf16.msra.mxu0 0
    %882 = vmatpush.bf16.msra.mxu0 0
    %883 = vmatpush.bf16.msra.mxu0 0
    %884 = vmatpush.bf16.msra.mxu0 0
    %885 = vmatpush.bf16.msra.mxu0 0
    %886 = vmatpush.bf16.msra.mxu0 0
    %887 = vmatpush.bf16.msra.mxu0 %v394
    %888 = vmatpush.bf16.msra.mxu0 %v290
    %889 = vmatmul.bf16.gmra.mxu0 %v879
    %v890 = vpop.f32.mrf.mxu0
    %v891 = vadd.f32 0.0, %v890
    %v892 = vpop.f32.mrf.mxu0
    %893 = vdwg.mxu0
    %v894 = vadd.f32 %v700, %v891
    %v895 = vtanh.pop %v894
    %v896 = vmul.f32 %v895, %v310
    %v897 = vsel %vm312, %v896, 0.0
    %898 = vadd.xlane.f32.xlu0 %v897
    %v899 = vpop.xlane.xlu0 %898
    %v900 = vadd.f32 %v899, %v310
    %v901 = vld [vmem:[#allocation2 + $0x98] sm:$0x3]
    %v902 = vadd.f32 %v901, %v900
    %v903 = vld [vmem:[#allocation2 + $0xb0] sm:$0x3]
    %v904 = vadd.f32 %v903, %v900
    %906 = vrot.lane.b32.xlu0 %v902, 114
    %v907 = vpop.permute.xlu0 %906
    %910 = vrot.lane.b32.xlu0 %v904, 115
    %v911 = vpop.permute.xlu0 %910
    %914 = vrot.lane.b32.xlu0 %v795, 116
    %v915 = vpop.permute.xlu0 %914
    %v917 = vsel %vm346, %v345, %v907
    %v918 = vsel %vm348, %v917, %v911
    %v919 = vsel %vm350, %v918, %v915
    %v920 = vtanh.pop %v919
    %v921 = vsel %vm353, %v920, -inf
    %922 = vmax.xlane.f32.xlu0 %v921
    %v923 = vpop.xlane.xlu0 %922
    %v924 = vsub.f32 %v920, %v923
    %v925 = vmul.f32 %v924, 1.442695
    %v926 = vpow.pop %v925
    %v927 = vsel %vm353, %v926, 0.0
    %928 = vadd.xlane.f32.xlu0 %v927
    %v929 = vpop.xlane.xlu0 %928
    %v930 = vrcp.pop %v929
    %v931 = vmul.f32 %v929, %v930
    %v932 = vsub.f32 1.0, %v931
    %v933 = vmul.f32 %v930, %v932
    %v934 = vadd.f32 %v930, %v933
    %vm935 = vweird.f32 %v929
    %vm936 = vweird.f32 %v930
    %vm937 = vmor %vm935, %vm936
    %v938 = vsel %vm937, %v930, %v934
    %v939 = vand.u32 2147483647, %v929
    %vm940 = vcmp.eq.f32.partialorder %v939, 8.507059e+37
    %v941 = vand.u32 %v929, 2147483648
    %v942 = vor.u32 1.1754944e-38, %v941
    %v943 = vsel %vm940, %v942, %v938
    %v944 = vmul.f32 %v926, %v943
    %946 = vset.pattern.permute.xlu0 2
    %947 = vperm.xlu0 %946, %v944
    %v948 = vpop.permute.xlu0 %947
    %v950 = vmul.f32 %v948, %v895
    %952 = vrot.lane.b32.xlu0 %v950, 16
    %v953 = vpop.permute.xlu0 %952
    %v955 = vsel %vm134, %v870, %v953
    %v956 = vpack.c.bf16 %v955, %v955
    %v958 = vsel %vm256, %v956, 0
    %960 = vmatpush.bf16.msra.mxu0 0
    %961 = vmatpush.bf16.msra.mxu0 0
    %962 = vmatpush.bf16.msra.mxu0 0
    %963 = vmatpush.bf16.msra.mxu0 0
    %964 = vmatpush.bf16.msra.mxu0 0
    %965 = vmatpush.bf16.msra.mxu0 0
    %966 = vmatpush.bf16.msra.mxu0 %v394
    %967 = vmatpush.bf16.msra.mxu0 %v290
    %968 = vmatmul.bf16.gmra.mxu0 %v958
    %v969 = vpop.f32.mrf.mxu0
    %v970 = vadd.f32 0.0, %v969
    %v971 = vpop.f32.mrf.mxu0
    %972 = vdwg.mxu0
    %v973 = vadd.f32 %v901, %v970
    %v974 = vtanh.pop %v973
    %v975 = vpack.c.bf16 %v790, %v790
    %v977 = vsel %vm134, %v975, 0
    %979 = vmatpush.bf16.msra.mxu0 0
    %980 = vmatpush.bf16.msra.mxu0 0
    %981 = vmatpush.bf16.msra.mxu0 0
    %982 = vmatpush.bf16.msra.mxu0 0
    %983 = vmatpush.bf16.msra.mxu0 0
    %984 = vmatpush.bf16.msra.mxu0 0
    %985 = vmatpush.bf16.msra.mxu0 0
    %986 = vmatpush.bf16.msra.mxu0 %v290
    %987 = vmatmul.bf16.gmra.mxu0 %v977
    %v988 = vpop.f32.mrf.mxu0
    %v989 = vadd.f32 0.0, %v988
    %v990 = vpop.f32.mrf.mxu0
    %991 = vdwg.mxu0
    %v992 = vadd.f32 %v799, %v989
    %v993 = vtanh.pop %v992
    %v994 = vmul.f32 %v993, %v310
    %v995 = vsel %vm312, %v994, 0.0
    %996 = vadd.xlane.f32.xlu0 %v995
    %v997 = vpop.xlane.xlu0 %996
    %v998 = vadd.f32 %v997, %v310
    %v999 = vld [vmem:[#allocation2 + $0xa8] sm:$0x3]
    %v1000 = vadd.f32 %v999, %v998
    %v1001 = vadd.f32 %v903, %v998
    %v1002 = vld [vmem:[#allocation2 + $0xc0] sm:$0x3]
    %v1003 = vadd.f32 %v1002, %v998
    %1005 = vrot.lane.b32.xlu0 %v1000, 114
    %v1006 = vpop.permute.xlu0 %1005
    %1009 = vrot.lane.b32.xlu0 %v1001, 115
    %v1010 = vpop.permute.xlu0 %1009
    %1013 = vrot.lane.b32.xlu0 %v1003, 116
    %v1014 = vpop.permute.xlu0 %1013
    %v1016 = vsel %vm346, %v345, %v1006
    %v1017 = vsel %vm348, %v1016, %v1010
    %v1018 = vsel %vm350, %v1017, %v1014
    %v1019 = vtanh.pop %v1018
    %v1020 = vsel %vm353, %v1019, -inf
    %1021 = vmax.xlane.f32.xlu0 %v1020
    %v1022 = vpop.xlane.xlu0 %1021
    %v1023 = vsub.f32 %v1019, %v1022
    %v1024 = vmul.f32 %v1023, 1.442695
    %v1025 = vpow.pop %v1024
    %v1026 = vsel %vm353, %v1025, 0.0
    %1027 = vadd.xlane.f32.xlu0 %v1026
    %v1028 = vpop.xlane.xlu0 %1027
    %v1029 = vrcp.pop %v1028
    %v1030 = vmul.f32 %v1028, %v1029
    %v1031 = vsub.f32 1.0, %v1030
    %v1032 = vmul.f32 %v1029, %v1031
    %v1033 = vadd.f32 %v1029, %v1032
    %vm1034 = vweird.f32 %v1028
    %vm1035 = vweird.f32 %v1029
    %vm1036 = vmor %vm1034, %vm1035
    %v1037 = vsel %vm1036, %v1029, %v1033
    %v1038 = vand.u32 2147483647, %v1028
    %vm1039 = vcmp.eq.f32.partialorder %v1038, 8.507059e+37
    %v1040 = vand.u32 %v1028, 2147483648
    %v1041 = vor.u32 1.1754944e-38, %v1040
    %v1042 = vsel %vm1039, %v1041, %v1037
    %v1043 = vmul.f32 %v1025, %v1042
    %1045 = vset.pattern.permute.xlu0 2
    %1046 = vperm.xlu0 %1045, %v1043
    %v1047 = vpop.permute.xlu0 %1046
    %v1049 = vmul.f32 %v1047, %v993
    %1051 = vrot.lane.b32.xlu0 %v1049, 16
    %v1052 = vpop.permute.xlu0 %1051
    %v1054 = vsel %vm134, %v974, %v1052
    %v1055 = vpack.c.bf16 %v1054, %v1054
    %v1057 = vsel %vm256, %v1055, 0
    %1059 = vmatpush.bf16.msra.mxu0 0
    %1060 = vmatpush.bf16.msra.mxu0 0
    %1061 = vmatpush.bf16.msra.mxu0 0
    %1062 = vmatpush.bf16.msra.mxu0 0
    %1063 = vmatpush.bf16.msra.mxu0 0
    %1064 = vmatpush.bf16.msra.mxu0 0
    %1065 = vmatpush.bf16.msra.mxu0 %v394
    %1066 = vmatpush.bf16.msra.mxu0 %v290
    %1067 = vmatmul.bf16.gmra.mxu0 %v1057
    %v1068 = vpop.f32.mrf.mxu0
    %v1069 = vadd.f32 0.0, %v1068
    %v1070 = vpop.f32.mrf.mxu0
    %1071 = vdwg.mxu0
    %v1072 = vadd.f32 %v999, %v1069
    %v1073 = vtanh.pop %v1072
    %v1074 = vmul.f32 %v1073, %v310
    %v1075 = vsel %vm312, %v1074, 0.0
    %1076 = vadd.xlane.f32.xlu0 %v1075
    %v1077 = vpop.xlane.xlu0 %1076
    %v1078 = vadd.f32 %v1077, %v310
    %v1079 = vld [vmem:[#allocation2 + $0xac] sm:$0x3]
    %v1080 = vadd.f32 %v1079, %v1078
    %v1081 = vld [vmem:[#allocation2 + $0xb8] sm:$0x3]
    %v1082 = vadd.f32 %v1081, %v1078
    %1084 = vrot.lane.b32.xlu0 %v1080, 113
    %v1085 = vpop.permute.xlu0 %1084
    %1088 = vrot.lane.b32.xlu0 %v1082, 114
    %v1089 = vpop.permute.xlu0 %1088
    %1092 = vrot.lane.b32.xlu0 %v900, 115
    %v1093 = vpop.permute.xlu0 %1092
    %1096 = vrot.lane.b32.xlu0 %v998, 116
    %v1097 = vpop.permute.xlu0 %1096
    %v1099 = vsel %vm344, %v328, %v1085
    %v1100 = vsel %vm346, %v1099, %v1089
    %v1101 = vsel %vm348, %v1100, %v1093
    %v1102 = vsel %vm350, %v1101, %v1097
    %v1103 = vtanh.pop %v1102
    %v1104 = vsel %vm353, %v1103, -inf
    %1105 = vmax.xlane.f32.xlu0 %v1104
    %v1106 = vpop.xlane.xlu0 %1105
    %v1107 = vsub.f32 %v1103, %v1106
    %v1108 = vmul.f32 %v1107, 1.442695
    %v1109 = vpow.pop %v1108
    %v1110 = vsel %vm353, %v1109, 0.0
    %1111 = vadd.xlane.f32.xlu0 %v1110
    %v1112 = vpop.xlane.xlu0 %1111
    %v1113 = vrcp.pop %v1112
    %v1114 = vmul.f32 %v1112, %v1113
    %v1115 = vsub.f32 1.0, %v1114
    %v1116 = vmul.f32 %v1113, %v1115
    %v1117 = vadd.f32 %v1113, %v1116
    %vm1118 = vweird.f32 %v1112
    %vm1119 = vweird.f32 %v1113
    %vm1120 = vmor %vm1118, %vm1119
    %v1121 = vsel %vm1120, %v1113, %v1117
    %v1122 = vand.u32 2147483647, %v1112
    %vm1123 = vcmp.eq.f32.partialorder %v1122, 8.507059e+37
    %v1124 = vand.u32 %v1112, 2147483648
    %v1125 = vor.u32 1.1754944e-38, %v1124
    %v1126 = vsel %vm1123, %v1125, %v1121
    %v1127 = vmul.f32 %v1109, %v1126
    %1129 = vset.pattern.permute.xlu0 1
    %1130 = vperm.xlu0 %1129, %v1127
    %v1131 = vpop.permute.xlu0 %1130
    %v1133 = vmul.f32 %v1131, %v1073
    %1135 = vrot.lane.b32.xlu0 %v1133, 16
    %v1136 = vpop.permute.xlu0 %1135
    %v1138 = vsel %vm134, 0.0, %v1136
    %v1139 = vpack.c.bf16 %v1138, %v1138
    %v1141 = vsel %vm256, %v1139, 0
    %1143 = vmatpush.bf16.msra.mxu0 0
    %1144 = vmatpush.bf16.msra.mxu0 0
    %1145 = vmatpush.bf16.msra.mxu0 0
    %1146 = vmatpush.bf16.msra.mxu0 0
    %1147 = vmatpush.bf16.msra.mxu0 0
    %1148 = vmatpush.bf16.msra.mxu0 0
    %1149 = vmatpush.bf16.msra.mxu0 %v394
    %1150 = vmatpush.bf16.msra.mxu0 %v290
    %1151 = vmatmul.bf16.gmra.mxu0 %v1141
    %v1152 = vpop.f32.mrf.mxu0
    %v1153 = vadd.f32 0.0, %v1152
    %v1154 = vpop.f32.mrf.mxu0
    %1155 = vdwg.mxu0
    %v1156 = vadd.f32 %v1079, %v1153
    %v1157 = vtanh.pop %v1156
    %v1158 = vmul.f32 %v993, 0.2
    %1160 = vrot.lane.b32.xlu0 %v1158, 16
    %v1161 = vpop.permute.xlu0 %1160
    %v1163 = vsel %vm134, %v895, %v1161
    %v1164 = vpack.c.bf16 %v1163, %v1163
    %v1166 = vsel %vm256, %v1164, 0
    %1168 = vmatpush.bf16.msra.mxu0 0
    %1169 = vmatpush.bf16.msra.mxu0 0
    %1170 = vmatpush.bf16.msra.mxu0 0
    %1171 = vmatpush.bf16.msra.mxu0 0
    %1172 = vmatpush.bf16.msra.mxu0 0
    %1173 = vmatpush.bf16.msra.mxu0 0
    %1174 = vmatpush.bf16.msra.mxu0 %v394
    %1175 = vmatpush.bf16.msra.mxu0 %v290
    %1176 = vmatmul.bf16.gmra.mxu0 %v1166
    %v1177 = vpop.f32.mrf.mxu0
    %v1178 = vadd.f32 0.0, %v1177
    %v1179 = vpop.f32.mrf.mxu0
    %1180 = vdwg.mxu0
    %v1181 = vadd.f32 %v903, %v1178
    %v1182 = vtanh.pop %v1181
    %v1183 = vmul.f32 %v1182, %v310
    %v1184 = vsel %vm312, %v1183, 0.0
    %1185 = vadd.xlane.f32.xlu0 %v1184
    %v1186 = vpop.xlane.xlu0 %1185
    %v1187 = vadd.f32 %v1186, %v310
    %v1188 = vld [vmem:[#allocation2 + $0xb4] sm:$0x3]
    %v1189 = vadd.f32 %v1188, %v1187
    %v1190 = vadd.f32 %v1081, %v1187
    %v1191 = vld [vmem:[#allocation2 + $0xd0] sm:$0x3]
    %v1192 = vadd.f32 %v1191, %v1187
    %1194 = vrot.lane.b32.xlu0 %v1189, 113
    %v1195 = vpop.permute.xlu0 %1194
    %1198 = vrot.lane.b32.xlu0 %v1190, 114
    %v1199 = vpop.permute.xlu0 %1198
    %1202 = vrot.lane.b32.xlu0 %v1192, 115
    %v1203 = vpop.permute.xlu0 %1202
    %v1205 = vsel %vm344, %v328, %v1195
    %v1206 = vsel %vm346, %v1205, %v1199
    %v1207 = vsel %vm348, %v1206, %v1203
    %v1208 = vsel %vm350, %v1207, %v1097
    %v1209 = vtanh.pop %v1208
    %v1210 = vsel %vm353, %v1209, -inf
    %1211 = vmax.xlane.f32.xlu0 %v1210
    %v1212 = vpop.xlane.xlu0 %1211
    %v1213 = vsub.f32 %v1209, %v1212
    %v1214 = vmul.f32 %v1213, 1.442695
    %v1215 = vpow.pop %v1214
    %v1216 = vsel %vm353, %v1215, 0.0
    %1217 = vadd.xlane.f32.xlu0 %v1216
    %v1218 = vpop.xlane.xlu0 %1217
    %v1219 = vrcp.pop %v1218
    %v1220 = vmul.f32 %v1218, %v1219
    %v1221 = vsub.f32 1.0, %v1220
    %v1222 = vmul.f32 %v1219, %v1221
    %v1223 = vadd.f32 %v1219, %v1222
    %vm1224 = vweird.f32 %v1218
    %vm1225 = vweird.f32 %v1219
    %vm1226 = vmor %vm1224, %vm1225
    %v1227 = vsel %vm1226, %v1219, %v1223
    %v1228 = vand.u32 2147483647, %v1218
    %vm1229 = vcmp.eq.f32.partialorder %v1228, 8.507059e+37
    %v1230 = vand.u32 %v1218, 2147483648
    %v1231 = vor.u32 1.1754944e-38, %v1230
    %v1232 = vsel %vm1229, %v1231, %v1227
    %v1233 = vmul.f32 %v1215, %v1232
    %1235 = vset.pattern.permute.xlu0 1
    %1236 = vperm.xlu0 %1235, %v1233
    %v1237 = vpop.permute.xlu0 %1236
    %v1239 = vmul.f32 %v1237, %v1182
    %1241 = vrot.lane.b32.xlu0 %v1239, 16
    %v1242 = vpop.permute.xlu0 %1241
    %v1244 = vsel %vm134, %v1157, %v1242
    %v1245 = vpack.c.bf16 %v1244, %v1244
    %v1247 = vsel %vm256, %v1245, 0
    %1249 = vmatpush.bf16.msra.mxu0 0
    %1250 = vmatpush.bf16.msra.mxu0 0
    %1251 = vmatpush.bf16.msra.mxu0 0
    %1252 = vmatpush.bf16.msra.mxu0 0
    %1253 = vmatpush.bf16.msra.mxu0 0
    %1254 = vmatpush.bf16.msra.mxu0 0
    %1255 = vmatpush.bf16.msra.mxu0 %v394
    %1256 = vmatpush.bf16.msra.mxu0 %v290
    %1257 = vmatmul.bf16.gmra.mxu0 %v1247
    %v1258 = vpop.f32.mrf.mxu0
    %v1259 = vadd.f32 0.0, %v1258
    %v1260 = vpop.f32.mrf.mxu0
    %1261 = vdwg.mxu0
    %v1262 = vadd.f32 %v1188, %v1259
    %v1263 = vtanh.pop %v1262
    %v1264 = vmul.f32 %v1182, 0.2
    %1266 = vrot.lane.b32.xlu0 %v1264, 16
    %v1267 = vpop.permute.xlu0 %1266
    %v1269 = vsel %vm134, %v1073, %v1267
    %v1270 = vpack.c.bf16 %v1269, %v1269
    %v1272 = vsel %vm256, %v1270, 0
    %1274 = vmatpush.bf16.msra.mxu0 0
    %1275 = vmatpush.bf16.msra.mxu0 0
    %1276 = vmatpush.bf16.msra.mxu0 0
    %1277 = vmatpush.bf16.msra.mxu0 0
    %1278 = vmatpush.bf16.msra.mxu0 0
    %1279 = vmatpush.bf16.msra.mxu0 0
    %1280 = vmatpush.bf16.msra.mxu0 %v394
    %1281 = vmatpush.bf16.msra.mxu0 %v290
    %1282 = vmatmul.bf16.gmra.mxu0 %v1272
    %v1283 = vpop.f32.mrf.mxu0
    %v1284 = vadd.f32 0.0, %v1283
    %v1285 = vpop.f32.mrf.mxu0
    %1286 = vdwg.mxu0
    %v1287 = vadd.f32 %v1081, %v1284
    %v1288 = vtanh.pop %v1287
    %v1289 = vmul.f32 %v1288, %v310
    %v1290 = vsel %vm312, %v1289, 0.0
    %1291 = vadd.xlane.f32.xlu0 %v1290
    %v1292 = vpop.xlane.xlu0 %1291
    %v1293 = vadd.f32 %v1292, %v310
    %v1294 = vld [vmem:[#allocation2 + $0xbc] sm:$0x3]
    %v1295 = vadd.f32 %v1294, %v1293
    %v1296 = vld [vmem:[#allocation2 + $0xc8] sm:$0x3]
    %v1297 = vadd.f32 %v1296, %v1293
    %1299 = vrot.lane.b32.xlu0 %v1295, 113
    %v1300 = vpop.permute.xlu0 %1299
    %1303 = vrot.lane.b32.xlu0 %v1297, 114
    %v1304 = vpop.permute.xlu0 %1303
    %1307 = vrot.lane.b32.xlu0 %v1187, 115
    %v1308 = vpop.permute.xlu0 %1307
    %v1310 = vsel %vm344, %v328, %v1300
    %v1311 = vsel %vm346, %v1310, %v1304
    %v1312 = vsel %vm348, %v1311, %v1308
    %v1313 = vsel %vm350, %v1312, %v1097
    %v1314 = vtanh.pop %v1313
    %v1315 = vsel %vm353, %v1314, -inf
    %1316 = vmax.xlane.f32.xlu0 %v1315
    %v1317 = vpop.xlane.xlu0 %1316
    %v1318 = vsub.f32 %v1314, %v1317
    %v1319 = vmul.f32 %v1318, 1.442695
    %v1320 = vpow.pop %v1319
    %v1321 = vsel %vm353, %v1320, 0.0
    %1322 = vadd.xlane.f32.xlu0 %v1321
    %v1323 = vpop.xlane.xlu0 %1322
    %v1324 = vrcp.pop %v1323
    %v1325 = vmul.f32 %v1323, %v1324
    %v1326 = vsub.f32 1.0, %v1325
    %v1327 = vmul.f32 %v1324, %v1326
    %v1328 = vadd.f32 %v1324, %v1327
    %vm1329 = vweird.f32 %v1323
    %vm1330 = vweird.f32 %v1324
    %vm1331 = vmor %vm1329, %vm1330
    %v1332 = vsel %vm1331, %v1324, %v1328
    %v1333 = vand.u32 2147483647, %v1323
    %vm1334 = vcmp.eq.f32.partialorder %v1333, 8.507059e+37
    %v1335 = vand.u32 %v1323, 2147483648
    %v1336 = vor.u32 1.1754944e-38, %v1335
    %v1337 = vsel %vm1334, %v1336, %v1332
    %v1338 = vmul.f32 %v1320, %v1337
    %1340 = vset.pattern.permute.xlu0 1
    %1341 = vperm.xlu0 %1340, %v1338
    %v1342 = vpop.permute.xlu0 %1341
    %v1344 = vmul.f32 %v1342, %v1288
    %1346 = vrot.lane.b32.xlu0 %v1344, 16
    %v1347 = vpop.permute.xlu0 %1346
    %v1349 = vsel %vm134, %v1263, %v1347
    %v1350 = vpack.c.bf16 %v1349, %v1349
    %v1352 = vsel %vm256, %v1350, 0
    %1354 = vmatpush.bf16.msra.mxu0 0
    %1355 = vmatpush.bf16.msra.mxu0 0
    %1356 = vmatpush.bf16.msra.mxu0 0
    %1357 = vmatpush.bf16.msra.mxu0 0
    %1358 = vmatpush.bf16.msra.mxu0 0
    %1359 = vmatpush.bf16.msra.mxu0 0
    %1360 = vmatpush.bf16.msra.mxu0 %v394
    %1361 = vmatpush.bf16.msra.mxu0 %v290
    %1362 = vmatmul.bf16.gmra.mxu0 %v1352
    %v1363 = vpop.f32.mrf.mxu0
    %v1364 = vadd.f32 0.0, %v1363
    %v1365 = vpop.f32.mrf.mxu0
    %1366 = vdwg.mxu0
    %v1367 = vadd.f32 %v1294, %v1364
    %v1368 = vtanh.pop %v1367
    %v1369 = vpack.c.bf16 %v993, %v993
    %v1371 = vsel %vm134, %v1369, 0
    %1373 = vmatpush.bf16.msra.mxu0 0
    %1374 = vmatpush.bf16.msra.mxu0 0
    %1375 = vmatpush.bf16.msra.mxu0 0
    %1376 = vmatpush.bf16.msra.mxu0 0
    %1377 = vmatpush.bf16.msra.mxu0 0
    %1378 = vmatpush.bf16.msra.mxu0 0
    %1379 = vmatpush.bf16.msra.mxu0 0
    %1380 = vmatpush.bf16.msra.mxu0 %v290
    %1381 = vmatmul.bf16.gmra.mxu0 %v1371
    %v1382 = vpop.f32.mrf.mxu0
    %v1383 = vadd.f32 0.0, %v1382
    %v1384 = vpop.f32.mrf.mxu0
    %1385 = vdwg.mxu0
    %v1386 = vadd.f32 %v1002, %v1383
    %v1387 = vtanh.pop %v1386
    %v1388 = vmul.f32 %v1387, %v310
    %v1389 = vsel %vm312, %v1388, 0.0
    %1390 = vadd.xlane.f32.xlu0 %v1389
    %v1391 = vpop.xlane.xlu0 %1390
    %v1392 = vadd.f32 %v1391, %v310
    %v1393 = vld [vmem:[#allocation2 + $0xc4] sm:$0x3]
    %v1394 = vadd.f32 %v1393, %v1392
    %v1395 = vadd.f32 %v1296, %v1392
    %v1396 = vadd.f32 %v1191, %v1392
    %1398 = vrot.lane.b32.xlu0 %v1394, 113
    %v1399 = vpop.permute.xlu0 %1398
    %1402 = vrot.lane.b32.xlu0 %v1395, 114
    %v1403 = vpop.permute.xlu0 %1402
    %1406 = vrot.lane.b32.xlu0 %v1396, 115
    %v1407 = vpop.permute.xlu0 %1406
    %1410 = vrot.lane.b32.xlu0 %v1392, 116
    %v1411 = vpop.permute.xlu0 %1410
    %v1413 = vsel %vm344, %v328, %v1399
    %v1414 = vsel %vm346, %v1413, %v1403
    %v1415 = vsel %vm348, %v1414, %v1407
    %v1416 = vsel %vm350, %v1415, %v1411
    %v1417 = vtanh.pop %v1416
    %v1418 = vsel %vm353, %v1417, -inf
    %1419 = vmax.xlane.f32.xlu0 %v1418
    %v1420 = vpop.xlane.xlu0 %1419
    %v1421 = vsub.f32 %v1417, %v1420
    %v1422 = vmul.f32 %v1421, 1.442695
    %v1423 = vpow.pop %v1422
    %v1424 = vsel %vm353, %v1423, 0.0
    %1425 = vadd.xlane.f32.xlu0 %v1424
    %v1426 = vpop.xlane.xlu0 %1425
    %v1427 = vrcp.pop %v1426
    %v1428 = vmul.f32 %v1426, %v1427
    %v1429 = vsub.f32 1.0, %v1428
    %v1430 = vmul.f32 %v1427, %v1429
    %v1431 = vadd.f32 %v1427, %v1430
    %vm1432 = vweird.f32 %v1426
    %vm1433 = vweird.f32 %v1427
    %vm1434 = vmor %vm1432, %vm1433
    %v1435 = vsel %vm1434, %v1427, %v1431
    %v1436 = vand.u32 2147483647, %v1426
    %vm1437 = vcmp.eq.f32.partialorder %v1436, 8.507059e+37
    %v1438 = vand.u32 %v1426, 2147483648
    %v1439 = vor.u32 1.1754944e-38, %v1438
    %v1440 = vsel %vm1437, %v1439, %v1435
    %v1441 = vmul.f32 %v1423, %v1440
    %1443 = vset.pattern.permute.xlu0 1
    %1444 = vperm.xlu0 %1443, %v1441
    %v1445 = vpop.permute.xlu0 %1444
    %v1447 = vmul.f32 %v1445, %v1387
    %1449 = vrot.lane.b32.xlu0 %v1447, 16
    %v1450 = vpop.permute.xlu0 %1449
    %v1452 = vsel %vm134, %v1368, %v1450
    %v1453 = vpack.c.bf16 %v1452, %v1452
    %v1455 = vsel %vm256, %v1453, 0
    %1457 = vmatpush.bf16.msra.mxu0 0
    %1458 = vmatpush.bf16.msra.mxu0 0
    %1459 = vmatpush.bf16.msra.mxu0 0
    %1460 = vmatpush.bf16.msra.mxu0 0
    %1461 = vmatpush.bf16.msra.mxu0 0
    %1462 = vmatpush.bf16.msra.mxu0 0
    %1463 = vmatpush.bf16.msra.mxu0 %v394
    %1464 = vmatpush.bf16.msra.mxu0 %v290
    %1465 = vmatmul.bf16.gmra.mxu0 %v1455
    %v1466 = vpop.f32.mrf.mxu0
    %v1467 = vadd.f32 0.0, %v1466
    %v1468 = vpop.f32.mrf.mxu0
    %1469 = vdwg.mxu0
    %v1470 = vadd.f32 %v1393, %v1467
    %v1471 = vtanh.pop %v1470
    %v1472 = vmul.f32 %v1471, %v310
    %v1473 = vsel %vm312, %v1472, 0.0
    %1474 = vadd.xlane.f32.xlu0 %v1473
    %v1475 = vpop.xlane.xlu0 %1474
    %v1476 = vadd.f32 %v1475, %v310
    %v1477 = vld [vmem:[#allocation2 + $0xc6] sm:$0x3]
    %v1478 = vadd.f32 %v1477, %v1476
    %v1479 = vld [vmem:[#allocation2 + $0xcc] sm:$0x3]
    %v1480 = vadd.f32 %v1479, %v1476
    %1482 = vrot.lane.b32.xlu0 %v1478, 112
    %v1483 = vpop.permute.xlu0 %1482
    %1486 = vrot.lane.b32.xlu0 %v1480, 113
    %v1487 = vpop.permute.xlu0 %1486
    %1490 = vrot.lane.b32.xlu0 %v1293, 114
    %v1491 = vpop.permute.xlu0 %1490
    %v1493 = vsel %vm344, %v1483, %v1487
    %v1494 = vsel %vm346, %v1493, %v1491
    %v1495 = vsel %vm348, %v1494, %v1308
    %v1496 = vsel %vm350, %v1495, %v1411
    %v1497 = vtanh.pop %v1496
    %v1498 = vsel %vm353, %v1497, -inf
    %1499 = vmax.xlane.f32.xlu0 %v1498
    %v1500 = vpop.xlane.xlu0 %1499
    %v1501 = vsub.f32 %v1497, %v1500
    %v1502 = vmul.f32 %v1501, 1.442695
    %v1503 = vpow.pop %v1502
    %v1504 = vsel %vm353, %v1503, 0.0
    %1505 = vadd.xlane.f32.xlu0 %v1504
    %v1506 = vpop.xlane.xlu0 %1505
    %v1507 = vrcp.pop %v1506
    %v1508 = vmul.f32 %v1506, %v1507
    %v1509 = vsub.f32 1.0, %v1508
    %v1510 = vmul.f32 %v1507, %v1509
    %v1511 = vadd.f32 %v1507, %v1510
    %vm1512 = vweird.f32 %v1506
    %vm1513 = vweird.f32 %v1507
    %vm1514 = vmor %vm1512, %vm1513
    %v1515 = vsel %vm1514, %v1507, %v1511
    %v1516 = vand.u32 2147483647, %v1506
    %vm1517 = vcmp.eq.f32.partialorder %v1516, 8.507059e+37
    %v1518 = vand.u32 %v1506, 2147483648
    %v1519 = vor.u32 1.1754944e-38, %v1518
    %v1520 = vsel %vm1517, %v1519, %v1515
    %v1521 = vmul.f32 %v1503, %v1520
    %1523 = vset.pattern.permute.xlu0 0
    %1524 = vperm.xlu0 %1523, %v1521
    %v1525 = vpop.permute.xlu0 %1524
    %v1527 = vmul.f32 %v1525, %v1471
    %1529 = vrot.lane.b32.xlu0 %v1527, 16
    %v1530 = vpop.permute.xlu0 %1529
    %v1532 = vsel %vm134, 0.0, %v1530
    %v1533 = vpack.c.bf16 %v1532, %v1532
    %v1535 = vsel %vm256, %v1533, 0
    %1537 = vmatpush.bf16.msra.mxu0 0
    %1538 = vmatpush.bf16.msra.mxu0 0
    %1539 = vmatpush.bf16.msra.mxu0 0
    %1540 = vmatpush.bf16.msra.mxu0 0
    %1541 = vmatpush.bf16.msra.mxu0 0
    %1542 = vmatpush.bf16.msra.mxu0 0
    %1543 = vmatpush.bf16.msra.mxu0 %v394
    %1544 = vmatpush.bf16.msra.mxu0 %v290
    %1545 = vmatmul.bf16.gmra.mxu0 %v1535
    %v1546 = vpop.f32.mrf.mxu0
    %v1547 = vadd.f32 0.0, %v1546
    %v1548 = vpop.f32.mrf.mxu0
    %1549 = vdwg.mxu0
    %v1550 = vadd.f32 %v1477, %v1547
    %v1551 = vtanh.pop %v1550
    %v1552 = vmul.f32 %v1387, 0.2
    %1554 = vrot.lane.b32.xlu0 %v1552, 16
    %v1555 = vpop.permute.xlu0 %1554
    %v1557 = vsel %vm134, %v1288, %v1555
    %v1558 = vpack.c.bf16 %v1557, %v1557
    %v1560 = vsel %vm256, %v1558, 0
    %1562 = vmatpush.bf16.msra.mxu0 0
    %1563 = vmatpush.bf16.msra.mxu0 0
    %1564 = vmatpush.bf16.msra.mxu0 0
    %1565 = vmatpush.bf16.msra.mxu0 0
    %1566 = vmatpush.bf16.msra.mxu0 0
    %1567 = vmatpush.bf16.msra.mxu0 0
    %1568 = vmatpush.bf16.msra.mxu0 %v394
    %1569 = vmatpush.bf16.msra.mxu0 %v290
    %1570 = vmatmul.bf16.gmra.mxu0 %v1560
    %v1571 = vpop.f32.mrf.mxu0
    %v1572 = vadd.f32 0.0, %v1571
    %v1573 = vpop.f32.mrf.mxu0
    %1574 = vdwg.mxu0
    %v1575 = vadd.f32 %v1296, %v1572
    %v1576 = vtanh.pop %v1575
    %v1577 = vmul.f32 %v1576, %v310
    %v1578 = vsel %vm312, %v1577, 0.0
    %1579 = vadd.xlane.f32.xlu0 %v1578
    %v1580 = vpop.xlane.xlu0 %1579
    %v1581 = vadd.f32 %v1580, %v310
    %v1582 = vld [vmem:[#allocation2 + $0xca] sm:$0x3]
    %v1583 = vadd.f32 %v1582, %v1581
    %v1584 = vadd.f32 %v1479, %v1581
    %v1585 = vld [vmem:[#allocation2 + $0xd8] sm:$0x3]
    %v1586 = vadd.f32 %v1585, %v1581
    %1588 = vrot.lane.b32.xlu0 %v1583, 112
    %v1589 = vpop.permute.xlu0 %1588
    %1592 = vrot.lane.b32.xlu0 %v1584, 113
    %v1593 = vpop.permute.xlu0 %1592
    %1596 = vrot.lane.b32.xlu0 %v1586, 114
    %v1597 = vpop.permute.xlu0 %1596
    %v1599 = vsel %vm344, %v1589, %v1593
    %v1600 = vsel %vm346, %v1599, %v1597
    %v1601 = vsel %vm348, %v1600, %v1308
    %v1602 = vsel %vm350, %v1601, %v1411
    %v1603 = vtanh.pop %v1602
    %v1604 = vsel %vm353, %v1603, -inf
    %1605 = vmax.xlane.f32.xlu0 %v1604
    %v1606 = vpop.xlane.xlu0 %1605
    %v1607 = vsub.f32 %v1603, %v1606
    %v1608 = vmul.f32 %v1607, 1.442695
    %v1609 = vpow.pop %v1608
    %v1610 = vsel %vm353, %v1609, 0.0
    %1611 = vadd.xlane.f32.xlu0 %v1610
    %v1612 = vpop.xlane.xlu0 %1611
    %v1613 = vrcp.pop %v1612
    %v1614 = vmul.f32 %v1612, %v1613
    %v1615 = vsub.f32 1.0, %v1614
    %v1616 = vmul.f32 %v1613, %v1615
    %v1617 = vadd.f32 %v1613, %v1616
    %vm1618 = vweird.f32 %v1612
    %vm1619 = vweird.f32 %v1613
    %vm1620 = vmor %vm1618, %vm1619
    %v1621 = vsel %vm1620, %v1613, %v1617
    %v1622 = vand.u32 2147483647, %v1612
    %vm1623 = vcmp.eq.f32.partialorder %v1622, 8.507059e+37
    %v1624 = vand.u32 %v1612, 2147483648
    %v1625 = vor.u32 1.1754944e-38, %v1624
    %v1626 = vsel %vm1623, %v1625, %v1621
    %v1627 = vmul.f32 %v1609, %v1626
    %1629 = vset.pattern.permute.xlu0 0
    %1630 = vperm.xlu0 %1629, %v1627
    %v1631 = vpop.permute.xlu0 %1630
    %v1633 = vmul.f32 %v1631, %v1576
    %1635 = vrot.lane.b32.xlu0 %v1633, 16
    %v1636 = vpop.permute.xlu0 %1635
    %v1638 = vsel %vm134, %v1551, %v1636
    %v1639 = vpack.c.bf16 %v1638, %v1638
    %v1641 = vsel %vm256, %v1639, 0
    %1643 = vmatpush.bf16.msra.mxu0 0
    %1644 = vmatpush.bf16.msra.mxu0 0
    %1645 = vmatpush.bf16.msra.mxu0 0
    %1646 = vmatpush.bf16.msra.mxu0 0
    %1647 = vmatpush.bf16.msra.mxu0 0
    %1648 = vmatpush.bf16.msra.mxu0 0
    %1649 = vmatpush.bf16.msra.mxu0 %v394
    %1650 = vmatpush.bf16.msra.mxu0 %v290
    %1651 = vmatmul.bf16.gmra.mxu0 %v1641
    %v1652 = vpop.f32.mrf.mxu0
    %v1653 = vadd.f32 0.0, %v1652
    %v1654 = vpop.f32.mrf.mxu0
    %1655 = vdwg.mxu0
    %v1656 = vadd.f32 %v1582, %v1653
    %v1657 = vtanh.pop %v1656
    %v1658 = vmul.f32 %v1576, 0.2
    %1660 = vrot.lane.b32.xlu0 %v1658, 16
    %v1661 = vpop.permute.xlu0 %1660
    %v1663 = vsel %vm134, %v1471, %v1661
    %v1664 = vpack.c.bf16 %v1663, %v1663
    %v1666 = vsel %vm256, %v1664, 0
    %1668 = vmatpush.bf16.msra.mxu0 0
    %1669 = vmatpush.bf16.msra.mxu0 0
    %1670 = vmatpush.bf16.msra.mxu0 0
    %1671 = vmatpush.bf16.msra.mxu0 0
    %1672 = vmatpush.bf16.msra.mxu0 0
    %1673 = vmatpush.bf16.msra.mxu0 0
    %1674 = vmatpush.bf16.msra.mxu0 %v394
    %1675 = vmatpush.bf16.msra.mxu0 %v290
    %1676 = vmatmul.bf16.gmra.mxu0 %v1666
    %v1677 = vpop.f32.mrf.mxu0
    %v1678 = vadd.f32 0.0, %v1677
    %v1679 = vpop.f32.mrf.mxu0
    %1680 = vdwg.mxu0
    %v1681 = vadd.f32 %v1479, %v1678
    %v1682 = vtanh.pop %v1681
    %v1683 = vmul.f32 %v1682, %v310
    %v1684 = vsel %vm312, %v1683, 0.0
    %1685 = vadd.xlane.f32.xlu0 %v1684
    %v1686 = vpop.xlane.xlu0 %1685
    %v1687 = vadd.f32 %v1686, %v310
    %v1688 = vld [vmem:[#allocation2 + $0xce] sm:$0x3]
    %v1689 = vadd.f32 %v1688, %v1687
    %v1690 = vld [vmem:[#allocation2 + $0xd4] sm:$0x3]
    %v1691 = vadd.f32 %v1690, %v1687
    %1693 = vrot.lane.b32.xlu0 %v1689, 112
    %v1694 = vpop.permute.xlu0 %1693
    %1697 = vrot.lane.b32.xlu0 %v1691, 113
    %v1698 = vpop.permute.xlu0 %1697
    %1701 = vrot.lane.b32.xlu0 %v1581, 114
    %v1702 = vpop.permute.xlu0 %1701
    %v1704 = vsel %vm344, %v1694, %v1698
    %v1705 = vsel %vm346, %v1704, %v1702
    %v1706 = vsel %vm348, %v1705, %v1308
    %v1707 = vsel %vm350, %v1706, %v1411
    %v1708 = vtanh.pop %v1707
    %v1709 = vsel %vm353, %v1708, -inf
    %1710 = vmax.xlane.f32.xlu0 %v1709
    %v1711 = vpop.xlane.xlu0 %1710
    %v1712 = vsub.f32 %v1708, %v1711
    %v1713 = vmul.f32 %v1712, 1.442695
    %v1714 = vpow.pop %v1713
    %v1715 = vsel %vm353, %v1714, 0.0
    %1716 = vadd.xlane.f32.xlu0 %v1715
    %v1717 = vpop.xlane.xlu0 %1716
    %v1718 = vrcp.pop %v1717
    %v1719 = vmul.f32 %v1717, %v1718
    %v1720 = vsub.f32 1.0, %v1719
    %v1721 = vmul.f32 %v1718, %v1720
    %v1722 = vadd.f32 %v1718, %v1721
    %vm1723 = vweird.f32 %v1717
    %vm1724 = vweird.f32 %v1718
    %vm1725 = vmor %vm1723, %vm1724
    %v1726 = vsel %vm1725, %v1718, %v1722
    %v1727 = vand.u32 2147483647, %v1717
    %vm1728 = vcmp.eq.f32.partialorder %v1727, 8.507059e+37
    %v1729 = vand.u32 %v1717, 2147483648
    %v1730 = vor.u32 1.1754944e-38, %v1729
    %v1731 = vsel %vm1728, %v1730, %v1726
    %v1732 = vmul.f32 %v1714, %v1731
    %1734 = vset.pattern.permute.xlu0 0
    %1735 = vperm.xlu0 %1734, %v1732
    %v1736 = vpop.permute.xlu0 %1735
    %v1738 = vmul.f32 %v1736, %v1682
    %1740 = vrot.lane.b32.xlu0 %v1738, 16
    %v1741 = vpop.permute.xlu0 %1740
    %v1743 = vsel %vm134, %v1657, %v1741
    %v1744 = vpack.c.bf16 %v1743, %v1743
    %v1746 = vsel %vm256, %v1744, 0
    %1748 = vmatpush.bf16.msra.mxu0 0
    %1749 = vmatpush.bf16.msra.mxu0 0
    %1750 = vmatpush.bf16.msra.mxu0 0
    %1751 = vmatpush.bf16.msra.mxu0 0
    %1752 = vmatpush.bf16.msra.mxu0 0
    %1753 = vmatpush.bf16.msra.mxu0 0
    %1754 = vmatpush.bf16.msra.mxu0 %v394
    %1755 = vmatpush.bf16.msra.mxu0 %v290
    %1756 = vmatmul.bf16.gmra.mxu0 %v1746
    %v1757 = vpop.f32.mrf.mxu0
    %v1758 = vadd.f32 0.0, %v1757
    %v1759 = vpop.f32.mrf.mxu0
    %1760 = vdwg.mxu0
    %v1761 = vadd.f32 %v1688, %v1758
    %v1762 = vtanh.pop %v1761
    %v1763 = vsel %vm134, %v1182, %v1555
    %v1764 = vpack.c.bf16 %v1763, %v1763
    %v1766 = vsel %vm256, %v1764, 0
    %1768 = vmatpush.bf16.msra.mxu0 0
    %1769 = vmatpush.bf16.msra.mxu0 0
    %1770 = vmatpush.bf16.msra.mxu0 0
    %1771 = vmatpush.bf16.msra.mxu0 0
    %1772 = vmatpush.bf16.msra.mxu0 0
    %1773 = vmatpush.bf16.msra.mxu0 0
    %1774 = vmatpush.bf16.msra.mxu0 %v394
    %1775 = vmatpush.bf16.msra.mxu0 %v290
    %1776 = vmatmul.bf16.gmra.mxu0 %v1766
    %v1777 = vpop.f32.mrf.mxu0
    %v1778 = vadd.f32 0.0, %v1777
    %v1779 = vpop.f32.mrf.mxu0
    %1780 = vdwg.mxu0
    %v1781 = vadd.f32 %v1191, %v1778
    %v1782 = vtanh.pop %v1781
    %v1783 = vmul.f32 %v1782, %v310
    %v1784 = vsel %vm312, %v1783, 0.0
    %1785 = vadd.xlane.f32.xlu0 %v1784
    %v1786 = vpop.xlane.xlu0 %1785
    %v1787 = vadd.f32 %v1786, %v310
    %v1788 = vld [vmem:[#allocation2 + $0xd2] sm:$0x3]
    %v1789 = vadd.f32 %v1788, %v1787
    %v1790 = vadd.f32 %v1690, %v1787
    %v1791 = vadd.f32 %v1585, %v1787
    %1793 = vrot.lane.b32.xlu0 %v1789, 112
    %v1794 = vpop.permute.xlu0 %1793
    %1797 = vrot.lane.b32.xlu0 %v1790, 113
    %v1798 = vpop.permute.xlu0 %1797
    %1801 = vrot.lane.b32.xlu0 %v1791, 114
    %v1802 = vpop.permute.xlu0 %1801
    %1805 = vrot.lane.b32.xlu0 %v1787, 115
    %v1806 = vpop.permute.xlu0 %1805
    %v1808 = vsel %vm344, %v1794, %v1798
    %v1809 = vsel %vm346, %v1808, %v1802
    %v1810 = vsel %vm348, %v1809, %v1806
    %v1811 = vsel %vm350, %v1810, %v1411
    %v1812 = vtanh.pop %v1811
    %v1813 = vsel %vm353, %v1812, -inf
    %1814 = vmax.xlane.f32.xlu0 %v1813
    %v1815 = vpop.xlane.xlu0 %1814
    %v1816 = vsub.f32 %v1812, %v1815
    %v1817 = vmul.f32 %v1816, 1.442695
    %v1818 = vpow.pop %v1817
    %v1819 = vsel %vm353, %v1818, 0.0
    %1820 = vadd.xlane.f32.xlu0 %v1819
    %v1821 = vpop.xlane.xlu0 %1820
    %v1822 = vrcp.pop %v1821
    %v1823 = vmul.f32 %v1821, %v1822
    %v1824 = vsub.f32 1.0, %v1823
    %v1825 = vmul.f32 %v1822, %v1824
    %v1826 = vadd.f32 %v1822, %v1825
    %vm1827 = vweird.f32 %v1821
    %vm1828 = vweird.f32 %v1822
    %vm1829 = vmor %vm1827, %vm1828
    %v1830 = vsel %vm1829, %v1822, %v1826
    %v1831 = vand.u32 2147483647, %v1821
    %vm1832 = vcmp.eq.f32.partialorder %v1831, 8.507059e+37
    %v1833 = vand.u32 %v1821, 2147483648
    %v1834 = vor.u32 1.1754944e-38, %v1833
    %v1835 = vsel %vm1832, %v1834, %v1830
    %v1836 = vmul.f32 %v1818, %v1835
    %1838 = vset.pattern.permute.xlu0 0
    %1839 = vperm.xlu0 %1838, %v1836
    %v1840 = vpop.permute.xlu0 %1839
    %v1842 = vmul.f32 %v1840, %v1782
    %1844 = vrot.lane.b32.xlu0 %v1842, 16
    %v1845 = vpop.permute.xlu0 %1844
    %v1847 = vsel %vm134, %v1762, %v1845
    %v1848 = vpack.c.bf16 %v1847, %v1847
    %v1850 = vsel %vm256, %v1848, 0
    %1852 = vmatpush.bf16.msra.mxu0 0
    %1853 = vmatpush.bf16.msra.mxu0 0
    %1854 = vmatpush.bf16.msra.mxu0 0
    %1855 = vmatpush.bf16.msra.mxu0 0
    %1856 = vmatpush.bf16.msra.mxu0 0
    %1857 = vmatpush.bf16.msra.mxu0 0
    %1858 = vmatpush.bf16.msra.mxu0 %v394
    %1859 = vmatpush.bf16.msra.mxu0 %v290
    %1860 = vmatmul.bf16.gmra.mxu0 %v1850
    %v1861 = vpop.f32.mrf.mxu0
    %v1862 = vadd.f32 0.0, %v1861
    %v1863 = vpop.f32.mrf.mxu0
    %1864 = vdwg.mxu0
    %v1865 = vadd.f32 %v1788, %v1862
    %v1866 = vtanh.pop %v1865
    %v1867 = vmul.f32 %v1782, 0.2
    %1869 = vrot.lane.b32.xlu0 %v1867, 16
    %v1870 = vpop.permute.xlu0 %1869
    %v1872 = vsel %vm134, %v1682, %v1870
    %v1873 = vpack.c.bf16 %v1872, %v1872
    %v1875 = vsel %vm256, %v1873, 0
    %1877 = vmatpush.bf16.msra.mxu0 0
    %1878 = vmatpush.bf16.msra.mxu0 0
    %1879 = vmatpush.bf16.msra.mxu0 0
    %1880 = vmatpush.bf16.msra.mxu0 0
    %1881 = vmatpush.bf16.msra.mxu0 0
    %1882 = vmatpush.bf16.msra.mxu0 0
    %1883 = vmatpush.bf16.msra.mxu0 %v394
    %1884 = vmatpush.bf16.msra.mxu0 %v290
    %1885 = vmatmul.bf16.gmra.mxu0 %v1875
    %v1886 = vpop.f32.mrf.mxu0
    %v1887 = vadd.f32 0.0, %v1886
    %v1888 = vpop.f32.mrf.mxu0
    %1889 = vdwg.mxu0
    %v1890 = vadd.f32 %v1690, %v1887
    %v1891 = vtanh.pop %v1890
    %v1892 = vmul.f32 %v1891, %v310
    %v1893 = vsel %vm312, %v1892, 0.0
    %1894 = vadd.xlane.f32.xlu0 %v1893
    %v1895 = vpop.xlane.xlu0 %1894
    %v1896 = vadd.f32 %v1895, %v310
    %v1897 = vld [vmem:[#allocation2 + $0xd6] sm:$0x3]
    %v1898 = vadd.f32 %v1897, %v1896
    %v1899 = vld [vmem:[#allocation2 + $0xdc] sm:$0x3]
    %v1900 = vadd.f32 %v1899, %v1896
    %1902 = vrot.lane.b32.xlu0 %v1898, 112
    %v1903 = vpop.permute.xlu0 %1902
    %1906 = vrot.lane.b32.xlu0 %v1900, 113
    %v1907 = vpop.permute.xlu0 %1906
    %v1909 = vsel %vm344, %v1903, %v1907
    %v1910 = vsel %vm346, %v1909, %v1702
    %v1911 = vsel %vm348, %v1910, %v1806
    %v1912 = vsel %vm350, %v1911, %v1411
    %v1913 = vtanh.pop %v1912
    %v1914 = vsel %vm353, %v1913, -inf
    %1915 = vmax.xlane.f32.xlu0 %v1914
    %v1916 = vpop.xlane.xlu0 %1915
    %v1917 = vsub.f32 %v1913, %v1916
    %v1918 = vmul.f32 %v1917, 1.442695
    %v1919 = vpow.pop %v1918
    %v1920 = vsel %vm353, %v1919, 0.0
    %1921 = vadd.xlane.f32.xlu0 %v1920
    %v1922 = vpop.xlane.xlu0 %1921
    %v1923 = vrcp.pop %v1922
    %v1924 = vmul.f32 %v1922, %v1923
    %v1925 = vsub.f32 1.0, %v1924
    %v1926 = vmul.f32 %v1923, %v1925
    %v1927 = vadd.f32 %v1923, %v1926
    %vm1928 = vweird.f32 %v1922
    %vm1929 = vweird.f32 %v1923
    %vm1930 = vmor %vm1928, %vm1929
    %v1931 = vsel %vm1930, %v1923, %v1927
    %v1932 = vand.u32 2147483647, %v1922
    %vm1933 = vcmp.eq.f32.partialorder %v1932, 8.507059e+37
    %v1934 = vand.u32 %v1922, 2147483648
    %v1935 = vor.u32 1.1754944e-38, %v1934
    %v1936 = vsel %vm1933, %v1935, %v1931
    %v1937 = vmul.f32 %v1919, %v1936
    %1939 = vset.pattern.permute.xlu0 0
    %1940 = vperm.xlu0 %1939, %v1937
    %v1941 = vpop.permute.xlu0 %1940
    %v1943 = vmul.f32 %v1941, %v1891
    %1945 = vrot.lane.b32.xlu0 %v1943, 16
    %v1946 = vpop.permute.xlu0 %1945
    %v1948 = vsel %vm134, %v1866, %v1946
    %v1949 = vpack.c.bf16 %v1948, %v1948
    %v1951 = vsel %vm256, %v1949, 0
    %1953 = vmatpush.bf16.msra.mxu0 0
    %1954 = vmatpush.bf16.msra.mxu0 0
    %1955 = vmatpush.bf16.msra.mxu0 0
    %1956 = vmatpush.bf16.msra.mxu0 0
    %1957 = vmatpush.bf16.msra.mxu0 0
    %1958 = vmatpush.bf16.msra.mxu0 0
    %1959 = vmatpush.bf16.msra.mxu0 %v394
    %1960 = vmatpush.bf16.msra.mxu0 %v290
    %1961 = vmatmul.bf16.gmra.mxu0 %v1951
    %v1962 = vpop.f32.mrf.mxu0
    %v1963 = vadd.f32 0.0, %v1962
    %v1964 = vpop.f32.mrf.mxu0
    %1965 = vdwg.mxu0
    %v1966 = vadd.f32 %v1897, %v1963
    %v1967 = vtanh.pop %v1966
    %v1968 = vsel %vm134, %v1576, %v1870
    %v1969 = vpack.c.bf16 %v1968, %v1968
    %v1971 = vsel %vm256, %v1969, 0
    %1973 = vmatpush.bf16.msra.mxu0 0
    %1974 = vmatpush.bf16.msra.mxu0 0
    %1975 = vmatpush.bf16.msra.mxu0 0
    %1976 = vmatpush.bf16.msra.mxu0 0
    %1977 = vmatpush.bf16.msra.mxu0 0
    %1978 = vmatpush.bf16.msra.mxu0 0
    %1979 = vmatpush.bf16.msra.mxu0 %v394
    %1980 = vmatpush.bf16.msra.mxu0 %v290
    %1981 = vmatmul.bf16.gmra.mxu0 %v1971
    %v1982 = vpop.f32.mrf.mxu0
    %v1983 = vadd.f32 0.0, %v1982
    %v1984 = vpop.f32.mrf.mxu0
    %1985 = vdwg.mxu0
    %v1986 = vadd.f32 %v1585, %v1983
    %v1987 = vtanh.pop %v1986
    %v1988 = vmul.f32 %v1987, %v310
    %v1989 = vsel %vm312, %v1988, 0.0
    %1990 = vadd.xlane.f32.xlu0 %v1989
    %v1991 = vpop.xlane.xlu0 %1990
    %v1992 = vadd.f32 %v1991, %v310
    %v1993 = vld [vmem:[#allocation2 + $0xda] sm:$0x3]
    %v1994 = vadd.f32 %v1993, %v1992
    %v1995 = vadd.f32 %v1899, %v1992
    %1997 = vrot.lane.b32.xlu0 %v1994, 112
    %v1998 = vpop.permute.xlu0 %1997
    %2001 = vrot.lane.b32.xlu0 %v1995, 113
    %v2002 = vpop.permute.xlu0 %2001
    %2005 = vrot.lane.b32.xlu0 %v1992, 114
    %v2006 = vpop.permute.xlu0 %2005
    %v2008 = vsel %vm344, %v1998, %v2002
    %v2009 = vsel %vm346, %v2008, %v2006
    %v2010 = vsel %vm348, %v2009, %v1806
    %v2011 = vsel %vm350, %v2010, %v1411
    %v2012 = vtanh.pop %v2011
    %v2013 = vsel %vm353, %v2012, -inf
    %2014 = vmax.xlane.f32.xlu0 %v2013
    %v2015 = vpop.xlane.xlu0 %2014
    %v2016 = vsub.f32 %v2012, %v2015
    %v2017 = vmul.f32 %v2016, 1.442695
    %v2018 = vpow.pop %v2017
    %v2019 = vsel %vm353, %v2018, 0.0
    %2020 = vadd.xlane.f32.xlu0 %v2019
    %v2021 = vpop.xlane.xlu0 %2020
    %v2022 = vrcp.pop %v2021
    %v2023 = vmul.f32 %v2021, %v2022
    %v2024 = vsub.f32 1.0, %v2023
    %v2025 = vmul.f32 %v2022, %v2024
    %v2026 = vadd.f32 %v2022, %v2025
    %vm2027 = vweird.f32 %v2021
    %vm2028 = vweird.f32 %v2022
    %vm2029 = vmor %vm2027, %vm2028
    %v2030 = vsel %vm2029, %v2022, %v2026
    %v2031 = vand.u32 2147483647, %v2021
    %vm2032 = vcmp.eq.f32.partialorder %v2031, 8.507059e+37
    %v2033 = vand.u32 %v2021, 2147483648
    %v2034 = vor.u32 1.1754944e-38, %v2033
    %v2035 = vsel %vm2032, %v2034, %v2030
    %v2036 = vmul.f32 %v2018, %v2035
    %2038 = vset.pattern.permute.xlu0 0
    %2039 = vperm.xlu0 %2038, %v2036
    %v2040 = vpop.permute.xlu0 %2039
    %v2042 = vmul.f32 %v2040, %v1987
    %2044 = vrot.lane.b32.xlu0 %v2042, 16
    %v2045 = vpop.permute.xlu0 %2044
    %v2047 = vsel %vm134, %v1967, %v2045
    %v2048 = vpack.c.bf16 %v2047, %v2047
    %v2050 = vsel %vm256, %v2048, 0
    %2052 = vmatpush.bf16.msra.mxu0 0
    %2053 = vmatpush.bf16.msra.mxu0 0
    %2054 = vmatpush.bf16.msra.mxu0 0
    %2055 = vmatpush.bf16.msra.mxu0 0
    %2056 = vmatpush.bf16.msra.mxu0 0
    %2057 = vmatpush.bf16.msra.mxu0 0
    %2058 = vmatpush.bf16.msra.mxu0 %v394
    %2059 = vmatpush.bf16.msra.mxu0 %v290
    %2060 = vmatmul.bf16.gmra.mxu0 %v2050
    %v2061 = vpop.f32.mrf.mxu0
    %v2062 = vadd.f32 0.0, %v2061
    %v2063 = vpop.f32.mrf.mxu0
    %2064 = vdwg.mxu0
    %v2065 = vadd.f32 %v1993, %v2062
    %v2066 = vtanh.pop %v2065
    %v2067 = vmul.f32 %v1987, 0.2
    %2069 = vrot.lane.b32.xlu0 %v2067, 16
    %v2070 = vpop.permute.xlu0 %2069
    %v2072 = vsel %vm134, %v1891, %v2070
    %v2073 = vpack.c.bf16 %v2072, %v2072
    %v2075 = vsel %vm256, %v2073, 0
    %2077 = vmatpush.bf16.msra.mxu0 0
    %2078 = vmatpush.bf16.msra.mxu0 0
    %2079 = vmatpush.bf16.msra.mxu0 0
    %2080 = vmatpush.bf16.msra.mxu0 0
    %2081 = vmatpush.bf16.msra.mxu0 0
    %2082 = vmatpush.bf16.msra.mxu0 0
    %2083 = vmatpush.bf16.msra.mxu0 %v394
    %2084 = vmatpush.bf16.msra.mxu0 %v290
    %2085 = vmatmul.bf16.gmra.mxu0 %v2075
    %v2086 = vpop.f32.mrf.mxu0
    %v2087 = vadd.f32 0.0, %v2086
    %v2088 = vpop.f32.mrf.mxu0
    %2089 = vdwg.mxu0
    %v2090 = vadd.f32 %v1899, %v2087
    %v2091 = vtanh.pop %v2090
    %v2092 = vmul.f32 %v2091, %v310
    %v2093 = vsel %vm312, %v2092, 0.0
    %2094 = vadd.xlane.f32.xlu0 %v2093
    %v2095 = vpop.xlane.xlu0 %2094
    %v2096 = vadd.f32 %v2095, %v310
    %v2097 = vld [vmem:[#allocation2 + $0xde] sm:$0x3]
    %v2098 = vadd.f32 %v2097, %v2096
    %2100 = vrot.lane.b32.xlu0 %v2098, 112
    %v2101 = vpop.permute.xlu0 %2100
    %2104 = vrot.lane.b32.xlu0 %v2096, 113
    %v2105 = vpop.permute.xlu0 %2104
    %v2107 = vsel %vm344, %v2101, %v2105
    %v2108 = vsel %vm346, %v2107, %v2006
    %v2109 = vsel %vm348, %v2108, %v1806
    %v2110 = vsel %vm350, %v2109, %v1411
    %v2111 = vtanh.pop %v2110
    %v2112 = vsel %vm353, %v2111, -inf
    %2113 = vmax.xlane.f32.xlu0 %v2112
    %v2114 = vpop.xlane.xlu0 %2113
    %v2115 = vsub.f32 %v2111, %v2114
    %v2116 = vmul.f32 %v2115, 1.442695
    %v2117 = vpow.pop %v2116
    %v2118 = vsel %vm353, %v2117, 0.0
    %2119 = vadd.xlane.f32.xlu0 %v2118
    %v2120 = vpop.xlane.xlu0 %2119
    %v2121 = vrcp.pop %v2120
    %v2122 = vmul.f32 %v2120, %v2121
    %v2123 = vsub.f32 1.0, %v2122
    %v2124 = vmul.f32 %v2121, %v2123
    %v2125 = vadd.f32 %v2121, %v2124
    %vm2126 = vweird.f32 %v2120
    %vm2127 = vweird.f32 %v2121
    %vm2128 = vmor %vm2126, %vm2127
    %v2129 = vsel %vm2128, %v2121, %v2125
    %v2130 = vand.u32 2147483647, %v2120
    %vm2131 = vcmp.eq.f32.partialorder %v2130, 8.507059e+37
    %v2132 = vand.u32 %v2120, 2147483648
    %v2133 = vor.u32 1.1754944e-38, %v2132
    %v2134 = vsel %vm2131, %v2133, %v2129
    %v2135 = vmul.f32 %v2117, %v2134
    %2137 = vset.pattern.permute.xlu0 0
    %2138 = vperm.xlu0 %2137, %v2135
    %v2139 = vpop.permute.xlu0 %2138
    %v2141 = vmul.f32 %v2139, %v2091
    %2143 = vrot.lane.b32.xlu0 %v2141, 16
    %v2144 = vpop.permute.xlu0 %2143
    %v2146 = vsel %vm134, %v2066, %v2144
    %v2147 = vpack.c.bf16 %v2146, %v2146
    %v2149 = vsel %vm256, %v2147, 0
    %2151 = vmatpush.bf16.msra.mxu0 0
    %2152 = vmatpush.bf16.msra.mxu0 0
    %2153 = vmatpush.bf16.msra.mxu0 0
    %2154 = vmatpush.bf16.msra.mxu0 0
    %2155 = vmatpush.bf16.msra.mxu0 0
    %2156 = vmatpush.bf16.msra.mxu0 0
    %2157 = vmatpush.bf16.msra.mxu0 %v394
    %2158 = vmatpush.bf16.msra.mxu0 %v290
    %2159 = vmatmul.bf16.gmra.mxu0 %v2149
    %v2160 = vpop.f32.mrf.mxu0
    %v2161 = vadd.f32 0.0, %v2160
    %v2162 = vpop.f32.mrf.mxu0
    %2163 = vdwg.mxu0
    %v2164 = vadd.f32 %v2097, %v2161
    %v2165 = vtanh.pop %v2164
    %2167 = vrot.lane.b32.xlu0 %v2091, 16
    %v2168 = vpop.permute.xlu0 %2167
    %2171 = vrot.lane.b32.xlu0 %v1987, 32
    %v2172 = vpop.permute.xlu0 %2171
    %2175 = vrot.lane.b32.xlu0 %v1782, 48
    %v2176 = vpop.permute.xlu0 %2175
    %2179 = vrot.lane.b32.xlu0 %v1387, 64
    %v2180 = vpop.permute.xlu0 %2179
    %v2182 = vsel %vm134, %v2165, %v2168
    %v2183 = vsel %vm256, %v2182, %v2172
    %vm2184 = vcmask 392192
    %v2185 = vsel %vm2184, %v2183, %v2176
    %vm2186 = vcmask 523264
    %v2187 = vsel %vm2186, %v2185, %v2180
    %vm2188 = vcmask 654336
    %v2189 = vsel %vm2188, %v2187, 0.0
    %v2190 = vld [vmem:[%s1 + $0x18] sm:$0xf]
    %v2191 = vld [vmem:[%s1 + $0x1c] sm:$0xf]
    %v2192 = vld [vmem:[%s1 + $0x20] sm:$0xf]
    %v2193 = vld [vmem:[%s1 + $0x24] sm:$0xf]
    %v2194 = vld [vmem:[%s1 + $0x28] sm:$0xf]
    %v2195 = vld [vmem:[%s1 + $0x2c] sm:$0xf]
    %v2196 = vld [vmem:[%s1 + $0x30] sm:$0xf]
    %v2197 = vld [vmem:[%s1 + $0x34] sm:$0xf]
    %v2198 = vld [vmem:[%s1 + $0x38] sm:$0xf]
    %v2199 = vld [vmem:[%s1 + $0x3c] sm:$0xf]
    %v2200 = vld [vmem:[%s1 + $0x40] sm:$0xf]
    %v2201 = vld [vmem:[%s1 + $0x44] sm:$0xf]
    %v2202 = vld [vmem:[%s1 + $0x48] sm:$0xf]
    %v2203 = vld [vmem:[%s1 + $0x4c] sm:$0xf]
    %v2204 = vld [vmem:[%s1 + $0x50] sm:$0xf]
    %v2205 = vld [vmem:[%s1 + $0x54] sm:$0xf]
    %v2206 = vpack.c.bf16 %v2189, %v2189
    %v2207 = vperm.slane %v19, 2
    %v2224 = vunpack.c.l.b16 %v2190
    %v2225 = vunpack.c.l.b16 %v2191
    %v2226 = vunpack.c.l.b16 %v2192
    %v2227 = vunpack.c.l.b16 %v2193
    %v2228 = vunpack.c.l.b16 %v2194
    %v2229 = vunpack.c.l.b16 %v2195
    %v2230 = vunpack.c.l.b16 %v2196
    %v2231 = vunpack.c.l.b16 %v2197
    %v2232 = vunpack.c.l.b16 %v2198
    %v2233 = vunpack.c.l.b16 %v2199
    %v2234 = vunpack.c.l.b16 %v2200
    %v2235 = vunpack.c.l.b16 %v2201
    %v2236 = vunpack.c.l.b16 %v2202
    %v2237 = vunpack.c.l.b16 %v2203
    %v2238 = vunpack.c.l.b16 %v2204
    %v2239 = vunpack.c.l.b16 %v2205
    %v2240 = vpack.c.b16 %v2225, %v2224
    %v2241 = vpack.c.b16 %v2227, %v2226
    %v2242 = vpack.c.b16 %v2229, %v2228
    %v2243 = vpack.c.b16 %v2231, %v2230
    %v2244 = vpack.c.b16 %v2233, %v2232
    %v2245 = vpack.c.b16 %v2235, %v2234
    %v2246 = vpack.c.b16 %v2237, %v2236
    %v2247 = vpack.c.b16 %v2239, %v2238
    %2256 = vmatpush.bf16.msra.mxu0 %v2247
    %2257 = vmatpush.bf16.msra.mxu0 %v2246
    %2258 = vmatpush.bf16.msra.mxu0 %v2245
    %2259 = vmatpush.bf16.msra.mxu0 %v2244
    %2260 = vmatpush.bf16.msra.mxu0 %v2243
    %2261 = vmatpush.bf16.msra.mxu0 %v2242
    %2262 = vmatpush.bf16.msra.mxu0 %v2241
    %2263 = vmatpush.bf16.msra.mxu0 %v2240
    %2264 = vmatmul.bf16.gmra.mxu0 %v2206
    %v2265 = vpop.f32.mrf.mxu0
    %v2266 = vadd.f32 %v2207, %v2265
    %v2267 = vpop.f32.mrf.mxu0
    %2268 = vdwg.mxu0
    %v2269 = vld [vmem:[%s0 + $0x70] sm:$0xf]
    %v2270 = vld [vmem:[%s0 + $0x74] sm:$0xf]
    %v2271 = vld [vmem:[%s2] sm:$0xff]
    %v2272 = vld [vmem:[%s2 + $0x8] sm:$0xff]
    %v2273 = vld [vmem:[%s2 + $0x10] sm:$0xff]
    %v2274 = vld [vmem:[%s2 + $0x18] sm:$0xff]
    %v2275 = vperm.slane %v19, 1
    %v2276 = vperm.slane %v20, 1
    %v2277 = vperm.slane %v21, 1
    %v2278 = vperm.slane %v22, 1
    %v2281 = vunpack.c.l.b16 %v2269
    %v2282 = vunpack.c.l.b16 %v2270
    %v2283 = vpack.c.b16 %v2282, %v2281
    %v2288 = vunpack.c.l.b16 %v2271
    %v2289 = vunpack.c.h.b16 %v2271
    %v2290 = vunpack.c.l.b16 %v2272
    %v2291 = vunpack.c.h.b16 %v2272
    %v2292 = vunpack.c.l.b16 %v2273
    %v2293 = vunpack.c.h.b16 %v2273
    %v2294 = vunpack.c.l.b16 %v2274
    %v2295 = vunpack.c.h.b16 %v2274
    %v2296 = vpack.c.b16 %v2292, %v2288
    %v2297 = vpack.c.b16 %v2293, %v2289
    %v2298 = vpack.c.b16 %v2294, %v2290
    %v2299 = vpack.c.b16 %v2295, %v2291
    %v2305 = vsel %vm134, %v2283, 0
    %2307 = vmatpush.bf16.msra.mxu0 0
    %2308 = vmatpush.bf16.msra.mxu0 0
    %2309 = vmatpush.bf16.msra.mxu0 0
    %2310 = vmatpush.bf16.msra.mxu0 0
    %2311 = vmatpush.bf16.msra.mxu0 0
    %2312 = vmatpush.bf16.msra.mxu0 0
    %2313 = vmatpush.bf16.msra.mxu0 0
    %2314 = vmatpush.bf16.msra.mxu0 %v2296
    %2315 = vmatmul.bf16.gmra.mxu0 %v2305
    %v2316 = vpop.f32.mrf.mxu0
    %v2317 = vadd.f32 %v2275, %v2316
    %v2318 = vpop.f32.mrf.mxu0
    %v2319 = vadd.f32 %v2275, %v2318
    %2320 = vdwg.mxu0
    %2321 = vmatpush.bf16.msra.mxu0 0
    %2322 = vmatpush.bf16.msra.mxu0 0
    %2323 = vmatpush.bf16.msra.mxu0 0
    %2324 = vmatpush.bf16.msra.mxu0 0
    %2325 = vmatpush.bf16.msra.mxu0 0
    %2326 = vmatpush.bf16.msra.mxu0 0
    %2327 = vmatpush.bf16.msra.mxu0 0
    %2328 = vmatpush.bf16.msra.mxu0 %v2297
    %2329 = vmatmul.bf16.gmra.mxu0 %v2305
    %v2330 = vpop.f32.mrf.mxu0
    %v2331 = vadd.f32 %v2276, %v2330
    %v2332 = vpop.f32.mrf.mxu0
    %v2333 = vadd.f32 %v2276, %v2332
    %2334 = vdwg.mxu0
    %2335 = vmatpush.bf16.msra.mxu0 0
    %2336 = vmatpush.bf16.msra.mxu0 0
    %2337 = vmatpush.bf16.msra.mxu0 0
    %2338 = vmatpush.bf16.msra.mxu0 0
    %2339 = vmatpush.bf16.msra.mxu0 0
    %2340 = vmatpush.bf16.msra.mxu0 0
    %2341 = vmatpush.bf16.msra.mxu0 0
    %2342 = vmatpush.bf16.msra.mxu0 %v2298
    %2343 = vmatmul.bf16.gmra.mxu0 %v2305
    %v2344 = vpop.f32.mrf.mxu0
    %v2345 = vadd.f32 %v2277, %v2344
    %v2346 = vpop.f32.mrf.mxu0
    %v2347 = vadd.f32 %v2277, %v2346
    %2348 = vdwg.mxu0
    %2349 = vmatpush.bf16.msra.mxu0 0
    %2350 = vmatpush.bf16.msra.mxu0 0
    %2351 = vmatpush.bf16.msra.mxu0 0
    %2352 = vmatpush.bf16.msra.mxu0 0
    %2353 = vmatpush.bf16.msra.mxu0 0
    %2354 = vmatpush.bf16.msra.mxu0 0
    %2355 = vmatpush.bf16.msra.mxu0 0
    %2356 = vmatpush.bf16.msra.mxu0 %v2299
    %2357 = vmatmul.bf16.gmra.mxu0 %v2305
    %v2358 = vpop.f32.mrf.mxu0
    %v2359 = vadd.f32 %v2278, %v2358
    %v2360 = vpop.f32.mrf.mxu0
    %v2361 = vadd.f32 %v2278, %v2360
    %2362 = vdwg.mxu0
    %v2363 = vld [vmem:[%s2 + $0x20] sm:$0xff]
    %v2364 = vld [vmem:[%s2 + $0x28] sm:$0xff]
    %v2365 = vld [vmem:[%s2 + $0x30] sm:$0xff]
    %v2366 = vld [vmem:[%s2 + $0x38] sm:$0xff]
    %v2367 = vld [vmem:[%s2 + $0x40] sm:$0xff]
    %v2368 = vld [vmem:[%s2 + $0x48] sm:$0xff]
    %v2369 = vld [vmem:[%s2 + $0x50] sm:$0xff]
    %v2370 = vld [vmem:[%s2 + $0x58] sm:$0xff]
    %v2371 = vld [vmem:[%s2 + $0x60] sm:$0xff]
    %v2372 = vld [vmem:[%s2 + $0x68] sm:$0xff]
    %v2373 = vld [vmem:[%s2 + $0x70] sm:$0xff]
    %v2374 = vld [vmem:[%s2 + $0x78] sm:$0xff]
    %v2375 = vld [vmem:[%s2 + $0x80] sm:$0xff]
    %v2376 = vld [vmem:[%s2 + $0x88] sm:$0xff]
    %v2377 = vld [vmem:[%s2 + $0x90] sm:$0xff]
    %v2378 = vld [vmem:[%s2 + $0x98] sm:$0xff]
    %v2379 = vld [vmem:[%s2 + $0xa0] sm:$0xff]
    %v2380 = vld [vmem:[%s2 + $0xa8] sm:$0xff]
    %v2381 = vld [vmem:[%s2 + $0xb0] sm:$0xff]
    %v2382 = vld [vmem:[%s2 + $0xb8] sm:$0xff]
    %v2383 = vld [vmem:[%s2 + $0xc0] sm:$0xff]
    %v2384 = vld [vmem:[%s2 + $0xc8] sm:$0xff]
    %v2385 = vld [vmem:[%s2 + $0xd0] sm:$0xff]
    %v2386 = vld [vmem:[%s2 + $0xd8] sm:$0xff]
    %v2387 = vld [vmem:[%s2 + $0xe0] sm:$0xff]
    %v2388 = vld [vmem:[%s2 + $0xe8] sm:$0xff]
    %v2389 = vld [vmem:[%s2 + $0xf0] sm:$0xff]
    %v2390 = vld [vmem:[%s2 + $0xf8] sm:$0xff]
    %v2391 = vld [vmem:[%s2 + $0x100] sm:$0xff]
    %v2392 = vld [vmem:[%s2 + $0x108] sm:$0xff]
    %v2393 = vld [vmem:[%s2 + $0x110] sm:$0xff]
    %v2394 = vld [vmem:[%s2 + $0x118] sm:$0xff]
    %v2427 = vunpack.c.l.b16 %v2363
    %v2428 = vunpack.c.h.b16 %v2363
    %v2429 = vunpack.c.l.b16 %v2364
    %v2430 = vunpack.c.h.b16 %v2364
    %v2431 = vunpack.c.l.b16 %v2365
    %v2432 = vunpack.c.h.b16 %v2365
    %v2433 = vunpack.c.l.b16 %v2366
    %v2434 = vunpack.c.h.b16 %v2366
    %v2435 = vunpack.c.l.b16 %v2367
    %v2436 = vunpack.c.h.b16 %v2367
    %v2437 = vunpack.c.l.b16 %v2368
    %v2438 = vunpack.c.h.b16 %v2368
    %v2439 = vunpack.c.l.b16 %v2369
    %v2440 = vunpack.c.h.b16 %v2369
    %v2441 = vunpack.c.l.b16 %v2370
    %v2442 = vunpack.c.h.b16 %v2370
    %v2443 = vunpack.c.l.b16 %v2371
    %v2444 = vunpack.c.h.b16 %v2371
    %v2445 = vunpack.c.l.b16 %v2372
    %v2446 = vunpack.c.h.b16 %v2372
    %v2447 = vunpack.c.l.b16 %v2373
    %v2448 = vunpack.c.h.b16 %v2373
    %v2449 = vunpack.c.l.b16 %v2374
    %v2450 = vunpack.c.h.b16 %v2374
    %v2451 = vunpack.c.l.b16 %v2375
    %v2452 = vunpack.c.h.b16 %v2375
    %v2453 = vunpack.c.l.b16 %v2376
    %v2454 = vunpack.c.h.b16 %v2376
    %v2455 = vunpack.c.l.b16 %v2377
    %v2456 = vunpack.c.h.b16 %v2377
    %v2457 = vunpack.c.l.b16 %v2378
    %v2458 = vunpack.c.h.b16 %v2378
    %v2459 = vunpack.c.l.b16 %v2379
    %v2460 = vunpack.c.h.b16 %v2379
    %v2461 = vunpack.c.l.b16 %v2380
    %v2462 = vunpack.c.h.b16 %v2380
    %v2463 = vunpack.c.l.b16 %v2381
    %v2464 = vunpack.c.h.b16 %v2381
    %v2465 = vunpack.c.l.b16 %v2382
    %v2466 = vunpack.c.h.b16 %v2382
    %v2467 = vunpack.c.l.b16 %v2383
    %v2468 = vunpack.c.h.b16 %v2383
    %v2469 = vunpack.c.l.b16 %v2384
    %v2470 = vunpack.c.h.b16 %v2384
    %v2471 = vunpack.c.l.b16 %v2385
    %v2472 = vunpack.c.h.b16 %v2385
    %v2473 = vunpack.c.l.b16 %v2386
    %v2474 = vunpack.c.h.b16 %v2386
    %v2475 = vunpack.c.l.b16 %v2387
    %v2476 = vunpack.c.h.b16 %v2387
    %v2477 = vunpack.c.l.b16 %v2388
    %v2478 = vunpack.c.h.b16 %v2388
    %v2479 = vunpack.c.l.b16 %v2389
    %v2480 = vunpack.c.h.b16 %v2389
    %v2481 = vunpack.c.l.b16 %v2390
    %v2482 = vunpack.c.h.b16 %v2390
    %v2483 = vunpack.c.l.b16 %v2391
    %v2484 = vunpack.c.h.b16 %v2391
    %v2485 = vunpack.c.l.b16 %v2392
    %v2486 = vunpack.c.h.b16 %v2392
    %v2487 = vunpack.c.l.b16 %v2393
    %v2488 = vunpack.c.h.b16 %v2393
    %v2489 = vunpack.c.l.b16 %v2394
    %v2490 = vunpack.c.h.b16 %v2394
    %v2491 = vpack.c.b16 %v2431, %v2427
    %v2492 = vpack.c.b16 %v2432, %v2428
    %v2493 = vpack.c.b16 %v2433, %v2429
    %v2494 = vpack.c.b16 %v2434, %v2430
    %v2495 = vpack.c.b16 %v2439, %v2435
    %v2496 = vpack.c.b16 %v2440, %v2436
    %v2497 = vpack.c.b16 %v2441, %v2437
    %v2498 = vpack.c.b16 %v2442, %v2438
    %v2499 = vpack.c.b16 %v2447, %v2443
    %v2500 = vpack.c.b16 %v2448, %v2444
    %v2501 = vpack.c.b16 %v2449, %v2445
    %v2502 = vpack.c.b16 %v2450, %v2446
    %v2503 = vpack.c.b16 %v2455, %v2451
    %v2504 = vpack.c.b16 %v2456, %v2452
    %v2505 = vpack.c.b16 %v2457, %v2453
    %v2506 = vpack.c.b16 %v2458, %v2454
    %v2507 = vpack.c.b16 %v2463, %v2459
    %v2508 = vpack.c.b16 %v2464, %v2460
    %v2509 = vpack.c.b16 %v2465, %v2461
    %v2510 = vpack.c.b16 %v2466, %v2462
    %v2511 = vpack.c.b16 %v2471, %v2467
    %v2512 = vpack.c.b16 %v2472, %v2468
    %v2513 = vpack.c.b16 %v2473, %v2469
    %v2514 = vpack.c.b16 %v2474, %v2470
    %v2515 = vpack.c.b16 %v2479, %v2475
    %v2516 = vpack.c.b16 %v2480, %v2476
    %v2517 = vpack.c.b16 %v2481, %v2477
    %v2518 = vpack.c.b16 %v2482, %v2478
    %v2519 = vpack.c.b16 %v2487, %v2483
    %v2520 = vpack.c.b16 %v2488, %v2484
    %v2521 = vpack.c.b16 %v2489, %v2485
    %v2522 = vpack.c.b16 %v2490, %v2486
    %2555 = vmatpush.bf16.msra.mxu0 %v2519
    %2556 = vmatpush.bf16.msra.mxu0 %v2515
    %2557 = vmatpush.bf16.msra.mxu0 %v2511
    %2558 = vmatpush.bf16.msra.mxu0 %v2507
    %2559 = vmatpush.bf16.msra.mxu0 %v2503
    %2560 = vmatpush.bf16.msra.mxu0 %v2499
    %2561 = vmatpush.bf16.msra.mxu0 %v2495
    %2562 = vmatpush.bf16.msra.mxu0 %v2491
    %2563 = vmatmul.bf16.gmra.mxu0 %v2206
    %v2564 = vpop.f32.mrf.mxu0
    %v2565 = vadd.f32 0.0, %v2564
    %v2566 = vpop.f32.mrf.mxu0
    %2567 = vdwg.mxu0
    %2568 = vmatpush.bf16.msra.mxu0 %v2520
    %2569 = vmatpush.bf16.msra.mxu0 %v2516
    %2570 = vmatpush.bf16.msra.mxu0 %v2512
    %2571 = vmatpush.bf16.msra.mxu0 %v2508
    %2572 = vmatpush.bf16.msra.mxu0 %v2504
    %2573 = vmatpush.bf16.msra.mxu0 %v2500
    %2574 = vmatpush.bf16.msra.mxu0 %v2496
    %2575 = vmatpush.bf16.msra.mxu0 %v2492
    %2576 = vmatmul.bf16.gmra.mxu0 %v2206
    %v2577 = vpop.f32.mrf.mxu0
    %v2578 = vadd.f32 0.0, %v2577
    %v2579 = vpop.f32.mrf.mxu0
    %2580 = vdwg.mxu0
    %2581 = vmatpush.bf16.msra.mxu0 %v2521
    %2582 = vmatpush.bf16.msra.mxu0 %v2517
    %2583 = vmatpush.bf16.msra.mxu0 %v2513
    %2584 = vmatpush.bf16.msra.mxu0 %v2509
    %2585 = vmatpush.bf16.msra.mxu0 %v2505
    %2586 = vmatpush.bf16.msra.mxu0 %v2501
    %2587 = vmatpush.bf16.msra.mxu0 %v2497
    %2588 = vmatpush.bf16.msra.mxu0 %v2493
    %2589 = vmatmul.bf16.gmra.mxu0 %v2206
    %v2590 = vpop.f32.mrf.mxu0
    %v2591 = vadd.f32 0.0, %v2590
    %v2592 = vpop.f32.mrf.mxu0
    %2593 = vdwg.mxu0
    %2594 = vmatpush.bf16.msra.mxu0 %v2522
    %2595 = vmatpush.bf16.msra.mxu0 %v2518
    %2596 = vmatpush.bf16.msra.mxu0 %v2514
    %2597 = vmatpush.bf16.msra.mxu0 %v2510
    %2598 = vmatpush.bf16.msra.mxu0 %v2506
    %2599 = vmatpush.bf16.msra.mxu0 %v2502
    %2600 = vmatpush.bf16.msra.mxu0 %v2498
    %2601 = vmatpush.bf16.msra.mxu0 %v2494
    %2602 = vmatmul.bf16.gmra.mxu0 %v2206
    %v2603 = vpop.f32.mrf.mxu0
    %v2604 = vadd.f32 0.0, %v2603
    %v2605 = vpop.f32.mrf.mxu0
    %2606 = vdwg.mxu0
    %v2607 = vadd.f32 %v2317, %v2565
    %v2608 = vadd.f32 %v2331, %v2578
    %v2609 = vadd.f32 %v2345, %v2591
    %v2610 = vadd.f32 %v2359, %v2604
    %v2611 = vmul.f32 %v2607, 0.5
    %v2612 = vtanh.pop %v2611
    %v2613 = vmul.f32 %v2612, 0.5
    %v2614 = vadd.f32 %v2613, 0.5
    %v2615 = vmul.f32 %v2608, 0.5
    %v2616 = vtanh.pop %v2615
    %v2617 = vmul.f32 %v2616, 0.5
    %v2618 = vadd.f32 %v2617, 0.5
    %v2619 = vtanh.pop %v2609
    %v2620 = vmul.f32 %v2610, 0.5
    %v2621 = vtanh.pop %v2620
    %v2622 = vmul.f32 %v2621, 0.5
    %v2623 = vadd.f32 %v2622, 0.5
    %v2624 = vmul.f32 %v2618, 0.0
    %v2625 = vmul.f32 %v2614, %v2619
    %v2626 = vadd.f32 %v2624, %v2625
    %v2627 = vtanh.pop %v2626
    %v2628 = vmul.f32 %v2623, %v2627
    %v2629 = vperm.slane %v19, 3
    %v2630 = vmul.f32 %v2628, %v2629
    %vm2631 = vcmask 1041408
    %v2632 = vsel %vm2631, %v2630, 0.0
    %2633 = vadd.xlane.f32.xlu0 %v2632
    %v2634 = vpop.xlane.xlu0 %2633
    %v2635 = vpack.c.bf16 %v2628, %v2628
    %2636 = vmatpush.bf16.msra.mxu0 %v2519
    %2637 = vmatpush.bf16.msra.mxu0 %v2515
    %2638 = vmatpush.bf16.msra.mxu0 %v2511
    %2639 = vmatpush.bf16.msra.mxu0 %v2507
    %2640 = vmatpush.bf16.msra.mxu0 %v2503
    %2641 = vmatpush.bf16.msra.mxu0 %v2499
    %2642 = vmatpush.bf16.msra.mxu0 %v2495
    %2643 = vmatpush.bf16.msra.mxu0 %v2491
    %2644 = vmatmul.bf16.gmra.mxu0 %v2635
    %v2645 = vpop.f32.mrf.mxu0
    %v2646 = vadd.f32 0.0, %v2645
    %v2647 = vpop.f32.mrf.mxu0
    %2648 = vdwg.mxu0
    %2649 = vmatpush.bf16.msra.mxu0 %v2520
    %2650 = vmatpush.bf16.msra.mxu0 %v2516
    %2651 = vmatpush.bf16.msra.mxu0 %v2512
    %2652 = vmatpush.bf16.msra.mxu0 %v2508
    %2653 = vmatpush.bf16.msra.mxu0 %v2504
    %2654 = vmatpush.bf16.msra.mxu0 %v2500
    %2655 = vmatpush.bf16.msra.mxu0 %v2496
    %2656 = vmatpush.bf16.msra.mxu0 %v2492
    %2657 = vmatmul.bf16.gmra.mxu0 %v2635
    %v2658 = vpop.f32.mrf.mxu0
    %v2659 = vadd.f32 0.0, %v2658
    %v2660 = vpop.f32.mrf.mxu0
    %2661 = vdwg.mxu0
    %2662 = vmatpush.bf16.msra.mxu0 %v2521
    %2663 = vmatpush.bf16.msra.mxu0 %v2517
    %2664 = vmatpush.bf16.msra.mxu0 %v2513
    %2665 = vmatpush.bf16.msra.mxu0 %v2509
    %2666 = vmatpush.bf16.msra.mxu0 %v2505
    %2667 = vmatpush.bf16.msra.mxu0 %v2501
    %2668 = vmatpush.bf16.msra.mxu0 %v2497
    %2669 = vmatpush.bf16.msra.mxu0 %v2493
    %2670 = vmatmul.bf16.gmra.mxu0 %v2635
    %v2671 = vpop.f32.mrf.mxu0
    %v2672 = vadd.f32 0.0, %v2671
    %v2673 = vpop.f32.mrf.mxu0
    %2674 = vdwg.mxu0
    %2675 = vmatpush.bf16.msra.mxu0 %v2522
    %2676 = vmatpush.bf16.msra.mxu0 %v2518
    %2677 = vmatpush.bf16.msra.mxu0 %v2514
    %2678 = vmatpush.bf16.msra.mxu0 %v2510
    %2679 = vmatpush.bf16.msra.mxu0 %v2506
    %2680 = vmatpush.bf16.msra.mxu0 %v2502
    %2681 = vmatpush.bf16.msra.mxu0 %v2498
    %2682 = vmatpush.bf16.msra.mxu0 %v2494
    %2683 = vmatmul.bf16.gmra.mxu0 %v2635
    %v2684 = vpop.f32.mrf.mxu0
    %v2685 = vadd.f32 0.0, %v2684
    %v2686 = vpop.f32.mrf.mxu0
    %2687 = vdwg.mxu0
    %v2692 = vrot.slane %v2646, 6
    %v2693 = vrot.slane %v2659, 6
    %v2694 = vrot.slane %v2672, 6
    %v2695 = vrot.slane %v2685, 6
    %v2700 = vadd.f32 %v2317, %v2692
    %v2701 = vadd.f32 %v2331, %v2693
    %v2702 = vadd.f32 %v2345, %v2694
    %v2703 = vadd.f32 %v2359, %v2695
    %v2704 = vmul.f32 %v2700, 0.5
    %v2705 = vtanh.pop %v2704
    %v2706 = vmul.f32 %v2705, 0.5
    %v2707 = vadd.f32 %v2706, 0.5
    %v2708 = vmul.f32 %v2701, 0.5
    %v2709 = vtanh.pop %v2708
    %v2710 = vmul.f32 %v2709, 0.5
    %v2711 = vadd.f32 %v2710, 0.5
    %v2712 = vtanh.pop %v2702
    %v2713 = vmul.f32 %v2703, 0.5
    %v2714 = vtanh.pop %v2713
    %v2715 = vmul.f32 %v2714, 0.5
    %v2716 = vadd.f32 %v2715, 0.5
    %v2718 = vrot.slane %v2626, 6
    %v2720 = vmul.f32 %v2711, %v2718
    %v2721 = vmul.f32 %v2707, %v2712
    %v2722 = vadd.f32 %v2720, %v2721
    %v2723 = vtanh.pop %v2722
    %v2724 = vmul.f32 %v2716, %v2723
    %v2725 = vmul.f32 %v2724, %v2629
    %vm2726 = vcmask 1043458
    %v2727 = vsel %vm2726, %v2725, 0.0
    %2728 = vadd.xlane.f32.xlu0 %v2727
    %v2729 = vpop.xlane.xlu0 %2728
    %v2730 = vpack.c.bf16 %v2724, %v2724
    %v2732 = vrot.slane %v2730, 1
    %2734 = vmatpush.bf16.msra.mxu0 %v2519
    %2735 = vmatpush.bf16.msra.mxu0 %v2515
    %2736 = vmatpush.bf16.msra.mxu0 %v2511
    %2737 = vmatpush.bf16.msra.mxu0 %v2507
    %2738 = vmatpush.bf16.msra.mxu0 %v2503
    %2739 = vmatpush.bf16.msra.mxu0 %v2499
    %2740 = vmatpush.bf16.msra.mxu0 %v2495
    %2741 = vmatpush.bf16.msra.mxu0 %v2491
    %2742 = vmatmul.bf16.gmra.mxu0 %v2732
    %v2743 = vpop.f32.mrf.mxu0
    %v2744 = vadd.f32 0.0, %v2743
    %v2745 = vpop.f32.mrf.mxu0
    %2746 = vdwg.mxu0
    %2747 = vmatpush.bf16.msra.mxu0 %v2520
    %2748 = vmatpush.bf16.msra.mxu0 %v2516
    %2749 = vmatpush.bf16.msra.mxu0 %v2512
    %2750 = vmatpush.bf16.msra.mxu0 %v2508
    %2751 = vmatpush.bf16.msra.mxu0 %v2504
    %2752 = vmatpush.bf16.msra.mxu0 %v2500
    %2753 = vmatpush.bf16.msra.mxu0 %v2496
    %2754 = vmatpush.bf16.msra.mxu0 %v2492
    %2755 = vmatmul.bf16.gmra.mxu0 %v2732
    %v2756 = vpop.f32.mrf.mxu0
    %v2757 = vadd.f32 0.0, %v2756
    %v2758 = vpop.f32.mrf.mxu0
    %2759 = vdwg.mxu0
    %2760 = vmatpush.bf16.msra.mxu0 %v2521
    %2761 = vmatpush.bf16.msra.mxu0 %v2517
    %2762 = vmatpush.bf16.msra.mxu0 %v2513
    %2763 = vmatpush.bf16.msra.mxu0 %v2509
    %2764 = vmatpush.bf16.msra.mxu0 %v2505
    %2765 = vmatpush.bf16.msra.mxu0 %v2501
    %2766 = vmatpush.bf16.msra.mxu0 %v2497
    %2767 = vmatpush.bf16.msra.mxu0 %v2493
    %2768 = vmatmul.bf16.gmra.mxu0 %v2732
    %v2769 = vpop.f32.mrf.mxu0
    %v2770 = vadd.f32 0.0, %v2769
    %v2771 = vpop.f32.mrf.mxu0
    %2772 = vdwg.mxu0
    %2773 = vmatpush.bf16.msra.mxu0 %v2522
    %2774 = vmatpush.bf16.msra.mxu0 %v2518
    %2775 = vmatpush.bf16.msra.mxu0 %v2514
    %2776 = vmatpush.bf16.msra.mxu0 %v2510
    %2777 = vmatpush.bf16.msra.mxu0 %v2506
    %2778 = vmatpush.bf16.msra.mxu0 %v2502
    %2779 = vmatpush.bf16.msra.mxu0 %v2498
    %2780 = vmatpush.bf16.msra.mxu0 %v2494
    %2781 = vmatmul.bf16.gmra.mxu0 %v2732
    %v2782 = vpop.f32.mrf.mxu0
    %v2783 = vadd.f32 0.0, %v2782
    %v2784 = vpop.f32.mrf.mxu0
    %2785 = vdwg.mxu0
    %v2790 = vrot.slane %v2744, 4
    %v2791 = vrot.slane %v2757, 4
    %v2792 = vrot.slane %v2770, 4
    %v2793 = vrot.slane %v2783, 4
    %v2798 = vadd.f32 %v2317, %v2790
    %v2799 = vadd.f32 %v2331, %v2791
    %v2800 = vadd.f32 %v2345, %v2792
    %v2801 = vadd.f32 %v2359, %v2793
    %v2802 = vmul.f32 %v2798, 0.5
    %v2803 = vtanh.pop %v2802
    %v2804 = vmul.f32 %v2803, 0.5
    %v2805 = vadd.f32 %v2804, 0.5
    %v2806 = vmul.f32 %v2799, 0.5
    %v2807 = vtanh.pop %v2806
    %v2808 = vmul.f32 %v2807, 0.5
    %v2809 = vadd.f32 %v2808, 0.5
    %v2810 = vtanh.pop %v2800
    %v2811 = vmul.f32 %v2801, 0.5
    %v2812 = vtanh.pop %v2811
    %v2813 = vmul.f32 %v2812, 0.5
    %v2814 = vadd.f32 %v2813, 0.5
    %v2816 = vrot.slane %v2722, 6
    %v2818 = vmul.f32 %v2809, %v2816
    %v2819 = vmul.f32 %v2805, %v2810
    %v2820 = vadd.f32 %v2818, %v2819
    %v2821 = vtanh.pop %v2820
    %v2822 = vmul.f32 %v2814, %v2821
    %v2823 = vmul.f32 %v2822, %v2629
    %vm2824 = vcmask 1045508
    %v2825 = vsel %vm2824, %v2823, 0.0
    %2826 = vadd.xlane.f32.xlu0 %v2825
    %v2827 = vpop.xlane.xlu0 %2826
    %v2828 = vpack.c.bf16 %v2822, %v2822
    %v2830 = vrot.slane %v2828, 2
    %2832 = vmatpush.bf16.msra.mxu0 %v2519
    %2833 = vmatpush.bf16.msra.mxu0 %v2515
    %2834 = vmatpush.bf16.msra.mxu0 %v2511
    %2835 = vmatpush.bf16.msra.mxu0 %v2507
    %2836 = vmatpush.bf16.msra.mxu0 %v2503
    %2837 = vmatpush.bf16.msra.mxu0 %v2499
    %2838 = vmatpush.bf16.msra.mxu0 %v2495
    %2839 = vmatpush.bf16.msra.mxu0 %v2491
    %2840 = vmatmul.bf16.gmra.mxu0 %v2830
    %v2841 = vpop.f32.mrf.mxu0
    %v2842 = vadd.f32 0.0, %v2841
    %v2843 = vpop.f32.mrf.mxu0
    %2844 = vdwg.mxu0
    %2845 = vmatpush.bf16.msra.mxu0 %v2520
    %2846 = vmatpush.bf16.msra.mxu0 %v2516
    %2847 = vmatpush.bf16.msra.mxu0 %v2512
    %2848 = vmatpush.bf16.msra.mxu0 %v2508
    %2849 = vmatpush.bf16.msra.mxu0 %v2504
    %2850 = vmatpush.bf16.msra.mxu0 %v2500
    %2851 = vmatpush.bf16.msra.mxu0 %v2496
    %2852 = vmatpush.bf16.msra.mxu0 %v2492
    %2853 = vmatmul.bf16.gmra.mxu0 %v2830
    %v2854 = vpop.f32.mrf.mxu0
    %v2855 = vadd.f32 0.0, %v2854
    %v2856 = vpop.f32.mrf.mxu0
    %2857 = vdwg.mxu0
    %2858 = vmatpush.bf16.msra.mxu0 %v2521
    %2859 = vmatpush.bf16.msra.mxu0 %v2517
    %2860 = vmatpush.bf16.msra.mxu0 %v2513
    %2861 = vmatpush.bf16.msra.mxu0 %v2509
    %2862 = vmatpush.bf16.msra.mxu0 %v2505
    %2863 = vmatpush.bf16.msra.mxu0 %v2501
    %2864 = vmatpush.bf16.msra.mxu0 %v2497
    %2865 = vmatpush.bf16.msra.mxu0 %v2493
    %2866 = vmatmul.bf16.gmra.mxu0 %v2830
    %v2867 = vpop.f32.mrf.mxu0
    %v2868 = vadd.f32 0.0, %v2867
    %v2869 = vpop.f32.mrf.mxu0
    %2870 = vdwg.mxu0
    %2871 = vmatpush.bf16.msra.mxu0 %v2522
    %2872 = vmatpush.bf16.msra.mxu0 %v2518
    %2873 = vmatpush.bf16.msra.mxu0 %v2514
    %2874 = vmatpush.bf16.msra.mxu0 %v2510
    %2875 = vmatpush.bf16.msra.mxu0 %v2506
    %2876 = vmatpush.bf16.msra.mxu0 %v2502
    %2877 = vmatpush.bf16.msra.mxu0 %v2498
    %2878 = vmatpush.bf16.msra.mxu0 %v2494
    %2879 = vmatmul.bf16.gmra.mxu0 %v2830
    %v2880 = vpop.f32.mrf.mxu0
    %v2881 = vadd.f32 0.0, %v2880
    %v2882 = vpop.f32.mrf.mxu0
    %2883 = vdwg.mxu0
    %v2888 = vrot.slane %v2842, 2
    %v2889 = vrot.slane %v2855, 2
    %v2890 = vrot.slane %v2868, 2
    %v2891 = vrot.slane %v2881, 2
    %v2896 = vadd.f32 %v2317, %v2888
    %v2897 = vadd.f32 %v2331, %v2889
    %v2898 = vadd.f32 %v2345, %v2890
    %v2899 = vadd.f32 %v2359, %v2891
    %v2900 = vmul.f32 %v2896, 0.5
    %v2901 = vtanh.pop %v2900
    %v2902 = vmul.f32 %v2901, 0.5
    %v2903 = vadd.f32 %v2902, 0.5
    %v2904 = vmul.f32 %v2897, 0.5
    %v2905 = vtanh.pop %v2904
    %v2906 = vmul.f32 %v2905, 0.5
    %v2907 = vadd.f32 %v2906, 0.5
    %v2908 = vtanh.pop %v2898
    %v2909 = vmul.f32 %v2899, 0.5
    %v2910 = vtanh.pop %v2909
    %v2911 = vmul.f32 %v2910, 0.5
    %v2912 = vadd.f32 %v2911, 0.5
    %v2914 = vrot.slane %v2820, 6
    %v2916 = vmul.f32 %v2907, %v2914
    %v2917 = vmul.f32 %v2903, %v2908
    %v2918 = vadd.f32 %v2916, %v2917
    %v2919 = vtanh.pop %v2918
    %v2920 = vmul.f32 %v2912, %v2919
    %v2921 = vmul.f32 %v2920, %v2629
    %vm2922 = vcmask 1047558
    %v2923 = vsel %vm2922, %v2921, 0.0
    %2924 = vadd.xlane.f32.xlu0 %v2923
    %v2925 = vpop.xlane.xlu0 %2924
    %v2926 = vpack.c.bf16 %v2920, %v2920
    %v2928 = vrot.slane %v2926, 3
    %2930 = vmatpush.bf16.msra.mxu0 %v2519
    %2931 = vmatpush.bf16.msra.mxu0 %v2515
    %2932 = vmatpush.bf16.msra.mxu0 %v2511
    %2933 = vmatpush.bf16.msra.mxu0 %v2507
    %2934 = vmatpush.bf16.msra.mxu0 %v2503
    %2935 = vmatpush.bf16.msra.mxu0 %v2499
    %2936 = vmatpush.bf16.msra.mxu0 %v2495
    %2937 = vmatpush.bf16.msra.mxu0 %v2491
    %2938 = vmatmul.bf16.gmra.mxu0 %v2928
    %v2939 = vpop.f32.mrf.mxu0
    %v2940 = vadd.f32 0.0, %v2939
    %v2941 = vpop.f32.mrf.mxu0
    %2942 = vdwg.mxu0
    %2943 = vmatpush.bf16.msra.mxu0 %v2520
    %2944 = vmatpush.bf16.msra.mxu0 %v2516
    %2945 = vmatpush.bf16.msra.mxu0 %v2512
    %2946 = vmatpush.bf16.msra.mxu0 %v2508
    %2947 = vmatpush.bf16.msra.mxu0 %v2504
    %2948 = vmatpush.bf16.msra.mxu0 %v2500
    %2949 = vmatpush.bf16.msra.mxu0 %v2496
    %2950 = vmatpush.bf16.msra.mxu0 %v2492
    %2951 = vmatmul.bf16.gmra.mxu0 %v2928
    %v2952 = vpop.f32.mrf.mxu0
    %v2953 = vadd.f32 0.0, %v2952
    %v2954 = vpop.f32.mrf.mxu0
    %2955 = vdwg.mxu0
    %2956 = vmatpush.bf16.msra.mxu0 %v2521
    %2957 = vmatpush.bf16.msra.mxu0 %v2517
    %2958 = vmatpush.bf16.msra.mxu0 %v2513
    %2959 = vmatpush.bf16.msra.mxu0 %v2509
    %2960 = vmatpush.bf16.msra.mxu0 %v2505
    %2961 = vmatpush.bf16.msra.mxu0 %v2501
    %2962 = vmatpush.bf16.msra.mxu0 %v2497
    %2963 = vmatpush.bf16.msra.mxu0 %v2493
    %2964 = vmatmul.bf16.gmra.mxu0 %v2928
    %v2965 = vpop.f32.mrf.mxu0
    %v2966 = vadd.f32 0.0, %v2965
    %v2967 = vpop.f32.mrf.mxu0
    %2968 = vdwg.mxu0
    %2969 = vmatpush.bf16.msra.mxu0 %v2522
    %2970 = vmatpush.bf16.msra.mxu0 %v2518
    %2971 = vmatpush.bf16.msra.mxu0 %v2514
    %2972 = vmatpush.bf16.msra.mxu0 %v2510
    %2973 = vmatpush.bf16.msra.mxu0 %v2506
    %2974 = vmatpush.bf16.msra.mxu0 %v2502
    %2975 = vmatpush.bf16.msra.mxu0 %v2498
    %2976 = vmatpush.bf16.msra.mxu0 %v2494
    %2977 = vmatmul.bf16.gmra.mxu0 %v2928
    %v2978 = vpop.f32.mrf.mxu0
    %v2979 = vadd.f32 0.0, %v2978
    %v2980 = vpop.f32.mrf.mxu0
    %2981 = vdwg.mxu0
    %v2982 = vadd.f32 %v2319, %v2940
    %v2983 = vadd.f32 %v2333, %v2953
    %v2984 = vadd.f32 %v2347, %v2966
    %v2985 = vadd.f32 %v2361, %v2979
    %v2986 = vmul.f32 %v2982, 0.5
    %v2987 = vtanh.pop %v2986
    %v2988 = vmul.f32 %v2987, 0.5
    %v2989 = vadd.f32 %v2988, 0.5
    %v2990 = vmul.f32 %v2983, 0.5
    %v2991 = vtanh.pop %v2990
    %v2992 = vmul.f32 %v2991, 0.5
    %v2993 = vadd.f32 %v2992, 0.5
    %v2994 = vtanh.pop %v2984
    %v2995 = vmul.f32 %v2985, 0.5
    %v2996 = vtanh.pop %v2995
    %v2997 = vmul.f32 %v2996, 0.5
    %v2998 = vadd.f32 %v2997, 0.5
    %v3000 = vrot.slane %v2918, 6
    %v3002 = vmul.f32 %v2993, %v3000
    %v3003 = vmul.f32 %v2989, %v2994
    %v3004 = vadd.f32 %v3002, %v3003
    %v3005 = vtanh.pop %v3004
    %v3006 = vmul.f32 %v2998, %v3005
    %v3007 = vmul.f32 %v3006, %v2629
    %v3008 = vsel %vm2631, %v3007, 0.0
    %3009 = vadd.xlane.f32.xlu0 %v3008
    %v3010 = vpop.xlane.xlu0 %3009
    %v3011 = vpack.c.bf16 %v3006, %v3006
    %3012 = vmatpush.bf16.msra.mxu0 %v2519
    %3013 = vmatpush.bf16.msra.mxu0 %v2515
    %3014 = vmatpush.bf16.msra.mxu0 %v2511
    %3015 = vmatpush.bf16.msra.mxu0 %v2507
    %3016 = vmatpush.bf16.msra.mxu0 %v2503
    %3017 = vmatpush.bf16.msra.mxu0 %v2499
    %3018 = vmatpush.bf16.msra.mxu0 %v2495
    %3019 = vmatpush.bf16.msra.mxu0 %v2491
    %3020 = vmatmul.bf16.gmra.mxu0 %v3011
    %v3021 = vpop.f32.mrf.mxu0
    %v3022 = vadd.f32 0.0, %v3021
    %v3023 = vpop.f32.mrf.mxu0
    %3024 = vdwg.mxu0
    %3025 = vmatpush.bf16.msra.mxu0 %v2520
    %3026 = vmatpush.bf16.msra.mxu0 %v2516
    %3027 = vmatpush.bf16.msra.mxu0 %v2512
    %3028 = vmatpush.bf16.msra.mxu0 %v2508
    %3029 = vmatpush.bf16.msra.mxu0 %v2504
    %3030 = vmatpush.bf16.msra.mxu0 %v2500
    %3031 = vmatpush.bf16.msra.mxu0 %v2496
    %3032 = vmatpush.bf16.msra.mxu0 %v2492
    %3033 = vmatmul.bf16.gmra.mxu0 %v3011
    %v3034 = vpop.f32.mrf.mxu0
    %v3035 = vadd.f32 0.0, %v3034
    %v3036 = vpop.f32.mrf.mxu0
    %3037 = vdwg.mxu0
    %3038 = vmatpush.bf16.msra.mxu0 %v2521
    %3039 = vmatpush.bf16.msra.mxu0 %v2517
    %3040 = vmatpush.bf16.msra.mxu0 %v2513
    %3041 = vmatpush.bf16.msra.mxu0 %v2509
    %3042 = vmatpush.bf16.msra.mxu0 %v2505
    %3043 = vmatpush.bf16.msra.mxu0 %v2501
    %3044 = vmatpush.bf16.msra.mxu0 %v2497
    %3045 = vmatpush.bf16.msra.mxu0 %v2493
    %3046 = vmatmul.bf16.gmra.mxu0 %v3011
    %v3047 = vpop.f32.mrf.mxu0
    %v3048 = vadd.f32 0.0, %v3047
    %v3049 = vpop.f32.mrf.mxu0
    %3050 = vdwg.mxu0
    %3051 = vmatpush.bf16.msra.mxu0 %v2522
    %3052 = vmatpush.bf16.msra.mxu0 %v2518
    %3053 = vmatpush.bf16.msra.mxu0 %v2514
    %3054 = vmatpush.bf16.msra.mxu0 %v2510
    %3055 = vmatpush.bf16.msra.mxu0 %v2506
    %3056 = vmatpush.bf16.msra.mxu0 %v2502
    %3057 = vmatpush.bf16.msra.mxu0 %v2498
    %3058 = vmatpush.bf16.msra.mxu0 %v2494
    %3059 = vmatmul.bf16.gmra.mxu0 %v3011
    %v3060 = vpop.f32.mrf.mxu0
    %v3061 = vadd.f32 0.0, %v3060
    %v3062 = vpop.f32.mrf.mxu0
    %3063 = vdwg.mxu0
    %v3068 = vrot.slane %v3022, 6
    %v3069 = vrot.slane %v3035, 6
    %v3070 = vrot.slane %v3048, 6
    %v3071 = vrot.slane %v3061, 6
    %v3076 = vadd.f32 %v2319, %v3068
    %v3077 = vadd.f32 %v2333, %v3069
    %v3078 = vadd.f32 %v2347, %v3070
    %v3079 = vadd.f32 %v2361, %v3071
    %v3080 = vmul.f32 %v3076, 0.5
    %v3081 = vtanh.pop %v3080
    %v3082 = vmul.f32 %v3081, 0.5
    %v3083 = vadd.f32 %v3082, 0.5
    %v3084 = vmul.f32 %v3077, 0.5
    %v3085 = vtanh.pop %v3084
    %v3086 = vmul.f32 %v3085, 0.5
    %v3087 = vadd.f32 %v3086, 0.5
    %v3088 = vtanh.pop %v3078
    %v3089 = vmul.f32 %v3079, 0.5
    %v3090 = vtanh.pop %v3089
    %v3091 = vmul.f32 %v3090, 0.5
    %v3092 = vadd.f32 %v3091, 0.5
    %v3094 = vrot.slane %v3004, 6
    %v3096 = vmul.f32 %v3087, %v3094
    %v3097 = vmul.f32 %v3083, %v3088
    %v3098 = vadd.f32 %v3096, %v3097
    %v3099 = vtanh.pop %v3098
    %v3100 = vmul.f32 %v3092, %v3099
    %v3101 = vmul.f32 %v3100, %v2629
    %v3102 = vsel %vm2726, %v3101, 0.0
    %3103 = vadd.xlane.f32.xlu0 %v3102
    %v3104 = vpop.xlane.xlu0 %3103
    %v3105 = vpack.c.bf16 %v3100, %v3100
    %v3107 = vrot.slane %v3105, 1
    %3109 = vmatpush.bf16.msra.mxu0 %v2519
    %3110 = vmatpush.bf16.msra.mxu0 %v2515
    %3111 = vmatpush.bf16.msra.mxu0 %v2511
    %3112 = vmatpush.bf16.msra.mxu0 %v2507
    %3113 = vmatpush.bf16.msra.mxu0 %v2503
    %3114 = vmatpush.bf16.msra.mxu0 %v2499
    %3115 = vmatpush.bf16.msra.mxu0 %v2495
    %3116 = vmatpush.bf16.msra.mxu0 %v2491
    %3117 = vmatmul.bf16.gmra.mxu0 %v3107
    %v3118 = vpop.f32.mrf.mxu0
    %v3119 = vadd.f32 0.0, %v3118
    %v3120 = vpop.f32.mrf.mxu0
    %3121 = vdwg.mxu0
    %3122 = vmatpush.bf16.msra.mxu0 %v2520
    %3123 = vmatpush.bf16.msra.mxu0 %v2516
    %3124 = vmatpush.bf16.msra.mxu0 %v2512
    %3125 = vmatpush.bf16.msra.mxu0 %v2508
    %3126 = vmatpush.bf16.msra.mxu0 %v2504
    %3127 = vmatpush.bf16.msra.mxu0 %v2500
    %3128 = vmatpush.bf16.msra.mxu0 %v2496
    %3129 = vmatpush.bf16.msra.mxu0 %v2492
    %3130 = vmatmul.bf16.gmra.mxu0 %v3107
    %v3131 = vpop.f32.mrf.mxu0
    %v3132 = vadd.f32 0.0, %v3131
    %v3133 = vpop.f32.mrf.mxu0
    %3134 = vdwg.mxu0
    %3135 = vmatpush.bf16.msra.mxu0 %v2521
    %3136 = vmatpush.bf16.msra.mxu0 %v2517
    %3137 = vmatpush.bf16.msra.mxu0 %v2513
    %3138 = vmatpush.bf16.msra.mxu0 %v2509
    %3139 = vmatpush.bf16.msra.mxu0 %v2505
    %3140 = vmatpush.bf16.msra.mxu0 %v2501
    %3141 = vmatpush.bf16.msra.mxu0 %v2497
    %3142 = vmatpush.bf16.msra.mxu0 %v2493
    %3143 = vmatmul.bf16.gmra.mxu0 %v3107
    %v3144 = vpop.f32.mrf.mxu0
    %v3145 = vadd.f32 0.0, %v3144
    %v3146 = vpop.f32.mrf.mxu0
    %3147 = vdwg.mxu0
    %3148 = vmatpush.bf16.msra.mxu0 %v2522
    %3149 = vmatpush.bf16.msra.mxu0 %v2518
    %3150 = vmatpush.bf16.msra.mxu0 %v2514
    %3151 = vmatpush.bf16.msra.mxu0 %v2510
    %3152 = vmatpush.bf16.msra.mxu0 %v2506
    %3153 = vmatpush.bf16.msra.mxu0 %v2502
    %3154 = vmatpush.bf16.msra.mxu0 %v2498
    %3155 = vmatpush.bf16.msra.mxu0 %v2494
    %3156 = vmatmul.bf16.gmra.mxu0 %v3107
    %v3157 = vpop.f32.mrf.mxu0
    %v3158 = vadd.f32 0.0, %v3157
    %v3159 = vpop.f32.mrf.mxu0
    %3160 = vdwg.mxu0
    %v3165 = vrot.slane %v3119, 4
    %v3166 = vrot.slane %v3132, 4
    %v3167 = vrot.slane %v3145, 4
    %v3168 = vrot.slane %v3158, 4
    %v3173 = vadd.f32 %v2319, %v3165
    %v3174 = vadd.f32 %v2333, %v3166
    %v3175 = vadd.f32 %v2347, %v3167
    %v3176 = vadd.f32 %v2361, %v3168
    %v3177 = vmul.f32 %v3173, 0.5
    %v3178 = vtanh.pop %v3177
    %v3179 = vmul.f32 %v3178, 0.5
    %v3180 = vadd.f32 %v3179, 0.5
    %v3181 = vmul.f32 %v3174, 0.5
    %v3182 = vtanh.pop %v3181
    %v3183 = vmul.f32 %v3182, 0.5
    %v3184 = vadd.f32 %v3183, 0.5
    %v3185 = vtanh.pop %v3175
    %v3186 = vmul.f32 %v3176, 0.5
    %v3187 = vtanh.pop %v3186
    %v3188 = vmul.f32 %v3187, 0.5
    %v3189 = vadd.f32 %v3188, 0.5
    %v3191 = vrot.slane %v3098, 6
    %v3193 = vmul.f32 %v3184, %v3191
    %v3194 = vmul.f32 %v3180, %v3185
    %v3195 = vadd.f32 %v3193, %v3194
    %v3196 = vtanh.pop %v3195
    %v3197 = vmul.f32 %v3189, %v3196
    %v3198 = vmul.f32 %v3197, %v2629
    %v3199 = vsel %vm2824, %v3198, 0.0
    %3200 = vadd.xlane.f32.xlu0 %v3199
    %v3201 = vpop.xlane.xlu0 %3200
    %v3202 = vpack.c.bf16 %v3197, %v3197
    %v3204 = vrot.slane %v3202, 2
    %3206 = vmatpush.bf16.msra.mxu0 %v2519
    %3207 = vmatpush.bf16.msra.mxu0 %v2515
    %3208 = vmatpush.bf16.msra.mxu0 %v2511
    %3209 = vmatpush.bf16.msra.mxu0 %v2507
    %3210 = vmatpush.bf16.msra.mxu0 %v2503
    %3211 = vmatpush.bf16.msra.mxu0 %v2499
    %3212 = vmatpush.bf16.msra.mxu0 %v2495
    %3213 = vmatpush.bf16.msra.mxu0 %v2491
    %3214 = vmatmul.bf16.gmra.mxu0 %v3204
    %v3215 = vpop.f32.mrf.mxu0
    %v3216 = vadd.f32 0.0, %v3215
    %v3217 = vpop.f32.mrf.mxu0
    %3218 = vdwg.mxu0
    %3219 = vmatpush.bf16.msra.mxu0 %v2520
    %3220 = vmatpush.bf16.msra.mxu0 %v2516
    %3221 = vmatpush.bf16.msra.mxu0 %v2512
    %3222 = vmatpush.bf16.msra.mxu0 %v2508
    %3223 = vmatpush.bf16.msra.mxu0 %v2504
    %3224 = vmatpush.bf16.msra.mxu0 %v2500
    %3225 = vmatpush.bf16.msra.mxu0 %v2496
    %3226 = vmatpush.bf16.msra.mxu0 %v2492
    %3227 = vmatmul.bf16.gmra.mxu0 %v3204
    %v3228 = vpop.f32.mrf.mxu0
    %v3229 = vadd.f32 0.0, %v3228
    %v3230 = vpop.f32.mrf.mxu0
    %3231 = vdwg.mxu0
    %3232 = vmatpush.bf16.msra.mxu0 %v2521
    %3233 = vmatpush.bf16.msra.mxu0 %v2517
    %3234 = vmatpush.bf16.msra.mxu0 %v2513
    %3235 = vmatpush.bf16.msra.mxu0 %v2509
    %3236 = vmatpush.bf16.msra.mxu0 %v2505
    %3237 = vmatpush.bf16.msra.mxu0 %v2501
    %3238 = vmatpush.bf16.msra.mxu0 %v2497
    %3239 = vmatpush.bf16.msra.mxu0 %v2493
    %3240 = vmatmul.bf16.gmra.mxu0 %v3204
    %v3241 = vpop.f32.mrf.mxu0
    %v3242 = vadd.f32 0.0, %v3241
    %v3243 = vpop.f32.mrf.mxu0
    %3244 = vdwg.mxu0
    %3245 = vmatpush.bf16.msra.mxu0 %v2522
    %3246 = vmatpush.bf16.msra.mxu0 %v2518
    %3247 = vmatpush.bf16.msra.mxu0 %v2514
    %3248 = vmatpush.bf16.msra.mxu0 %v2510
    %3249 = vmatpush.bf16.msra.mxu0 %v2506
    %3250 = vmatpush.bf16.msra.mxu0 %v2502
    %3251 = vmatpush.bf16.msra.mxu0 %v2498
    %3252 = vmatpush.bf16.msra.mxu0 %v2494
    %3253 = vmatmul.bf16.gmra.mxu0 %v3204
    %v3254 = vpop.f32.mrf.mxu0
    %v3255 = vadd.f32 0.0, %v3254
    %v3256 = vpop.f32.mrf.mxu0
    %3257 = vdwg.mxu0
    %v3262 = vrot.slane %v3216, 2
    %v3263 = vrot.slane %v3229, 2
    %v3264 = vrot.slane %v3242, 2
    %v3265 = vrot.slane %v3255, 2
    %v3270 = vadd.f32 %v2319, %v3262
    %v3271 = vadd.f32 %v2333, %v3263
    %v3272 = vadd.f32 %v2347, %v3264
    %v3273 = vadd.f32 %v2361, %v3265
    %v3274 = vmul.f32 %v3270, 0.5
    %v3275 = vtanh.pop %v3274
    %v3276 = vmul.f32 %v3275, 0.5
    %v3277 = vadd.f32 %v3276, 0.5
    %v3278 = vmul.f32 %v3271, 0.5
    %v3279 = vtanh.pop %v3278
    %v3280 = vmul.f32 %v3279, 0.5
    %v3281 = vadd.f32 %v3280, 0.5
    %v3282 = vtanh.pop %v3272
    %v3283 = vmul.f32 %v3273, 0.5
    %v3284 = vtanh.pop %v3283
    %v3285 = vmul.f32 %v3284, 0.5
    %v3286 = vadd.f32 %v3285, 0.5
    %v3288 = vrot.slane %v3195, 6
    %v3290 = vmul.f32 %v3281, %v3288
    %v3291 = vmul.f32 %v3277, %v3282
    %v3292 = vadd.f32 %v3290, %v3291
    %v3293 = vtanh.pop %v3292
    %v3294 = vmul.f32 %v3286, %v3293
    %v3295 = vmul.f32 %v3294, %v2629
    %v3296 = vsel %vm2922, %v3295, 0.0
    %3297 = vadd.xlane.f32.xlu0 %v3296
    %v3298 = vpop.xlane.xlu0 %3297
    %v3300 = vrot.slane %v2729, 2
    %v3303 = vrot.slane %v2827, 4
    %v3306 = vrot.slane %v2925, 6
    %v3309 = vrot.slane %v3104, 2
    %v3312 = vrot.slane %v3201, 4
    %v3315 = vrot.slane %v3298, 6
    %v3317 = vsel %vm344, %v2634, %v3300
    %v3318 = vsel %vm346, %v3317, %v3303
    %v3319 = vsel %vm348, %v3318, %v3306
    %v3320 = vsel %vm350, %v3319, %v3010
    %vm3321 = vcmask 39936
    %v3322 = vsel %vm3321, %v3320, %v3309
    %vm3323 = vcmask 48128
    %v3324 = vsel %vm3323, %v3322, %v3312
    %vm3325 = vcmask 56320
    %v3326 = vsel %vm3325, %v3324, %v3315
    %v3328 = vrot.slane %v19, 4
    %3329 = vrot.lane.b32.xlu0 %v3328, 111
    %v3330 = vpop.permute.xlu0 %3329
    %s3331 = vtos %v3330
    %v3332 = vstv %s3331
    %v3334 = vadd.f32 %v3326, %v3332
    %3336 = vrot.lane.b32.xlu0 %v3334, 112
    %v3337 = vpop.permute.xlu0 %3336
    %vm3339 = vcmask 916480
    %v3340 = vsel %vm3339, %v2266, %v3337
    %vm3341 = vcmask 982016
    %v3342 = vsel %vm3341, %v3340, %v2266
    %3343 = vst [vmem:[#allocation3] sm:$0x3] %v3342
    // Predicated region
    $region18: #{encoder1_forward.1} parent=1 // pred_check
      _
    $region19: #{encoder1_forward.1} parent=1 // pred_check_branch
      %3345 = sbr.rel (0) target = $region21
    $region20: #{encoder1_forward.1} parent=1 // pred_region
      %3347 = vsyncadd [#allocation4], 0
      %s3349 = sshll.u32 [#allocation3], 4
      %s3350 = int_to_ptr.vmem [resolvable:$true] %s3349
      %s3351 = sshll.u32 %s4, 4
      %s3352 = int_to_ptr.hbm [resolvable:$true] %s3351
      %3354 = dma.vmem_to_hbm [thread:$0]  %s3350, 32, %s3352, [#allocation4]
    $region21: #{encoder1_forward.1} parent=1 // pred_fallthru
      _
    // Predicated region
    $region22: #{encoder1_forward.1} parent=1 // pred_check
      _
    $region23: #{encoder1_forward.1} parent=1 // pred_check_branch
      %3356 = sbr.rel (0) target = $region25
    $region24: #{encoder1_forward.1} parent=1 // pred_region
      %3358 = dma.done [#allocation4], 32
    $region25: #{encoder1_forward.1} parent=1 // pred_fallthru
      _
    %3359 = vsyncpa [#allocation4], 1

</llo_original>
